<compile_context>
chip_gen: v7x
topology: tpu7x:2x2x1
jax: 0.10.0
libtpu: 0.0.40
codegen_flags: <defaults>
</compile_context>

<pallas_src>
import functools

import jax
import jax.numpy as jnp
from jax.experimental import pallas as pl
from jax.experimental.pallas import tpu as pltpu


def _pick_block_n(n):
    """Images per grid step: amortize ~0.35us/step overhead, but keep >= 2 grid
    steps when possible so the megacore 'parallel' batch axis uses both cores."""
    for cand in (8, 4, 2):
        if n % cand == 0 and n // cand >= 2:
            return cand
    return 1


# ---------------------------------------------------------------------------
# Fused kernel: 5x5 "same" conv + bias + 2x2/stride-2 max-pool.
# The wrapper builds a bf16 im2col slab per image whose row ordering makes the
# pooling a max of contiguous, tile-aligned slices (no strided reads, no
# selection matmuls, no layout-hostile reshapes).
# ---------------------------------------------------------------------------
def _conv_pool_kernel(x_ref, w_ref, b_ref, o_ref, *,
                      n_taps, row_stride, wcols, ho, wo, rpc, quad):
    """
    x_ref : (B, rows_slab, K)   bf16 im2col slab (pre-ordered, see wrapper).
    w_ref : (n_taps, K, Cout)   bf16 weights (tap = kh for width-im2col mode).
    b_ref : (1, Cout)           f32 bias.
    o_ref : (B, Ho*Wo, Cout)    f32 pooled output, row = i*Wo + j (row-major).
    """
    block_n = x_ref.shape[0]
    bias = b_ref[...]                                     # (1, Cout) f32
    for img in range(block_n):                            # images in this block
        for c0 in range(0, ho, rpc):                      # chunks of pooled rows
            pr = min(rpc, ho - c0)
            m = 2 * pr * wcols                            # conv positions / chunk
            base = 2 * c0 * wcols
            # f32 accumulator stays in vregs across the few MXU taps.
            acc = jnp.dot(x_ref[img, pl.ds(base, m), :], w_ref[0],
                          preferred_element_type=jnp.float32)
            for t in range(1, n_taps):
                a = x_ref[img, pl.ds(base + t * row_stride, m), :]
                acc = acc + jnp.dot(a, w_ref[t],
                                    preferred_element_type=jnp.float32)
            if quad:
                # slab rows per chunk are (quadrant, pooled-row, pooled-col):
                # pooling = element-wise max of the four contiguous quarters.
                q = pr * wo
                pooled = jnp.maximum(
                    jnp.maximum(acc[0:q, :], acc[q:2 * q, :]),
                    jnp.maximum(acc[2 * q:3 * q, :], acc[3 * q:4 * q, :]),
                ) + bias
                o_ref[img, pl.ds(c0 * wo, q), :] = pooled.astype(o_ref.dtype)
            else:
                # rows are (padded-row, [even cols | odd cols]).
                for p in range(pr):                       # one 2-row pool pair
                    r0 = acc[(2 * p) * wcols:(2 * p + 1) * wcols, :]
                    r1 = acc[(2 * p + 1) * wcols:(2 * p + 2) * wcols, :]
                    v = jnp.maximum(r0, r1)               # (wcols, Cout)
                    pooled = jnp.maximum(v[:wo, :], v[wo:, :]) + bias
                    o_ref[img, pl.ds((c0 + p) * wo, wo), :] = (
                        pooled.astype(o_ref.dtype))


def conv5x5_pool(x, w, b, *, full_im2col):
    """x: (N,H,W,Cin) NHWC float; w: (5,5,Cin,Cout); b: (Cout,)
    -> (N, H//2, W//2, Cout) float32."""
    n, h, width, cin = x.shape
    cout = w.shape[-1]
    ho, wo = h // 2, width // 2

    xb = x.astype(jnp.bfloat16)
    xp = jnp.pad(xb, ((0, 0), (2, 2), (2, 2), (0, 0)))

    # Chunk size (pooled rows per chunk): ~512 conv positions per chunk keeps
    # the f32 accumulator <= 16 vregs while giving the MXU a decent M.
    rpc = min(ho, max(1, 256 // width))
    while ho % rpc:
        rpc -= 1

    if full_im2col:
        # Full 25-tap im2col: K = 25*Cin, one dot per chunk.
        cols = [xp[:, kh:kh + h, kw:kw + width, :]
                for kh in range(5) for kw in range(5)]
        patches = jnp.concatenate(cols, axis=-1)          # (N, H, W, 25*Cin)
        k = 25 * cin
        # Reorder spatial positions to (chunk, pool-quadrant, pooled i, pooled j)
        # so in-kernel pooling is max of four contiguous quarters.
        nck = ho // rpc
        slab = patches.reshape(n, nck, rpc, 2, wo, 2, k)
        slab = slab.transpose(0, 1, 3, 5, 2, 4, 6).reshape(n, h * width, k)
        n_taps, row_stride = 1, 0
        rows_slab = h * width
        wk = w.astype(jnp.bfloat16).reshape(1, k, cout)
    else:
        # Width-direction im2col: K = 5*Cin, 5 dots (one per kh) per chunk.
        cols = [xp[:, :, kw:kw + width, :] for kw in range(5)]
        slab = jnp.concatenate(cols, axis=-1)             # (N, H+4, W, 5*Cin)
        k = 5 * cin
        # Even output columns first, odd second -> horizontal pool = max of halves.
        slab = jnp.concatenate([slab[:, :, 0::2, :], slab[:, :, 1::2, :]], axis=2)
        slab = slab.reshape(n, (h + 4) * width, k)
        n_taps, row_stride = 5, width
        rows_slab = (h + 4) * width
        wk = w.astype(jnp.bfloat16).reshape(5, k, cout)

    bf = b.reshape(1, cout).astype(jnp.float32)
    block_n = _pick_block_n(n)

    kernel = functools.partial(
        _conv_pool_kernel, n_taps=n_taps, row_stride=row_stride,
        wcols=width, ho=ho, wo=wo, rpc=rpc, quad=full_im2col)

    out = pl.pallas_call(
        kernel,
        out_shape=jax.ShapeDtypeStruct((n, ho * wo, cout), jnp.float32),
        grid_spec=pltpu.PrefetchScalarGridSpec(
            num_scalar_prefetch=0,
            grid=(n // block_n,),
            in_specs=[
                pl.BlockSpec((block_n, rows_slab, k), lambda i: (i, 0, 0)),
                pl.BlockSpec((n_taps, k, cout), lambda i: (0, 0, 0)),
                pl.BlockSpec((1, cout), lambda i: (0, 0)),
            ],
            out_specs=pl.BlockSpec((block_n, ho * wo, cout), lambda i: (i, 0, 0)),
        ),
        compiler_params=pltpu.CompilerParams(
            dimension_semantics=("parallel",),            # batch axis -> megacore
            vmem_limit_bytes=32 * 1024 * 1024,
        ),
    )(slab, wk, bf)
    return out.reshape(n, ho, wo, cout)


# ---------------------------------------------------------------------------
# Fused kernel: Linear(1024,64) -> Linear(64,10) -> ReLU.
# ---------------------------------------------------------------------------
def _fc_head_kernel(x_ref, w1_ref, b1_ref, w2_ref, b2_ref, o_ref):
    hid = jnp.dot(x_ref[...], w1_ref[...],
                  preferred_element_type=jnp.float32) + b1_ref[...]
    y = jnp.dot(hid, w2_ref[...],
                preferred_element_type=jnp.float32) + b2_ref[...]
    o_ref[...] = jnp.maximum(y, 0.0).astype(o_ref.dtype)


def fc_head(x, w1, b1, w2, b2):
    n, k = x.shape
    f1, f2 = w1.shape[-1], w2.shape[-1]
    xb = x.astype(jnp.bfloat16)
    w1b = w1.astype(jnp.bfloat16)

    bt = n if n <= 256 else 256                          # batch tile
    n_pad = ((n + bt - 1) // bt) * bt
    if n_pad != n:
        xb = jnp.pad(xb, ((0, n_pad - n), (0, 0)))

    out = pl.pallas_call(
        _fc_head_kernel,
        out_shape=jax.ShapeDtypeStruct((n_pad, f2), jnp.float32),
        grid_spec=pltpu.PrefetchScalarGridSpec(
            num_scalar_prefetch=0,
            grid=(n_pad // bt,),
            in_specs=[
                pl.BlockSpec((bt, k), lambda i: (i, 0)),
                pl.BlockSpec((k, f1), lambda i: (0, 0)),
                pl.BlockSpec((1, f1), lambda i: (0, 0)),
                pl.BlockSpec((f1, f2), lambda i: (0, 0)),
                pl.BlockSpec((1, f2), lambda i: (0, 0)),
            ],
            out_specs=pl.BlockSpec((bt, f2), lambda i: (i, 0)),
        ),
        compiler_params=pltpu.CompilerParams(dimension_semantics=("parallel",)),
    )(xb, w1b, b1.reshape(1, f1).astype(jnp.float32),
      w2.astype(jnp.float32), b2.reshape(1, f2).astype(jnp.float32))
    return out[:n]


# ---------------------------------------------------------------------------
# Model: deterministic parameter init + forward pass.
# ---------------------------------------------------------------------------
def init_params(key):
    def uniform(k, shape, fan_in):
        bound = float(fan_in) ** -0.5
        return jax.random.uniform(k, shape, jnp.float32, -bound, bound)

    ks = jax.random.split(key, 10)
    return {
        "c1w": uniform(ks[0], (5, 5, 3, 32), 5 * 5 * 3),
        "c1b": uniform(ks[1], (32,), 5 * 5 * 3),
        "c2w": uniform(ks[2], (5, 5, 32, 32), 5 * 5 * 32),
        "c2b": uniform(ks[3], (32,), 5 * 5 * 32),
        "c3w": uniform(ks[4], (5, 5, 32, 64), 5 * 5 * 32),
        "c3b": uniform(ks[5], (64,), 5 * 5 * 32),
        "f1w": uniform(ks[6], (64 * 4 * 4, 64), 64 * 4 * 4),  # rows in NCHW-flatten order
        "f1b": uniform(ks[7], (64,), 64 * 4 * 4),
        "f2w": uniform(ks[8], (64, 10), 64),
        "f2b": uniform(ks[9], (10,), 64),
    }


def cnn_cifar10_forward(x_nchw, p):
    # x_nchw: (N, 3, 32, 32) float32
    x = jnp.transpose(x_nchw, (0, 2, 3, 1))                       # -> NHWC
    x = conv5x5_pool(x, p["c1w"], p["c1b"], full_im2col=True)     # (N,16,16,32)
    x = conv5x5_pool(x, p["c2w"], p["c2b"], full_im2col=False)    # (N, 8, 8,32)
    x = conv5x5_pool(x, p["c3w"], p["c3b"], full_im2col=True)     # (N, 4, 4,64)
    n = x.shape[0]
    x_flat = x.reshape(n, 4 * 4 * 64)                             # row = (h*4+w)*64 + c
    # Fold PyTorch's NCHW flatten permutation into fc1's weight rows:
    # canonical row c*16 + s  ->  kernel row s*64 + c.
    w1r = p["f1w"].reshape(64, 16, 64).transpose(1, 0, 2).reshape(16 * 64, 64)
    return fc_head(x_flat, w1r, p["f1b"], p["f2w"], p["f2b"])


# ---------------------------------------------------------------------------
# Pure-JAX reference (numerical sanity check).
# ---------------------------------------------------------------------------
def _reference_forward(x_nchw, p):
    x = jnp.transpose(x_nchw, (0, 2, 3, 1))

    def conv(x, w, b):
        y = jax.lax.conv_general_dilated(
            x, w, window_strides=(1, 1), padding=((2, 2), (2, 2)),
            dimension_numbers=("NHWC", "HWIO", "NHWC"),
            precision=jax.lax.Precision.HIGHEST)
        return y + b

    def pool(x):
        n, h, w, c = x.shape
        return jnp.max(x.reshape(n, h // 2, 2, w // 2, 2, c), axis=(2, 4))

    x = pool(conv(x, p["c1w"], p["c1b"]))
    x = pool(conv(x, p["c2w"], p["c2b"]))
    x = pool(conv(x, p["c3w"], p["c3b"]))
    n = x.shape[0]
    x = jnp.transpose(x, (0, 3, 1, 2)).reshape(n, 64 * 4 * 4)     # NCHW flatten
    x = x @ p["f1w"] + p["f1b"]
    x = x @ p["f2w"] + p["f2b"]
    return jnp.maximum(x, 0.0)


if __name__ == "__main__":
    key = jax.random.PRNGKey(0)
    kx, kp = jax.random.split(key)
    x = jax.random.normal(kx, (2, 3, 32, 32), dtype=jnp.float32)
    params = init_params(kp)

    fwd = jax.jit(cnn_cifar10_forward)
    out = fwd(x, params)
    jax.block_until_ready(out)

    assert out.shape == (2, 10), out.shape
    assert out.dtype == jnp.float32
    assert bool(jnp.all(out >= 0.0))  # final ReLU

    ref = jax.jit(_reference_forward)(x, params)
    max_err = float(jnp.max(jnp.abs(out - ref)))
    # bf16 MXU operands with f32 accumulation -> slightly looser tolerance.
    assert max_err < 5e-2, max_err

    print("KERNEL_OK")
</pallas_src>

<mosaic_0001>
module attributes {stable_mosaic.version = 11 : i64} {
  func.func @_conv_pool_kernel(%arg0: i32, %arg1: memref<1x1024x75xbf16, #tpu.memory_space<vmem>>, %arg2: memref<1x75x32xbf16, #tpu.memory_space<vmem>>, %arg3: memref<1x32xf32, #tpu.memory_space<vmem>>, %arg4: memref<1x256x32xf32, #tpu.memory_space<vmem>>) attributes {dimension_semantics = [#tpu.dimension_semantics<parallel>], iteration_bounds = array<i64: 2>, scalar_prefetch = 0 : i64, scratch_operands = 0 : i64, tpu.core_type = #tpu.core_type<tc>, window_params = [{transform_indices = @transform_0, window_bounds = array<i64: 1, 1024, 75>}, {pipeline_mode = #tpu.pipeline_mode<synchronous>, transform_indices = @transform_1, window_bounds = array<i64: 1, 75, 32>}, {pipeline_mode = #tpu.pipeline_mode<synchronous>, transform_indices = @transform_2, window_bounds = array<i64: 1, 32>}, {transform_indices = @transform_3, window_bounds = array<i64: 1, 256, 32>}]} {
    %c0 = arith.constant 0 : index
    %c0_0 = arith.constant 0 : index
    %0 = vector.load %arg3[%c0, %c0_0] : memref<1x32xf32, #tpu.memory_space<vmem>>, vector<1x32xf32>
    %c0_1 = arith.constant 0 : index
    %c0_2 = arith.constant 0 : index
    %c0_3 = arith.constant 0 : index
    %1 = vector.load %arg1[%c0_1, %c0_2, %c0_3] : memref<1x1024x75xbf16, #tpu.memory_space<vmem>>, vector<1x512x75xbf16>
    %2 = vector.shape_cast %1 : vector<1x512x75xbf16> to vector<512x75xbf16>
    %c0_4 = arith.constant 0 : index
    %c0_5 = arith.constant 0 : index
    %c0_6 = arith.constant 0 : index
    %3 = vector.load %arg2[%c0_4, %c0_5, %c0_6] : memref<1x75x32xbf16, #tpu.memory_space<vmem>>, vector<1x75x32xbf16>
    %4 = vector.shape_cast %3 : vector<1x75x32xbf16> to vector<75x32xbf16>
    %cst = arith.constant dense<0.000000e+00> : vector<512x32xf32>
    %5 = tpu.matmul %2, %4, %cst {dimension_numbers = #tpu.dot_dimension_numbers<[1], [0], [0], [1], [0, 0, 1, 1], [], []>} : vector<512x75xbf16>, vector<75x32xbf16>, vector<512x32xf32> -> vector<512x32xf32>
    %6 = vector.extract_strided_slice %5 {offsets = [0, 0], sizes = [128, 32], strides = [1, 1]} : vector<512x32xf32> to vector<128x32xf32>
    %7 = vector.extract_strided_slice %5 {offsets = [128, 0], sizes = [128, 32], strides = [1, 1]} : vector<512x32xf32> to vector<128x32xf32>
    %8 = arith.maximumf %6, %7 : vector<128x32xf32>
    %9 = vector.extract_strided_slice %5 {offsets = [256, 0], sizes = [128, 32], strides = [1, 1]} : vector<512x32xf32> to vector<128x32xf32>
    %10 = vector.extract_strided_slice %5 {offsets = [384, 0], sizes = [128, 32], strides = [1, 1]} : vector<512x32xf32> to vector<128x32xf32>
    %11 = arith.maximumf %9, %10 : vector<128x32xf32>
    %12 = arith.maximumf %8, %11 : vector<128x32xf32>
    %13 = vector.broadcast %0 : vector<1x32xf32> to vector<128x32xf32>
    %14 = arith.addf %12, %13 : vector<128x32xf32>
    %c0_7 = arith.constant 0 : index
    %c0_8 = arith.constant 0 : index
    %c0_9 = arith.constant 0 : index
    %15 = vector.load %arg4[%c0_7, %c0_8, %c0_9] : memref<1x256x32xf32, #tpu.memory_space<vmem>>, vector<1x128x32xf32>
    %16 = vector.shape_cast %15 : vector<1x128x32xf32> to vector<128x32xf32>
    %17 = vector.shape_cast %14 : vector<128x32xf32> to vector<1x128x32xf32>
    tpu.vector_store %arg4[%c0_7, %c0_8, %c0_9], %17 {strides = array<i32>} : memref<1x256x32xf32, #tpu.memory_space<vmem>>, vector<1x128x32xf32>,
    %c0_10 = arith.constant 0 : index
    %c512 = arith.constant 512 : index
    %c0_11 = arith.constant 0 : index
    %18 = vector.load %arg1[%c0_10, %c512, %c0_11] : memref<1x1024x75xbf16, #tpu.memory_space<vmem>>, vector<1x512x75xbf16>
    %19 = vector.shape_cast %18 : vector<1x512x75xbf16> to vector<512x75xbf16>
    %c0_12 = arith.constant 0 : index
    %c0_13 = arith.constant 0 : index
    %c0_14 = arith.constant 0 : index
    %20 = vector.load %arg2[%c0_12, %c0_13, %c0_14] : memref<1x75x32xbf16, #tpu.memory_space<vmem>>, vector<1x75x32xbf16>
    %21 = vector.shape_cast %20 : vector<1x75x32xbf16> to vector<75x32xbf16>
    %cst_15 = arith.constant dense<0.000000e+00> : vector<512x32xf32>
    %22 = tpu.matmul %19, %21, %cst_15 {dimension_numbers = #tpu.dot_dimension_numbers<[1], [0], [0], [1], [0, 0, 1, 1], [], []>} : vector<512x75xbf16>, vector<75x32xbf16>, vector<512x32xf32> -> vector<512x32xf32>
    %23 = vector.extract_strided_slice %22 {offsets = [0, 0], sizes = [128, 32], strides = [1, 1]} : vector<512x32xf32> to vector<128x32xf32>
    %24 = vector.extract_strided_slice %22 {offsets = [128, 0], sizes = [128, 32], strides = [1, 1]} : vector<512x32xf32> to vector<128x32xf32>
    %25 = arith.maximumf %23, %24 : vector<128x32xf32>
    %26 = vector.extract_strided_slice %22 {offsets = [256, 0], sizes = [128, 32], strides = [1, 1]} : vector<512x32xf32> to vector<128x32xf32>
    %27 = vector.extract_strided_slice %22 {offsets = [384, 0], sizes = [128, 32], strides = [1, 1]} : vector<512x32xf32> to vector<128x32xf32>
    %28 = arith.maximumf %26, %27 : vector<128x32xf32>
    %29 = arith.maximumf %25, %28 : vector<128x32xf32>
    %30 = vector.broadcast %0 : vector<1x32xf32> to vector<128x32xf32>
    %31 = arith.addf %29, %30 : vector<128x32xf32>
    %c0_16 = arith.constant 0 : index
    %c128 = arith.constant 128 : index
    %c0_17 = arith.constant 0 : index
    %32 = vector.load %arg4[%c0_16, %c128, %c0_17] : memref<1x256x32xf32, #tpu.memory_space<vmem>>, vector<1x128x32xf32>
    %33 = vector.shape_cast %32 : vector<1x128x32xf32> to vector<128x32xf32>
    %34 = vector.shape_cast %31 : vector<128x32xf32> to vector<1x128x32xf32>
    tpu.vector_store %arg4[%c0_16, %c128, %c0_17], %34 {strides = array<i32>} : memref<1x256x32xf32, #tpu.memory_space<vmem>>, vector<1x128x32xf32>,
    return
  }
  func.func @transform_0(%arg0: i32) -> (i32, i32, i32) {
    %c0_i32 = arith.constant 0 : i32
    %c0_i32_0 = arith.constant 0 : i32
    %c0_i32_1 = arith.constant 0 : i32
    return %arg0, %c0_i32, %c0_i32_0 : i32, i32, i32
  }
  func.func @transform_1(%arg0: i32) -> (i32, i32, i32) {
    %c0_i32 = arith.constant 0 : i32
    %c0_i32_0 = arith.constant 0 : i32
    %c0_i32_1 = arith.constant 0 : i32
    %c0_i32_2 = arith.constant 0 : i32
    return %c0_i32, %c0_i32_0, %c0_i32_1 : i32, i32, i32
  }
  func.func @transform_2(%arg0: i32) -> (i32, i32) {
    %c0_i32 = arith.constant 0 : i32
    %c0_i32_0 = arith.constant 0 : i32
    %c0_i32_1 = arith.constant 0 : i32
    return %c0_i32, %c0_i32_0 : i32, i32
  }
  func.func @transform_3(%arg0: i32) -> (i32, i32, i32) {
    %c0_i32 = arith.constant 0 : i32
    %c0_i32_0 = arith.constant 0 : i32
    %c0_i32_1 = arith.constant 0 : i32
    return %arg0, %c0_i32, %c0_i32_0 : i32, i32, i32
  }
}

module attributes {stable_mosaic.version = 11 : i64} {
  func.func @_conv_pool_kernel(%arg0: i32, %arg1: memref<1x320x160xbf16, #tpu.memory_space<vmem>>, %arg2: memref<5x160x32xbf16, #tpu.memory_space<vmem>>, %arg3: memref<1x32xf32, #tpu.memory_space<vmem>>, %arg4: memref<1x64x32xf32, #tpu.memory_space<vmem>>) attributes {dimension_semantics = [#tpu.dimension_semantics<parallel>], iteration_bounds = array<i64: 2>, scalar_prefetch = 0 : i64, scratch_operands = 0 : i64, tpu.core_type = #tpu.core_type<tc>, window_params = [{transform_indices = @transform_0, window_bounds = array<i64: 1, 320, 160>}, {pipeline_mode = #tpu.pipeline_mode<synchronous>, transform_indices = @transform_1, window_bounds = array<i64: 5, 160, 32>}, {pipeline_mode = #tpu.pipeline_mode<synchronous>, transform_indices = @transform_2, window_bounds = array<i64: 1, 32>}, {transform_indices = @transform_3, window_bounds = array<i64: 1, 64, 32>}]} {
    %c0 = arith.constant 0 : index
    %c0_0 = arith.constant 0 : index
    %0 = vector.load %arg3[%c0, %c0_0] : memref<1x32xf32, #tpu.memory_space<vmem>>, vector<1x32xf32>
    %c0_1 = arith.constant 0 : index
    %c0_2 = arith.constant 0 : index
    %c0_3 = arith.constant 0 : index
    %1 = vector.load %arg1[%c0_1, %c0_2, %c0_3] : memref<1x320x160xbf16, #tpu.memory_space<vmem>>, vector<1x256x160xbf16>
    %2 = vector.shape_cast %1 : vector<1x256x160xbf16> to vector<256x160xbf16>
    %c0_4 = arith.constant 0 : index
    %c0_5 = arith.constant 0 : index
    %c0_6 = arith.constant 0 : index
    %3 = vector.load %arg2[%c0_4, %c0_5, %c0_6] : memref<5x160x32xbf16, #tpu.memory_space<vmem>>, vector<1x160x32xbf16>
    %4 = vector.shape_cast %3 : vector<1x160x32xbf16> to vector<160x32xbf16>
    %cst = arith.constant dense<0.000000e+00> : vector<256x32xf32>
    %5 = tpu.matmul %2, %4, %cst {dimension_numbers = #tpu.dot_dimension_numbers<[1], [0], [0], [1], [0, 0, 1, 1], [], []>} : vector<256x160xbf16>, vector<160x32xbf16>, vector<256x32xf32> -> vector<256x32xf32>
    %c0_7 = arith.constant 0 : index
    %c16 = arith.constant 16 : index
    %c0_8 = arith.constant 0 : index
    %6 = vector.load %arg1[%c0_7, %c16, %c0_8] : memref<1x320x160xbf16, #tpu.memory_space<vmem>>, vector<1x256x160xbf16>
    %7 = vector.shape_cast %6 : vector<1x256x160xbf16> to vector<256x160xbf16>
    %c1 = arith.constant 1 : index
    %c0_9 = arith.constant 0 : index
    %c0_10 = arith.constant 0 : index
    %8 = vector.load %arg2[%c1, %c0_9, %c0_10] : memref<5x160x32xbf16, #tpu.memory_space<vmem>>, vector<1x160x32xbf16>
    %9 = vector.shape_cast %8 : vector<1x160x32xbf16> to vector<160x32xbf16>
    %cst_11 = arith.constant dense<0.000000e+00> : vector<256x32xf32>
    %10 = tpu.matmul %7, %9, %cst_11 {dimension_numbers = #tpu.dot_dimension_numbers<[1], [0], [0], [1], [0, 0, 1, 1], [], []>} : vector<256x160xbf16>, vector<160x32xbf16>, vector<256x32xf32> -> vector<256x32xf32>
    %11 = arith.addf %5, %10 : vector<256x32xf32>
    %c0_12 = arith.constant 0 : index
    %c32 = arith.constant 32 : index
    %c0_13 = arith.constant 0 : index
    %12 = vector.load %arg1[%c0_12, %c32, %c0_13] : memref<1x320x160xbf16, #tpu.memory_space<vmem>>, vector<1x256x160xbf16>
    %13 = vector.shape_cast %12 : vector<1x256x160xbf16> to vector<256x160xbf16>
    %c2 = arith.constant 2 : index
    %c0_14 = arith.constant 0 : index
    %c0_15 = arith.constant 0 : index
    %14 = vector.load %arg2[%c2, %c0_14, %c0_15] : memref<5x160x32xbf16, #tpu.memory_space<vmem>>, vector<1x160x32xbf16>
    %15 = vector.shape_cast %14 : vector<1x160x32xbf16> to vector<160x32xbf16>
    %cst_16 = arith.constant dense<0.000000e+00> : vector<256x32xf32>
    %16 = tpu.matmul %13, %15, %cst_16 {dimension_numbers = #tpu.dot_dimension_numbers<[1], [0], [0], [1], [0, 0, 1, 1], [], []>} : vector<256x160xbf16>, vector<160x32xbf16>, vector<256x32xf32> -> vector<256x32xf32>
    %17 = arith.addf %11, %16 : vector<256x32xf32>
    %c0_17 = arith.constant 0 : index
    %c48 = arith.constant 48 : index
    %c0_18 = arith.constant 0 : index
    %18 = vector.load %arg1[%c0_17, %c48, %c0_18] : memref<1x320x160xbf16, #tpu.memory_space<vmem>>, vector<1x256x160xbf16>
    %19 = vector.shape_cast %18 : vector<1x256x160xbf16> to vector<256x160xbf16>
    %c3 = arith.constant 3 : index
    %c0_19 = arith.constant 0 : index
    %c0_20 = arith.constant 0 : index
    %20 = vector.load %arg2[%c3, %c0_19, %c0_20] : memref<5x160x32xbf16, #tpu.memory_space<vmem>>, vector<1x160x32xbf16>
    %21 = vector.shape_cast %20 : vector<1x160x32xbf16> to vector<160x32xbf16>
    %cst_21 = arith.constant dense<0.000000e+00> : vector<256x32xf32>
    %22 = tpu.matmul %19, %21, %cst_21 {dimension_numbers = #tpu.dot_dimension_numbers<[1], [0], [0], [1], [0, 0, 1, 1], [], []>} : vector<256x160xbf16>, vector<160x32xbf16>, vector<256x32xf32> -> vector<256x32xf32>
    %23 = arith.addf %17, %22 : vector<256x32xf32>
    %c0_22 = arith.constant 0 : index
    %c64 = arith.constant 64 : index
    %c0_23 = arith.constant 0 : index
    %24 = vector.load %arg1[%c0_22, %c64, %c0_23] : memref<1x320x160xbf16, #tpu.memory_space<vmem>>, vector<1x256x160xbf16>
    %25 = vector.shape_cast %24 : vector<1x256x160xbf16> to vector<256x160xbf16>
    %c4 = arith.constant 4 : index
    %c0_24 = arith.constant 0 : index
    %c0_25 = arith.constant 0 : index
    %26 = vector.load %arg2[%c4, %c0_24, %c0_25] : memref<5x160x32xbf16, #tpu.memory_space<vmem>>, vector<1x160x32xbf16>
    %27 = vector.shape_cast %26 : vector<1x160x32xbf16> to vector<160x32xbf16>
    %cst_26 = arith.constant dense<0.000000e+00> : vector<256x32xf32>
    %28 = tpu.matmul %25, %27, %cst_26 {dimension_numbers = #tpu.dot_dimension_numbers<[1], [0], [0], [1], [0, 0, 1, 1], [], []>} : vector<256x160xbf16>, vector<160x32xbf16>, vector<256x32xf32> -> vector<256x32xf32>
    %29 = arith.addf %23, %28 : vector<256x32xf32>
    %30 = vector.extract_strided_slice %29 {offsets = [0, 0], sizes = [16, 32], strides = [1, 1]} : vector<256x32xf32> to vector<16x32xf32>
    %31 = vector.extract_strided_slice %29 {offsets = [16, 0], sizes = [16, 32], strides = [1, 1]} : vector<256x32xf32> to vector<16x32xf32>
    %32 = arith.maximumf %30, %31 : vector<16x32xf32>
    %33 = vector.extract_strided_slice %32 {offsets = [0, 0], sizes = [8, 32], strides = [1, 1]} : vector<16x32xf32> to vector<8x32xf32>
    %34 = vector.extract_strided_slice %32 {offsets = [8, 0], sizes = [8, 32], strides = [1, 1]} : vector<16x32xf32> to vector<8x32xf32>
    %35 = arith.maximumf %33, %34 : vector<8x32xf32>
    %36 = vector.broadcast %0 : vector<1x32xf32> to vector<8x32xf32>
    %37 = arith.addf %35, %36 : vector<8x32xf32>
    %c0_27 = arith.constant 0 : index
    %c0_28 = arith.constant 0 : index
    %c0_29 = arith.constant 0 : index
    %38 = vector.load %arg4[%c0_27, %c0_28, %c0_29] : memref<1x64x32xf32, #tpu.memory_space<vmem>>, vector<1x8x32xf32>
    %39 = vector.shape_cast %38 : vector<1x8x32xf32> to vector<8x32xf32>
    %40 = vector.shape_cast %37 : vector<8x32xf32> to vector<1x8x32xf32>
    tpu.vector_store %arg4[%c0_27, %c0_28, %c0_29], %40 {strides = array<i32>} : memref<1x64x32xf32, #tpu.memory_space<vmem>>, vector<1x8x32xf32>,
    %41 = vector.extract_strided_slice %29 {offsets = [32, 0], sizes = [16, 32], strides = [1, 1]} : vector<256x32xf32> to vector<16x32xf32>
    %42 = vector.extract_strided_slice %29 {offsets = [48, 0], sizes = [16, 32], strides = [1, 1]} : vector<256x32xf32> to vector<16x32xf32>
    %43 = arith.maximumf %41, %42 : vector<16x32xf32>
    %44 = vector.extract_strided_slice %43 {offsets = [0, 0], sizes = [8, 32], strides = [1, 1]} : vector<16x32xf32> to vector<8x32xf32>
    %45 = vector.extract_strided_slice %43 {offsets = [8, 0], sizes = [8, 32], strides = [1, 1]} : vector<16x32xf32> to vector<8x32xf32>
    %46 = arith.maximumf %44, %45 : vector<8x32xf32>
    %47 = vector.broadcast %0 : vector<1x32xf32> to vector<8x32xf32>
    %48 = arith.addf %46, %47 : vector<8x32xf32>
    %c0_30 = arith.constant 0 : index
    %c8 = arith.constant 8 : index
    %c0_31 = arith.constant 0 : index
    %49 = vector.load %arg4[%c0_30, %c8, %c0_31] : memref<1x64x32xf32, #tpu.memory_space<vmem>>, vector<1x8x32xf32>
    %50 = vector.shape_cast %49 : vector<1x8x32xf32> to vector<8x32xf32>
    %51 = vector.shape_cast %48 : vector<8x32xf32> to vector<1x8x32xf32>
    tpu.vector_store %arg4[%c0_30, %c8, %c0_31], %51 {strides = array<i32>} : memref<1x64x32xf32, #tpu.memory_space<vmem>>, vector<1x8x32xf32>,
    %52 = vector.extract_strided_slice %29 {offsets = [64, 0], sizes = [16, 32], strides = [1, 1]} : vector<256x32xf32> to vector<16x32xf32>
    %53 = vector.extract_strided_slice %29 {offsets = [80, 0], sizes = [16, 32], strides = [1, 1]} : vector<256x32xf32> to vector<16x32xf32>
    %54 = arith.maximumf %52, %53 : vector<16x32xf32>
    %55 = vector.extract_strided_slice %54 {offsets = [0, 0], sizes = [8, 32], strides = [1, 1]} : vector<16x32xf32> to vector<8x32xf32>
    %56 = vector.extract_strided_slice %54 {offsets = [8, 0], sizes = [8, 32], strides = [1, 1]} : vector<16x32xf32> to vector<8x32xf32>
    %57 = arith.maximumf %55, %56 : vector<8x32xf32>
    %58 = vector.broadcast %0 : vector<1x32xf32> to vector<8x32xf32>
    %59 = arith.addf %57, %58 : vector<8x32xf32>
    %c0_32 = arith.constant 0 : index
    %c16_33 = arith.constant 16 : index
    %c0_34 = arith.constant 0 : index
    %60 = vector.load %arg4[%c0_32, %c16_33, %c0_34] : memref<1x64x32xf32, #tpu.memory_space<vmem>>, vector<1x8x32xf32>
    %61 = vector.shape_cast %60 : vector<1x8x32xf32> to vector<8x32xf32>
    %62 = vector.shape_cast %59 : vector<8x32xf32> to vector<1x8x32xf32>
    tpu.vector_store %arg4[%c0_32, %c16_33, %c0_34], %62 {strides = array<i32>} : memref<1x64x32xf32, #tpu.memory_space<vmem>>, vector<1x8x32xf32>,
    %63 = vector.extract_strided_slice %29 {offsets = [96, 0], sizes = [16, 32], strides = [1, 1]} : vector<256x32xf32> to vector<16x32xf32>
    %64 = vector.extract_strided_slice %29 {offsets = [112, 0], sizes = [16, 32], strides = [1, 1]} : vector<256x32xf32> to vector<16x32xf32>
    %65 = arith.maximumf %63, %64 : vector<16x32xf32>
    %66 = vector.extract_strided_slice %65 {offsets = [0, 0], sizes = [8, 32], strides = [1, 1]} : vector<16x32xf32> to vector<8x32xf32>
    %67 = vector.extract_strided_slice %65 {offsets = [8, 0], sizes = [8, 32], strides = [1, 1]} : vector<16x32xf32> to vector<8x32xf32>
    %68 = arith.maximumf %66, %67 : vector<8x32xf32>
    %69 = vector.broadcast %0 : vector<1x32xf32> to vector<8x32xf32>
    %70 = arith.addf %68, %69 : vector<8x32xf32>
    %c0_35 = arith.constant 0 : index
    %c24 = arith.constant 24 : index
    %c0_36 = arith.constant 0 : index
    %71 = vector.load %arg4[%c0_35, %c24, %c0_36] : memref<1x64x32xf32, #tpu.memory_space<vmem>>, vector<1x8x32xf32>
    %72 = vector.shape_cast %71 : vector<1x8x32xf32> to vector<8x32xf32>
    %73 = vector.shape_cast %70 : vector<8x32xf32> to vector<1x8x32xf32>
    tpu.vector_store %arg4[%c0_35, %c24, %c0_36], %73 {strides = array<i32>} : memref<1x64x32xf32, #tpu.memory_space<vmem>>, vector<1x8x32xf32>,
    %74 = vector.extract_strided_slice %29 {offsets = [128, 0], sizes = [16, 32], strides = [1, 1]} : vector<256x32xf32> to vector<16x32xf32>
    %75 = vector.extract_strided_slice %29 {offsets = [144, 0], sizes = [16, 32], strides = [1, 1]} : vector<256x32xf32> to vector<16x32xf32>
    %76 = arith.maximumf %74, %75 : vector<16x32xf32>
    %77 = vector.extract_strided_slice %76 {offsets = [0, 0], sizes = [8, 32], strides = [1, 1]} : vector<16x32xf32> to vector<8x32xf32>
    %78 = vector.extract_strided_slice %76 {offsets = [8, 0], sizes = [8, 32], strides = [1, 1]} : vector<16x32xf32> to vector<8x32xf32>
    %79 = arith.maximumf %77, %78 : vector<8x32xf32>
    %80 = vector.broadcast %0 : vector<1x32xf32> to vector<8x32xf32>
    %81 = arith.addf %79, %80 : vector<8x32xf32>
    %c0_37 = arith.constant 0 : index
    %c32_38 = arith.constant 32 : index
    %c0_39 = arith.constant 0 : index
    %82 = vector.load %arg4[%c0_37, %c32_38, %c0_39] : memref<1x64x32xf32, #tpu.memory_space<vmem>>, vector<1x8x32xf32>
    %83 = vector.shape_cast %82 : vector<1x8x32xf32> to vector<8x32xf32>
    %84 = vector.shape_cast %81 : vector<8x32xf32> to vector<1x8x32xf32>
    tpu.vector_store %arg4[%c0_37, %c32_38, %c0_39], %84 {strides = array<i32>} : memref<1x64x32xf32, #tpu.memory_space<vmem>>, vector<1x8x32xf32>,
    %85 = vector.extract_strided_slice %29 {offsets = [160, 0], sizes = [16, 32], strides = [1, 1]} : vector<256x32xf32> to vector<16x32xf32>
    %86 = vector.extract_strided_slice %29 {offsets = [176, 0], sizes = [16, 32], strides = [1, 1]} : vector<256x32xf32> to vector<16x32xf32>
    %87 = arith.maximumf %85, %86 : vector<16x32xf32>
    %88 = vector.extract_strided_slice %87 {offsets = [0, 0], sizes = [8, 32], strides = [1, 1]} : vector<16x32xf32> to vector<8x32xf32>
    %89 = vector.extract_strided_slice %87 {offsets = [8, 0], sizes = [8, 32], strides = [1, 1]} : vector<16x32xf32> to vector<8x32xf32>
    %90 = arith.maximumf %88, %89 : vector<8x32xf32>
    %91 = vector.broadcast %0 : vector<1x32xf32> to vector<8x32xf32>
    %92 = arith.addf %90, %91 : vector<8x32xf32>
    %c0_40 = arith.constant 0 : index
    %c40 = arith.constant 40 : index
    %c0_41 = arith.constant 0 : index
    %93 = vector.load %arg4[%c0_40, %c40, %c0_41] : memref<1x64x32xf32, #tpu.memory_space<vmem>>, vector<1x8x32xf32>
    %94 = vector.shape_cast %93 : vector<1x8x32xf32> to vector<8x32xf32>
    %95 = vector.shape_cast %92 : vector<8x32xf32> to vector<1x8x32xf32>
    tpu.vector_store %arg4[%c0_40, %c40, %c0_41], %95 {strides = array<i32>} : memref<1x64x32xf32, #tpu.memory_space<vmem>>, vector<1x8x32xf32>,
    %96 = vector.extract_strided_slice %29 {offsets = [192, 0], sizes = [16, 32], strides = [1, 1]} : vector<256x32xf32> to vector<16x32xf32>
    %97 = vector.extract_strided_slice %29 {offsets = [208, 0], sizes = [16, 32], strides = [1, 1]} : vector<256x32xf32> to vector<16x32xf32>
    %98 = arith.maximumf %96, %97 : vector<16x32xf32>
    %99 = vector.extract_strided_slice %98 {offsets = [0, 0], sizes = [8, 32], strides = [1, 1]} : vector<16x32xf32> to vector<8x32xf32>
    %100 = vector.extract_strided_slice %98 {offsets = [8, 0], sizes = [8, 32], strides = [1, 1]} : vector<16x32xf32> to vector<8x32xf32>
    %101 = arith.maximumf %99, %100 : vector<8x32xf32>
    %102 = vector.broadcast %0 : vector<1x32xf32> to vector<8x32xf32>
    %103 = arith.addf %101, %102 : vector<8x32xf32>
    %c0_42 = arith.constant 0 : index
    %c48_43 = arith.constant 48 : index
    %c0_44 = arith.constant 0 : index
    %104 = vector.load %arg4[%c0_42, %c48_43, %c0_44] : memref<1x64x32xf32, #tpu.memory_space<vmem>>, vector<1x8x32xf32>
    %105 = vector.shape_cast %104 : vector<1x8x32xf32> to vector<8x32xf32>
    %106 = vector.shape_cast %103 : vector<8x32xf32> to vector<1x8x32xf32>
    tpu.vector_store %arg4[%c0_42, %c48_43, %c0_44], %106 {strides = array<i32>} : memref<1x64x32xf32, #tpu.memory_space<vmem>>, vector<1x8x32xf32>,
    %107 = vector.extract_strided_slice %29 {offsets = [224, 0], sizes = [16, 32], strides = [1, 1]} : vector<256x32xf32> to vector<16x32xf32>
    %108 = vector.extract_strided_slice %29 {offsets = [240, 0], sizes = [16, 32], strides = [1, 1]} : vector<256x32xf32> to vector<16x32xf32>
    %109 = arith.maximumf %107, %108 : vector<16x32xf32>
    %110 = vector.extract_strided_slice %109 {offsets = [0, 0], sizes = [8, 32], strides = [1, 1]} : vector<16x32xf32> to vector<8x32xf32>
    %111 = vector.extract_strided_slice %109 {offsets = [8, 0], sizes = [8, 32], strides = [1, 1]} : vector<16x32xf32> to vector<8x32xf32>
    %112 = arith.maximumf %110, %111 : vector<8x32xf32>
    %113 = vector.broadcast %0 : vector<1x32xf32> to vector<8x32xf32>
    %114 = arith.addf %112, %113 : vector<8x32xf32>
    %c0_45 = arith.constant 0 : index
    %c56 = arith.constant 56 : index
    %c0_46 = arith.constant 0 : index
    %115 = vector.load %arg4[%c0_45, %c56, %c0_46] : memref<1x64x32xf32, #tpu.memory_space<vmem>>, vector<1x8x32xf32>
    %116 = vector.shape_cast %115 : vector<1x8x32xf32> to vector<8x32xf32>
    %117 = vector.shape_cast %114 : vector<8x32xf32> to vector<1x8x32xf32>
    tpu.vector_store %arg4[%c0_45, %c56, %c0_46], %117 {strides = array<i32>} : memref<1x64x32xf32, #tpu.memory_space<vmem>>, vector<1x8x32xf32>,
    return
  }
  func.func @transform_0(%arg0: i32) -> (i32, i32, i32) {
    %c0_i32 = arith.constant 0 : i32
    %c0_i32_0 = arith.constant 0 : i32
    %c0_i32_1 = arith.constant 0 : i32
    return %arg0, %c0_i32, %c0_i32_0 : i32, i32, i32
  }
  func.func @transform_1(%arg0: i32) -> (i32, i32, i32) {
    %c0_i32 = arith.constant 0 : i32
    %c0_i32_0 = arith.constant 0 : i32
    %c0_i32_1 = arith.constant 0 : i32
    %c0_i32_2 = arith.constant 0 : i32
    return %c0_i32, %c0_i32_0, %c0_i32_1 : i32, i32, i32
  }
  func.func @transform_2(%arg0: i32) -> (i32, i32) {
    %c0_i32 = arith.constant 0 : i32
    %c0_i32_0 = arith.constant 0 : i32
    %c0_i32_1 = arith.constant 0 : i32
    return %c0_i32, %c0_i32_0 : i32, i32
  }
  func.func @transform_3(%arg0: i32) -> (i32, i32, i32) {
    %c0_i32 = arith.constant 0 : i32
    %c0_i32_0 = arith.constant 0 : i32
    %c0_i32_1 = arith.constant 0 : i32
    return %arg0, %c0_i32, %c0_i32_0 : i32, i32, i32
  }
}

module attributes {stable_mosaic.version = 11 : i64} {
  func.func @_conv_pool_kernel(%arg0: i32, %arg1: memref<1x64x800xbf16, #tpu.memory_space<vmem>>, %arg2: memref<1x800x64xbf16, #tpu.memory_space<vmem>>, %arg3: memref<1x64xf32, #tpu.memory_space<vmem>>, %arg4: memref<1x16x64xf32, #tpu.memory_space<vmem>>) attributes {dimension_semantics = [#tpu.dimension_semantics<parallel>], iteration_bounds = array<i64: 2>, scalar_prefetch = 0 : i64, scratch_operands = 0 : i64, tpu.core_type = #tpu.core_type<tc>, window_params = [{transform_indices = @transform_0, window_bounds = array<i64: 1, 64, 800>}, {pipeline_mode = #tpu.pipeline_mode<synchronous>, transform_indices = @transform_1, window_bounds = array<i64: 1, 800, 64>}, {pipeline_mode = #tpu.pipeline_mode<synchronous>, transform_indices = @transform_2, window_bounds = array<i64: 1, 64>}, {transform_indices = @transform_3, window_bounds = array<i64: 1, 16, 64>}]} {
    %c0 = arith.constant 0 : index
    %c0_0 = arith.constant 0 : index
    %0 = vector.load %arg3[%c0, %c0_0] : memref<1x64xf32, #tpu.memory_space<vmem>>, vector<1x64xf32>
    %c0_1 = arith.constant 0 : index
    %c0_2 = arith.constant 0 : index
    %c0_3 = arith.constant 0 : index
    %1 = vector.load %arg1[%c0_1, %c0_2, %c0_3] : memref<1x64x800xbf16, #tpu.memory_space<vmem>>, vector<1x64x800xbf16>
    %2 = vector.shape_cast %1 : vector<1x64x800xbf16> to vector<64x800xbf16>
    %c0_4 = arith.constant 0 : index
    %c0_5 = arith.constant 0 : index
    %c0_6 = arith.constant 0 : index
    %3 = vector.load %arg2[%c0_4, %c0_5, %c0_6] : memref<1x800x64xbf16, #tpu.memory_space<vmem>>, vector<1x800x64xbf16>
    %4 = vector.shape_cast %3 : vector<1x800x64xbf16> to vector<800x64xbf16>
    %cst = arith.constant dense<0.000000e+00> : vector<64x64xf32>
    %5 = tpu.matmul %2, %4, %cst {dimension_numbers = #tpu.dot_dimension_numbers<[1], [0], [0], [1], [0, 0, 1, 1], [], []>} : vector<64x800xbf16>, vector<800x64xbf16>, vector<64x64xf32> -> vector<64x64xf32>
    %6 = vector.extract_strided_slice %5 {offsets = [0, 0], sizes = [16, 64], strides = [1, 1]} : vector<64x64xf32> to vector<16x64xf32>
    %7 = vector.extract_strided_slice %5 {offsets = [16, 0], sizes = [16, 64], strides = [1, 1]} : vector<64x64xf32> to vector<16x64xf32>
    %8 = arith.maximumf %6, %7 : vector<16x64xf32>
    %9 = vector.extract_strided_slice %5 {offsets = [32, 0], sizes = [16, 64], strides = [1, 1]} : vector<64x64xf32> to vector<16x64xf32>
    %10 = vector.extract_strided_slice %5 {offsets = [48, 0], sizes = [16, 64], strides = [1, 1]} : vector<64x64xf32> to vector<16x64xf32>
    %11 = arith.maximumf %9, %10 : vector<16x64xf32>
    %12 = arith.maximumf %8, %11 : vector<16x64xf32>
    %13 = vector.broadcast %0 : vector<1x64xf32> to vector<16x64xf32>
    %14 = arith.addf %12, %13 : vector<16x64xf32>
    %c0_7 = arith.constant 0 : index
    %c0_8 = arith.constant 0 : index
    %c0_9 = arith.constant 0 : index
    %15 = vector.load %arg4[%c0_7, %c0_8, %c0_9] : memref<1x16x64xf32, #tpu.memory_space<vmem>>, vector<1x16x64xf32>
    %16 = vector.shape_cast %15 : vector<1x16x64xf32> to vector<16x64xf32>
    %17 = vector.shape_cast %14 : vector<16x64xf32> to vector<1x16x64xf32>
    tpu.vector_store %arg4[%c0_7, %c0_8, %c0_9], %17 {strides = array<i32>} : memref<1x16x64xf32, #tpu.memory_space<vmem>>, vector<1x16x64xf32>,
    return
  }
  func.func @transform_0(%arg0: i32) -> (i32, i32, i32) {
    %c0_i32 = arith.constant 0 : i32
    %c0_i32_0 = arith.constant 0 : i32
    %c0_i32_1 = arith.constant 0 : i32
    return %arg0, %c0_i32, %c0_i32_0 : i32, i32, i32
  }
  func.func @transform_1(%arg0: i32) -> (i32, i32, i32) {
    %c0_i32 = arith.constant 0 : i32
    %c0_i32_0 = arith.constant 0 : i32
    %c0_i32_1 = arith.constant 0 : i32
    %c0_i32_2 = arith.constant 0 : i32
    return %c0_i32, %c0_i32_0, %c0_i32_1 : i32, i32, i32
  }
  func.func @transform_2(%arg0: i32) -> (i32, i32) {
    %c0_i32 = arith.constant 0 : i32
    %c0_i32_0 = arith.constant 0 : i32
    %c0_i32_1 = arith.constant 0 : i32
    return %c0_i32, %c0_i32_0 : i32, i32
  }
  func.func @transform_3(%arg0: i32) -> (i32, i32, i32) {
    %c0_i32 = arith.constant 0 : i32
    %c0_i32_0 = arith.constant 0 : i32
    %c0_i32_1 = arith.constant 0 : i32
    return %arg0, %c0_i32, %c0_i32_0 : i32, i32, i32
  }
}

module attributes {stable_mosaic.version = 11 : i64} {
  func.func @_fc_head_kernel(%arg0: i32, %arg1: memref<2x1024xbf16, #tpu.memory_space<vmem>>, %arg2: memref<1024x64xbf16, #tpu.memory_space<vmem>>, %arg3: memref<1x64xf32, #tpu.memory_space<vmem>>, %arg4: memref<64x10xf32, #tpu.memory_space<vmem>>, %arg5: memref<1x10xf32, #tpu.memory_space<vmem>>, %arg6: memref<2x10xf32, #tpu.memory_space<vmem>>) attributes {dimension_semantics = [#tpu.dimension_semantics<parallel>], iteration_bounds = array<i64: 1>, scalar_prefetch = 0 : i64, scratch_operands = 0 : i64, tpu.core_type = #tpu.core_type<tc>, window_params = [{transform_indices = @transform_0, window_bounds = array<i64: 2, 1024>}, {pipeline_mode = #tpu.pipeline_mode<synchronous>, transform_indices = @transform_1, window_bounds = array<i64: 1024, 64>}, {pipeline_mode = #tpu.pipeline_mode<synchronous>, transform_indices = @transform_2, window_bounds = array<i64: 1, 64>}, {pipeline_mode = #tpu.pipeline_mode<synchronous>, transform_indices = @transform_3, window_bounds = array<i64: 64, 10>}, {pipeline_mode = #tpu.pipeline_mode<synchronous>, transform_indices = @transform_4, window_bounds = array<i64: 1, 10>}, {transform_indices = @transform_5, window_bounds = array<i64: 2, 10>}]} {
    %c0 = arith.constant 0 : index
    %c0_0 = arith.constant 0 : index
    %0 = vector.load %arg1[%c0, %c0_0] : memref<2x1024xbf16, #tpu.memory_space<vmem>>, vector<2x1024xbf16>
    %c0_1 = arith.constant 0 : index
    %c0_2 = arith.constant 0 : index
    %1 = vector.load %arg2[%c0_1, %c0_2] : memref<1024x64xbf16, #tpu.memory_space<vmem>>, vector<1024x64xbf16>
    %cst = arith.constant dense<0.000000e+00> : vector<2x64xf32>
    %2 = tpu.matmul %0, %1, %cst {dimension_numbers = #tpu.dot_dimension_numbers<[1], [0], [0], [1], [0, 0, 1, 1], [], []>} : vector<2x1024xbf16>, vector<1024x64xbf16>, vector<2x64xf32> -> vector<2x64xf32>
    %c0_3 = arith.constant 0 : index
    %c0_4 = arith.constant 0 : index
    %3 = vector.load %arg3[%c0_3, %c0_4] : memref<1x64xf32, #tpu.memory_space<vmem>>, vector<1x64xf32>
    %4 = vector.broadcast %3 : vector<1x64xf32> to vector<2x64xf32>
    %5 = arith.addf %2, %4 : vector<2x64xf32>
    %c0_5 = arith.constant 0 : index
    %c0_6 = arith.constant 0 : index
    %6 = vector.load %arg4[%c0_5, %c0_6] : memref<64x10xf32, #tpu.memory_space<vmem>>, vector<64x10xf32>
    %cst_7 = arith.constant dense<0.000000e+00> : vector<2x10xf32>
    %7 = tpu.matmul %5, %6, %cst_7 {dimension_numbers = #tpu.dot_dimension_numbers<[1], [0], [0], [1], [0, 0, 1, 1], [], []>} : vector<2x64xf32>, vector<64x10xf32>, vector<2x10xf32> -> vector<2x10xf32>
    %c0_8 = arith.constant 0 : index
    %c0_9 = arith.constant 0 : index
    %8 = vector.load %arg5[%c0_8, %c0_9] : memref<1x10xf32, #tpu.memory_space<vmem>>, vector<1x10xf32>
    %9 = vector.broadcast %8 : vector<1x10xf32> to vector<2x10xf32>
    %10 = arith.addf %7, %9 : vector<2x10xf32>
    %cst_10 = arith.constant 0.000000e+00 : f32
    %11 = vector.broadcast %cst_10 : f32 to vector<2x10xf32>
    %12 = arith.maximumf %10, %11 : vector<2x10xf32>
    %c0_11 = arith.constant 0 : index
    %c0_12 = arith.constant 0 : index
    %13 = vector.load %arg6[%c0_11, %c0_12] : memref<2x10xf32, #tpu.memory_space<vmem>>, vector<2x10xf32>
    tpu.vector_store %arg6[%c0_11, %c0_12], %12 {strides = array<i32>} : memref<2x10xf32, #tpu.memory_space<vmem>>, vector<2x10xf32>,
    return
  }
  func.func @transform_0(%arg0: i32) -> (i32, i32) {
    %c0_i32 = arith.constant 0 : i32
    %c0_i32_0 = arith.constant 0 : i32
    return %arg0, %c0_i32 : i32, i32
  }
  func.func @transform_1(%arg0: i32) -> (i32, i32) {
    %c0_i32 = arith.constant 0 : i32
    %c0_i32_0 = arith.constant 0 : i32
    %c0_i32_1 = arith.constant 0 : i32
    return %c0_i32, %c0_i32_0 : i32, i32
  }
  func.func @transform_2(%arg0: i32) -> (i32, i32) {
    %c0_i32 = arith.constant 0 : i32
    %c0_i32_0 = arith.constant 0 : i32
    %c0_i32_1 = arith.constant 0 : i32
    return %c0_i32, %c0_i32_0 : i32, i32
  }
  func.func @transform_3(%arg0: i32) -> (i32, i32) {
    %c0_i32 = arith.constant 0 : i32
    %c0_i32_0 = arith.constant 0 : i32
    %c0_i32_1 = arith.constant 0 : i32
    return %c0_i32, %c0_i32_0 : i32, i32
  }
  func.func @transform_4(%arg0: i32) -> (i32, i32) {
    %c0_i32 = arith.constant 0 : i32
    %c0_i32_0 = arith.constant 0 : i32
    %c0_i32_1 = arith.constant 0 : i32
    return %c0_i32, %c0_i32_0 : i32, i32
  }
  func.func @transform_5(%arg0: i32) -> (i32, i32) {
    %c0_i32 = arith.constant 0 : i32
    %c0_i32_0 = arith.constant 0 : i32
    return %arg0, %c0_i32 : i32, i32
  }
}

</mosaic_0001>

<llo_original>
// kernel: cnn_cifar10_forward.4
$region0: #{cnn_cifar10_forward.4}
  #allocation0 [shape = 'u32[]', space=smem, size = 0x4, offset = 0x4, fixed_abs, tag = 'smem constant byte address 0x4 - core index']
  #allocation1 [shape = 'u32[144,128]{1,0:T(1,128)}', space=vmem, size = 0x12000, scoped, tag = 'internal scratch']
  %s0 = inlined_call_operand.vmem [shape: bf16[2,1024,75], index: 0, kind: input, shape index: {}]
  %s1 = inlined_call_operand.vmem [shape: bf16[1,75,32], index: 1, kind: input, shape index: {}]
  %s2 = inlined_call_operand.vmem [shape: f32[1,32], index: 2, kind: input, shape index: {}]
  %s3 = inlined_call_operand.vmem [shape: f32[2,256,32], index: 3, kind: output, shape index: {}]
  %s4 = sld [smem:[#allocation0]]
  $region45: #{cnn_cifar10_forward.4} parent=0
    _
  %s6 = ssub.s32 1, %s4
  %s7 = scalar_select 0, %s6, %s4
  loop: start=0, step=1, limit=4
  $region2: #{cnn_cifar10_forward.4} parent=0 // loop_pre_header
    _
  $region3: #{cnn_cifar10_forward.4} parent=0 // loop_header
    %s9 = sphi 0, %s13
    %p10 = scmp.ge.s32.totalorder %s9, 4
    %s19 = sphi 0, %s21
    %s22 = sphi 0, %s19
    %s23 = sphi 0, %s22
    %s39 = sphi 0, %s23
    %s43 = sphi 0, %s43
    %s45 = sphi 0, %s43
    %s46 = sphi 0, %s45
    %s60 = sphi 0, %s46
    %s64 = sphi 0, %s64
    %s66 = sphi 0, %s64
    %s67 = sphi 0, %s66
    %s81 = sphi 0, %s67
    %s87 = sphi 0, %s89
    %s90 = sphi 0, %s87
    %s91 = sphi 0, %s90
    %s107 = sphi 0, %s91
  $region4: #{cnn_cifar10_forward.4} parent=0 // loop_header_branch
    %12 = sbr.rel (%p10) target = $region8
  $region5: #{cnn_cifar10_forward.4} parent=0 // loop_body
    %s14 = ssub.s32 %s9, 1
    %s15 = ssub.s32 %s9, 2
    %s16 = sadd.s32 %s9, 1
    %s17 = ssub.s32 %s9, %s16
    %p18 = scmp.eq.s32.totalorder %s17, 0
    %s20 = sadd.s32 %s19, 1
    %s21 = scalar_select %p18, %s19, %s20
    %p24 = pneg %p18
    %p25 = scmp.eq.s32.totalorder %s9, 1
    %p26 = por %p24, %p25
    %p27 = scmp.ne.s32.totalorder %s19, %s22
    %p28 = scmp.eq.s32.totalorder %s9, 0
    %p29 = por %p27, %p28
    %p30 = scmp.ne.s32.totalorder %s19, %s22
    %p31 = scmp.eq.s32.totalorder %s14, 1
    %p32 = por %p30, %p31
    %p33 = scmp.ne.s32.totalorder %s22, %s23
    %p34 = scmp.eq.s32.totalorder %s14, 0
    %p35 = por %p33, %p34
    %p36 = scmp.ne.s32.totalorder %s22, %s23
    %p37 = scmp.eq.s32.totalorder %s15, 1
    %p38 = por %p36, %p37
    %p40 = scmp.ne.s32.totalorder %s23, %s39
    %p41 = scmp.eq.s32.totalorder %s15, 0
    %p42 = por %p40, %p41
    %s44 = sadd.s32 %s43, 1
    %p47 = scmp.eq.s32.totalorder %s9, 1
    %p48 = scmp.ne.s32.totalorder %s43, %s45
    %p49 = scmp.eq.s32.totalorder %s9, 0
    %p50 = por %p48, %p49
    %p51 = scmp.ne.s32.totalorder %s43, %s45
    %p52 = scmp.eq.s32.totalorder %s14, 1
    %p53 = por %p51, %p52
    %p54 = scmp.ne.s32.totalorder %s45, %s46
    %p55 = scmp.eq.s32.totalorder %s14, 0
    %p56 = por %p54, %p55
    %p57 = scmp.ne.s32.totalorder %s45, %s46
    %p58 = scmp.eq.s32.totalorder %s15, 1
    %p59 = por %p57, %p58
    %p61 = scmp.ne.s32.totalorder %s46, %s60
    %p62 = scmp.eq.s32.totalorder %s15, 0
    %p63 = por %p61, %p62
    %s65 = sadd.s32 %s64, 1
    %p68 = scmp.eq.s32.totalorder %s9, 1
    %p69 = scmp.ne.s32.totalorder %s64, %s66
    %p70 = scmp.eq.s32.totalorder %s9, 0
    %p71 = por %p69, %p70
    %p72 = scmp.ne.s32.totalorder %s64, %s66
    %p73 = scmp.eq.s32.totalorder %s14, 1
    %p74 = por %p72, %p73
    %p75 = scmp.ne.s32.totalorder %s66, %s67
    %p76 = scmp.eq.s32.totalorder %s14, 0
    %p77 = por %p75, %p76
    %p78 = scmp.ne.s32.totalorder %s66, %s67
    %p79 = scmp.eq.s32.totalorder %s15, 1
    %p80 = por %p78, %p79
    %p82 = scmp.ne.s32.totalorder %s67, %s81
    %p83 = scmp.eq.s32.totalorder %s15, 0
    %p84 = por %p82, %p83
    %s85 = ssub.s32 %s9, %s16
    %p86 = scmp.eq.s32.totalorder %s85, 0
    %s88 = sadd.s32 %s87, 1
    %s89 = scalar_select %p86, %s87, %s88
    %p92 = pneg %p86
    %p93 = scmp.eq.s32.totalorder %s9, 1
    %p94 = por %p92, %p93
    %p95 = scmp.ne.s32.totalorder %s87, %s90
    %p96 = scmp.eq.s32.totalorder %s9, 0
    %p97 = por %p95, %p96
    %p98 = scmp.ne.s32.totalorder %s87, %s90
    %p99 = scmp.eq.s32.totalorder %s14, 1
    %p100 = por %p98, %p99
    %p101 = scmp.ne.s32.totalorder %s90, %s91
    %p102 = scmp.eq.s32.totalorder %s14, 0
    %p103 = por %p101, %p102
    %p104 = scmp.ne.s32.totalorder %s90, %s91
    %p105 = scmp.eq.s32.totalorder %s15, 1
    %p106 = por %p104, %p105
    %p108 = scmp.ne.s32.totalorder %s91, %s107
    %p109 = scmp.eq.s32.totalorder %s15, 0
    %p110 = por %p108, %p109
    %p111 = scmp.le.s32.totalorder 1, %s9
    %p112 = scmp.lt.s32.totalorder %s9, 3
    %p113 = pnand %p111, %p112
    %p114 = pneg %p113
    // Predicated region
    $region9: #{cnn_cifar10_forward.4} parent=5 // pred_check
      _
    $region10: #{cnn_cifar10_forward.4} parent=5 // pred_check_branch
      %116 = sbr.rel (%p113) target = $region12
    $region11: #{cnn_cifar10_forward.4} parent=5 // pred_region
      %s117 = ssub.s32 %s9, 1
      // Predicated region
      $region13: #{cnn_cifar10_forward.4} parent=11 // pred_check
        %p118 = pneg %p56
      $region14: #{cnn_cifar10_forward.4} parent=11 // pred_check_branch
        %120 = sbr.rel (%p118) target = $region16
      $region15: #{cnn_cifar10_forward.4} parent=11 // pred_region
        _
      $region16: #{cnn_cifar10_forward.4} parent=11 // pred_fallthru
        _
      // Predicated region
      $region17: #{cnn_cifar10_forward.4} parent=11 // pred_check
        %p121 = pneg %p77
      $region18: #{cnn_cifar10_forward.4} parent=11 // pred_check_branch
        %123 = sbr.rel (%p121) target = $region20
      $region19: #{cnn_cifar10_forward.4} parent=11 // pred_region
        _
      $region20: #{cnn_cifar10_forward.4} parent=11 // pred_fallthru
        _
    $region12: #{cnn_cifar10_forward.4} parent=5 // pred_fallthru
      _
    %p124 = scmp.lt.s32.totalorder %s9, 2
    // Predicated region
    $region21: #{cnn_cifar10_forward.4} parent=5 // pred_check
      %p125 = pneg %p124
    $region22: #{cnn_cifar10_forward.4} parent=5 // pred_check_branch
      %127 = sbr.rel (%p125) target = $region24
    $region23: #{cnn_cifar10_forward.4} parent=5 // pred_region
      // Predicated region
      $region25: #{cnn_cifar10_forward.4} parent=23 // pred_check
        %p128 = pneg %p29
      $region26: #{cnn_cifar10_forward.4} parent=23 // pred_check_branch
        %130 = sbr.rel (%p128) target = $region28
      $region27: #{cnn_cifar10_forward.4} parent=23 // pred_region
        %p131 = scmp.lt.s32.totalorder %s9, 1
        %s132 = scalar_select %p131, %s9, 1
        %s133 = smul.addr %s132, 128
        %s134 = smul.addr %s133, 4
        %s135 = scalar_lea.vmem %s0, %s134
      $region28: #{cnn_cifar10_forward.4} parent=23 // pred_fallthru
        _
    $region24: #{cnn_cifar10_forward.4} parent=5 // pred_fallthru
      _
    %p136 = scmp.le.s32.totalorder 1, %s9
    %p137 = scmp.lt.s32.totalorder %s9, 3
    %p138 = pnand %p136, %p137
    %p139 = pneg %p138
    // Predicated region
    $region29: #{cnn_cifar10_forward.4} parent=5 // pred_check
      _
    $region30: #{cnn_cifar10_forward.4} parent=5 // pred_check_branch
      %141 = sbr.rel (%p138) target = $region32
    $region31: #{cnn_cifar10_forward.4} parent=5 // pred_region
      %s142 = ssub.s32 %s9, 1
      %p143 = scmp.lt.s32.totalorder %s14, 1
      %s144 = scalar_select %p143, %s14, 1
      %s145 = smul.addr %s144, 128
      %s146 = smul.addr %s145, 4
      %s147 = scalar_lea.vmem %s0, %s146
      %p148 = pneg %p35
      %p149 = pneg %p32
      %p150 = pneg %p56
      %p151 = pneg %p53
      %p152 = pneg %p77
      %p153 = pneg %p74
      %p154 = pneg %p103
      %p155 = pneg %p100
      %p156 = scmp.lt.s32.totalorder %s14, 1
      %s157 = scalar_select %p156, %s14, 1
      %s158 = smul.addr %s157, 32
      %s159 = smul.addr %s158, 8
      %s160 = scalar_lea.vmem %s3, %s159
      %p161 = scmp.lt.s32.totalorder %s14, 1
      %s162 = scalar_select %p161, %s14, 1
      %s163 = smul.addr %s162, 128
      %s164 = smul.addr %s163, 4
      %s165 = scalar_lea.vmem %s0, %s164
      %p166 = scmp.lt.s32.totalorder %s14, 1
      %s167 = scalar_select %p166, %s14, 1
      %s168 = smul.addr %s167, 32
      %s169 = smul.addr %s168, 8
      %s170 = scalar_lea.vmem %s3, %s169
      %v172 = vld [vmem:[%s2] sm:$0x1]
      %v173 = vld [vmem:[%s165] sm:$0xf]
      %v174 = vld [vmem:[%s165 + $0x4] sm:$0xf]
      %v175 = vld [vmem:[%s165 + $0x8] sm:$0xf]
      %v176 = vld [vmem:[%s165 + $0xc] sm:$0xf]
      %v177 = vld [vmem:[%s165 + $0x10] sm:$0xf]
      %v178 = vld [vmem:[%s165 + $0x14] sm:$0xf]
      %v179 = vld [vmem:[%s165 + $0x18] sm:$0xf]
      %v180 = vld [vmem:[%s165 + $0x1c] sm:$0xf]
      %v181 = vld [vmem:[%s165 + $0x20] sm:$0xf]
      %v182 = vld [vmem:[%s165 + $0x24] sm:$0xf]
      %v183 = vld [vmem:[%s165 + $0x28] sm:$0xf]
      %v184 = vld [vmem:[%s165 + $0x2c] sm:$0xf]
      %v185 = vld [vmem:[%s165 + $0x30] sm:$0xf]
      %v186 = vld [vmem:[%s165 + $0x34] sm:$0xf]
      %v187 = vld [vmem:[%s165 + $0x38] sm:$0xf]
      %v188 = vld [vmem:[%s165 + $0x3c] sm:$0xf]
      %v189 = vld [vmem:[%s165 + $0x40] sm:$0xf]
      %v190 = vld [vmem:[%s165 + $0x44] sm:$0xf]
      %v191 = vld [vmem:[%s165 + $0x48] sm:$0xf]
      %v192 = vld [vmem:[%s165 + $0x4c] sm:$0xf]
      %v193 = vld [vmem:[%s165 + $0x50] sm:$0xf]
      %v194 = vld [vmem:[%s165 + $0x54] sm:$0xf]
      %v195 = vld [vmem:[%s165 + $0x58] sm:$0xf]
      %v196 = vld [vmem:[%s165 + $0x5c] sm:$0xf]
      %v197 = vld [vmem:[%s165 + $0x60] sm:$0xf]
      %v198 = vld [vmem:[%s165 + $0x64] sm:$0xf]
      %v199 = vld [vmem:[%s165 + $0x68] sm:$0xf]
      %v200 = vld [vmem:[%s165 + $0x6c] sm:$0xf]
      %v201 = vld [vmem:[%s165 + $0x70] sm:$0xf]
      %v202 = vld [vmem:[%s165 + $0x74] sm:$0xf]
      %v203 = vld [vmem:[%s165 + $0x78] sm:$0xf]
      %v204 = vld [vmem:[%s165 + $0x7c] sm:$0xf]
      %v205 = vld [vmem:[%s165 + $0x80] sm:$0xf]
      %v206 = vld [vmem:[%s165 + $0x84] sm:$0xf]
      %v207 = vld [vmem:[%s165 + $0x88] sm:$0xf]
      %v208 = vld [vmem:[%s165 + $0x8c] sm:$0xf]
      %v209 = vld [vmem:[%s165 + $0x90] sm:$0xf]
      %v210 = vld [vmem:[%s165 + $0x94] sm:$0xf]
      %v211 = vld [vmem:[%s165 + $0x98] sm:$0xf]
      %v212 = vld [vmem:[%s165 + $0x9c] sm:$0xf]
      %v213 = vld [vmem:[%s165 + $0xa0] sm:$0xf]
      %v214 = vld [vmem:[%s165 + $0xa4] sm:$0xf]
      %v215 = vld [vmem:[%s165 + $0xa8] sm:$0xf]
      %v216 = vld [vmem:[%s165 + $0xac] sm:$0xf]
      %v217 = vld [vmem:[%s165 + $0xb0] sm:$0xf]
      %v218 = vld [vmem:[%s165 + $0xb4] sm:$0xf]
      %v219 = vld [vmem:[%s165 + $0xb8] sm:$0xf]
      %v220 = vld [vmem:[%s165 + $0xbc] sm:$0xf]
      %v221 = vld [vmem:[%s165 + $0xc0] sm:$0xf]
      %v222 = vld [vmem:[%s165 + $0xc4] sm:$0xf]
      %v223 = vld [vmem:[%s165 + $0xc8] sm:$0xf]
      %v224 = vld [vmem:[%s165 + $0xcc] sm:$0xf]
      %v225 = vld [vmem:[%s165 + $0xd0] sm:$0xf]
      %v226 = vld [vmem:[%s165 + $0xd4] sm:$0xf]
      %v227 = vld [vmem:[%s165 + $0xd8] sm:$0xf]
      %v228 = vld [vmem:[%s165 + $0xdc] sm:$0xf]
      %v229 = vld [vmem:[%s165 + $0xe0] sm:$0xf]
      %v230 = vld [vmem:[%s165 + $0xe4] sm:$0xf]
      %v231 = vld [vmem:[%s165 + $0xe8] sm:$0xf]
      %v232 = vld [vmem:[%s165 + $0xec] sm:$0xf]
      %v233 = vld [vmem:[%s165 + $0xf0] sm:$0xf]
      %v234 = vld [vmem:[%s165 + $0xf4] sm:$0xf]
      %v235 = vld [vmem:[%s165 + $0xf8] sm:$0xf]
      %v236 = vld [vmem:[%s165 + $0xfc] sm:$0xf]
      %v237 = vld [vmem:[%s1] sm:$0xf]
      %v238 = vld [vmem:[%s1 + $0x4] sm:$0xf]
      %v239 = vld [vmem:[%s1 + $0x8] sm:$0xf]
      %v240 = vld [vmem:[%s1 + $0xc] sm:$0xf]
      %v241 = vld [vmem:[%s1 + $0x10] sm:$0xf]
      %v242 = vld [vmem:[%s1 + $0x14] sm:$0xf]
      %v243 = vld [vmem:[%s1 + $0x18] sm:$0xf]
      %v244 = vld [vmem:[%s1 + $0x1c] sm:$0xf]
      %v245 = vld [vmem:[%s1 + $0x20] sm:$0xf]
      %v246 = vld [vmem:[%s1 + $0x24] sm:$0x3]
      %v311 = vunpack.c.l.b16 %v173
      %v312 = vunpack.c.l.b16 %v174
      %v313 = vunpack.c.l.b16 %v175
      %v314 = vunpack.c.l.b16 %v176
      %v315 = vunpack.c.l.b16 %v177
      %v316 = vunpack.c.l.b16 %v178
      %v317 = vunpack.c.l.b16 %v179
      %v318 = vunpack.c.l.b16 %v180
      %v319 = vunpack.c.l.b16 %v181
      %v320 = vunpack.c.l.b16 %v182
      %v321 = vunpack.c.l.b16 %v183
      %v322 = vunpack.c.l.b16 %v184
      %v323 = vunpack.c.l.b16 %v185
      %v324 = vunpack.c.l.b16 %v186
      %v325 = vunpack.c.l.b16 %v187
      %v326 = vunpack.c.l.b16 %v188
      %v327 = vunpack.c.l.b16 %v189
      %v328 = vunpack.c.l.b16 %v190
      %v329 = vunpack.c.l.b16 %v191
      %v330 = vunpack.c.l.b16 %v192
      %v331 = vunpack.c.l.b16 %v193
      %v332 = vunpack.c.l.b16 %v194
      %v333 = vunpack.c.l.b16 %v195
      %v334 = vunpack.c.l.b16 %v196
      %v335 = vunpack.c.l.b16 %v197
      %v336 = vunpack.c.l.b16 %v198
      %v337 = vunpack.c.l.b16 %v199
      %v338 = vunpack.c.l.b16 %v200
      %v339 = vunpack.c.l.b16 %v201
      %v340 = vunpack.c.l.b16 %v202
      %v341 = vunpack.c.l.b16 %v203
      %v342 = vunpack.c.l.b16 %v204
      %v343 = vunpack.c.l.b16 %v205
      %v344 = vunpack.c.l.b16 %v206
      %v345 = vunpack.c.l.b16 %v207
      %v346 = vunpack.c.l.b16 %v208
      %v347 = vunpack.c.l.b16 %v209
      %v348 = vunpack.c.l.b16 %v210
      %v349 = vunpack.c.l.b16 %v211
      %v350 = vunpack.c.l.b16 %v212
      %v351 = vunpack.c.l.b16 %v213
      %v352 = vunpack.c.l.b16 %v214
      %v353 = vunpack.c.l.b16 %v215
      %v354 = vunpack.c.l.b16 %v216
      %v355 = vunpack.c.l.b16 %v217
      %v356 = vunpack.c.l.b16 %v218
      %v357 = vunpack.c.l.b16 %v219
      %v358 = vunpack.c.l.b16 %v220
      %v359 = vunpack.c.l.b16 %v221
      %v360 = vunpack.c.l.b16 %v222
      %v361 = vunpack.c.l.b16 %v223
      %v362 = vunpack.c.l.b16 %v224
      %v363 = vunpack.c.l.b16 %v225
      %v364 = vunpack.c.l.b16 %v226
      %v365 = vunpack.c.l.b16 %v227
      %v366 = vunpack.c.l.b16 %v228
      %v367 = vunpack.c.l.b16 %v229
      %v368 = vunpack.c.l.b16 %v230
      %v369 = vunpack.c.l.b16 %v231
      %v370 = vunpack.c.l.b16 %v232
      %v371 = vunpack.c.l.b16 %v233
      %v372 = vunpack.c.l.b16 %v234
      %v373 = vunpack.c.l.b16 %v235
      %v374 = vunpack.c.l.b16 %v236
      %v375 = vpack.c.b16 %v312, %v311
      %v376 = vpack.c.b16 %v314, %v313
      %v377 = vpack.c.b16 %v316, %v315
      %v378 = vpack.c.b16 %v318, %v317
      %v379 = vpack.c.b16 %v320, %v319
      %v380 = vpack.c.b16 %v322, %v321
      %v381 = vpack.c.b16 %v324, %v323
      %v382 = vpack.c.b16 %v326, %v325
      %v383 = vpack.c.b16 %v328, %v327
      %v384 = vpack.c.b16 %v330, %v329
      %v385 = vpack.c.b16 %v332, %v331
      %v386 = vpack.c.b16 %v334, %v333
      %v387 = vpack.c.b16 %v336, %v335
      %v388 = vpack.c.b16 %v338, %v337
      %v389 = vpack.c.b16 %v340, %v339
      %v390 = vpack.c.b16 %v342, %v341
      %v391 = vpack.c.b16 %v344, %v343
      %v392 = vpack.c.b16 %v346, %v345
      %v393 = vpack.c.b16 %v348, %v347
      %v394 = vpack.c.b16 %v350, %v349
      %v395 = vpack.c.b16 %v352, %v351
      %v396 = vpack.c.b16 %v354, %v353
      %v397 = vpack.c.b16 %v356, %v355
      %v398 = vpack.c.b16 %v358, %v357
      %v399 = vpack.c.b16 %v360, %v359
      %v400 = vpack.c.b16 %v362, %v361
      %v401 = vpack.c.b16 %v364, %v363
      %v402 = vpack.c.b16 %v366, %v365
      %v403 = vpack.c.b16 %v368, %v367
      %v404 = vpack.c.b16 %v370, %v369
      %v405 = vpack.c.b16 %v372, %v371
      %v406 = vpack.c.b16 %v374, %v373
      %v417 = vunpack.c.l.b16 %v237
      %v418 = vunpack.c.l.b16 %v238
      %v419 = vunpack.c.l.b16 %v239
      %v420 = vunpack.c.l.b16 %v240
      %v421 = vunpack.c.l.b16 %v241
      %v422 = vunpack.c.l.b16 %v242
      %v423 = vunpack.c.l.b16 %v243
      %v424 = vunpack.c.l.b16 %v244
      %v425 = vunpack.c.l.b16 %v245
      %v426 = vunpack.c.l.b16 %v246
      %v427 = vpack.c.b16 %v418, %v417
      %v428 = vpack.c.b16 %v420, %v419
      %v429 = vpack.c.b16 %v422, %v421
      %v430 = vpack.c.b16 %v424, %v423
      %v431 = vpack.c.b16 %v426, %v425
      %vm436 = vcmask 613376
      %v438 = vsel %vm436, %v375, 0
      %v441 = vsel %vm436, %v376, 0
      %v444 = vsel %vm436, %v377, 0
      %v447 = vsel %vm436, %v378, 0
      %v450 = vsel %vm436, %v379, 0
      %v453 = vsel %vm436, %v380, 0
      %v456 = vsel %vm436, %v381, 0
      %v459 = vsel %vm436, %v382, 0
      %v462 = vsel %vm436, %v383, 0
      %v465 = vsel %vm436, %v384, 0
      %v468 = vsel %vm436, %v385, 0
      %v471 = vsel %vm436, %v386, 0
      %v474 = vsel %vm436, %v387, 0
      %v477 = vsel %vm436, %v388, 0
      %v480 = vsel %vm436, %v389, 0
      %v483 = vsel %vm436, %v390, 0
      %v486 = vsel %vm436, %v391, 0
      %v489 = vsel %vm436, %v392, 0
      %v492 = vsel %vm436, %v393, 0
      %v495 = vsel %vm436, %v394, 0
      %v498 = vsel %vm436, %v395, 0
      %v501 = vsel %vm436, %v396, 0
      %v504 = vsel %vm436, %v397, 0
      %v507 = vsel %vm436, %v398, 0
      %v510 = vsel %vm436, %v399, 0
      %v513 = vsel %vm436, %v400, 0
      %v516 = vsel %vm436, %v401, 0
      %v519 = vsel %vm436, %v402, 0
      %v522 = vsel %vm436, %v403, 0
      %v525 = vsel %vm436, %v404, 0
      %v528 = vsel %vm436, %v405, 0
      %v531 = vsel %vm436, %v406, 0
      %vm533 = vcmask 1044480
      %vm534 = vcmask 1045504
      %v535 = vsel %vm533, 4294967295, 65535
      %v536 = vsel %vm534, %v535, 0
      %v538 = vand.u32 %v431, %v536
      %540 = vmatprep.subr.bf16.mxu0 0
      %541 = vmatpush1.bf16.msra.mxu0 %v427
      %542 = vmatprep.subr.bf16.mxu0 0
      %543 = vmatpush1.bf16.msra.mxu0 %v428
      %544 = vmatprep.subr.bf16.mxu0 0
      %545 = vmatpush1.bf16.msra.mxu0 %v429
      %546 = vmatprep.subr.bf16.mxu0 0
      %547 = vmatpush1.bf16.msra.mxu0 %v430
      %548 = vmatprep.subr.bf16.mxu0 0
      %549 = vmatpush1.bf16.msra.mxu0 %v538
      %550 = vmatprep.subr.bf16.mxu0 0
      %551 = vmatpush1.bf16.msra.mxu0 0
      %552 = vmatprep.subr.bf16.mxu0 0
      %553 = vmatpush1.bf16.msra.mxu0 0
      %554 = vmatprep.subr.bf16.mxu0 0
      %555 = vmatpush1.bf16.msra.mxu0 0
      %556 = vmatprep.subr.bf16.mxu0 0
      %557 = vmatpush1.bf16.msra.mxu0 0
      %558 = vmatprep.subr.bf16.mxu0 0
      %559 = vmatpush1.bf16.msra.mxu0 0
      %560 = vmatprep.subr.bf16.mxu0 0
      %561 = vmatpush1.bf16.msra.mxu0 0
      %562 = vmatprep.subr.bf16.mxu0 0
      %563 = vmatpush1.bf16.msra.mxu0 0
      %564 = vmatprep.subr.bf16.mxu0 0
      %565 = vmatpush1.bf16.msra.mxu0 0
      %566 = vmatprep.subr.bf16.mxu0 0
      %567 = vmatpush1.bf16.msra.mxu0 0
      %568 = vmatprep.subr.bf16.mxu0 0
      %569 = vmatpush1.bf16.msra.mxu0 0
      %570 = vmatprep.subr.bf16.mxu0 0
      %571 = vmatpush1.bf16.msra.mxu0 0
      %572 = vmatprep.mubr.bf16.mxu0 0
      %573 = vmatmul.mubr.bf16.gmra.mrb[0].mxu0 %v438
      %v574 = vpop.f32.mrb[0].mxu0
      %v575 = vadd.f32 0.0, %v574
      %v576 = vpop.f32.mrb[0].mxu0
      %v577 = vpop.f32.mrb[0].mxu0
      %v578 = vadd.f32 0.0, %v577
      %v579 = vpop.f32.mrb[0].mxu0
      %580 = vmatprep.mubr.bf16.mxu0 0
      %581 = vmatmul.mubr.bf16.gmra.mrb[0].mxu0 %v441
      %v582 = vpop.f32.mrb[0].mxu0
      %v583 = vadd.f32 0.0, %v582
      %v584 = vpop.f32.mrb[0].mxu0
      %v585 = vpop.f32.mrb[0].mxu0
      %v586 = vadd.f32 0.0, %v585
      %v587 = vpop.f32.mrb[0].mxu0
      %588 = vmatprep.mubr.bf16.mxu0 0
      %589 = vmatmul.mubr.bf16.gmra.mrb[0].mxu0 %v444
      %v590 = vpop.f32.mrb[0].mxu0
      %v591 = vadd.f32 0.0, %v590
      %v592 = vpop.f32.mrb[0].mxu0
      %v593 = vpop.f32.mrb[0].mxu0
      %v594 = vadd.f32 0.0, %v593
      %v595 = vpop.f32.mrb[0].mxu0
      %596 = vmatprep.mubr.bf16.mxu0 0
      %597 = vmatmul.mubr.bf16.gmra.mrb[0].mxu0 %v447
      %v598 = vpop.f32.mrb[0].mxu0
      %v599 = vadd.f32 0.0, %v598
      %v600 = vpop.f32.mrb[0].mxu0
      %v601 = vpop.f32.mrb[0].mxu0
      %v602 = vadd.f32 0.0, %v601
      %v603 = vpop.f32.mrb[0].mxu0
      %604 = vmatprep.mubr.bf16.mxu0 0
      %605 = vmatmul.mubr.bf16.gmra.mrb[0].mxu0 %v450
      %v606 = vpop.f32.mrb[0].mxu0
      %v607 = vadd.f32 0.0, %v606
      %v608 = vpop.f32.mrb[0].mxu0
      %v609 = vpop.f32.mrb[0].mxu0
      %v610 = vadd.f32 0.0, %v609
      %v611 = vpop.f32.mrb[0].mxu0
      %612 = vmatprep.mubr.bf16.mxu0 0
      %613 = vmatmul.mubr.bf16.gmra.mrb[0].mxu0 %v453
      %v614 = vpop.f32.mrb[0].mxu0
      %v615 = vadd.f32 0.0, %v614
      %v616 = vpop.f32.mrb[0].mxu0
      %v617 = vpop.f32.mrb[0].mxu0
      %v618 = vadd.f32 0.0, %v617
      %v619 = vpop.f32.mrb[0].mxu0
      %620 = vmatprep.mubr.bf16.mxu0 0
      %621 = vmatmul.mubr.bf16.gmra.mrb[0].mxu0 %v456
      %v622 = vpop.f32.mrb[0].mxu0
      %v623 = vadd.f32 0.0, %v622
      %v624 = vpop.f32.mrb[0].mxu0
      %v625 = vpop.f32.mrb[0].mxu0
      %v626 = vadd.f32 0.0, %v625
      %v627 = vpop.f32.mrb[0].mxu0
      %628 = vmatprep.mubr.bf16.mxu0 0
      %629 = vmatmul.mubr.bf16.gmra.mrb[0].mxu0 %v459
      %v630 = vpop.f32.mrb[0].mxu0
      %v631 = vadd.f32 0.0, %v630
      %v632 = vpop.f32.mrb[0].mxu0
      %v633 = vpop.f32.mrb[0].mxu0
      %v634 = vadd.f32 0.0, %v633
      %v635 = vpop.f32.mrb[0].mxu0
      %636 = vmatprep.mubr.bf16.mxu0 0
      %637 = vmatmul.mubr.bf16.gmra.mrb[0].mxu0 %v462
      %v638 = vpop.f32.mrb[0].mxu0
      %v639 = vadd.f32 0.0, %v638
      %v640 = vpop.f32.mrb[0].mxu0
      %v641 = vpop.f32.mrb[0].mxu0
      %v642 = vadd.f32 0.0, %v641
      %v643 = vpop.f32.mrb[0].mxu0
      %644 = vmatprep.mubr.bf16.mxu0 0
      %645 = vmatmul.mubr.bf16.gmra.mrb[0].mxu0 %v465
      %v646 = vpop.f32.mrb[0].mxu0
      %v647 = vadd.f32 0.0, %v646
      %v648 = vpop.f32.mrb[0].mxu0
      %v649 = vpop.f32.mrb[0].mxu0
      %v650 = vadd.f32 0.0, %v649
      %v651 = vpop.f32.mrb[0].mxu0
      %652 = vmatprep.mubr.bf16.mxu0 0
      %653 = vmatmul.mubr.bf16.gmra.mrb[0].mxu0 %v468
      %v654 = vpop.f32.mrb[0].mxu0
      %v655 = vadd.f32 0.0, %v654
      %v656 = vpop.f32.mrb[0].mxu0
      %v657 = vpop.f32.mrb[0].mxu0
      %v658 = vadd.f32 0.0, %v657
      %v659 = vpop.f32.mrb[0].mxu0
      %660 = vmatprep.mubr.bf16.mxu0 0
      %661 = vmatmul.mubr.bf16.gmra.mrb[0].mxu0 %v471
      %v662 = vpop.f32.mrb[0].mxu0
      %v663 = vadd.f32 0.0, %v662
      %v664 = vpop.f32.mrb[0].mxu0
      %v665 = vpop.f32.mrb[0].mxu0
      %v666 = vadd.f32 0.0, %v665
      %v667 = vpop.f32.mrb[0].mxu0
      %668 = vmatprep.mubr.bf16.mxu0 0
      %669 = vmatmul.mubr.bf16.gmra.mrb[0].mxu0 %v474
      %v670 = vpop.f32.mrb[0].mxu0
      %v671 = vadd.f32 0.0, %v670
      %v672 = vpop.f32.mrb[0].mxu0
      %v673 = vpop.f32.mrb[0].mxu0
      %v674 = vadd.f32 0.0, %v673
      %v675 = vpop.f32.mrb[0].mxu0
      %676 = vmatprep.mubr.bf16.mxu0 0
      %677 = vmatmul.mubr.bf16.gmra.mrb[0].mxu0 %v477
      %v678 = vpop.f32.mrb[0].mxu0
      %v679 = vadd.f32 0.0, %v678
      %v680 = vpop.f32.mrb[0].mxu0
      %v681 = vpop.f32.mrb[0].mxu0
      %v682 = vadd.f32 0.0, %v681
      %v683 = vpop.f32.mrb[0].mxu0
      %684 = vmatprep.mubr.bf16.mxu0 0
      %685 = vmatmul.mubr.bf16.gmra.mrb[0].mxu0 %v480
      %v686 = vpop.f32.mrb[0].mxu0
      %v687 = vadd.f32 0.0, %v686
      %v688 = vpop.f32.mrb[0].mxu0
      %v689 = vpop.f32.mrb[0].mxu0
      %v690 = vadd.f32 0.0, %v689
      %v691 = vpop.f32.mrb[0].mxu0
      %692 = vmatprep.mubr.bf16.mxu0 0
      %693 = vmatmul.mubr.bf16.gmra.mrb[0].mxu0 %v483
      %v694 = vpop.f32.mrb[0].mxu0
      %v695 = vadd.f32 0.0, %v694
      %v696 = vpop.f32.mrb[0].mxu0
      %v697 = vpop.f32.mrb[0].mxu0
      %v698 = vadd.f32 0.0, %v697
      %v699 = vpop.f32.mrb[0].mxu0
      %700 = vmatprep.mubr.bf16.mxu0 0
      %701 = vmatmul.mubr.bf16.gmra.mrb[0].mxu0 %v486
      %v702 = vpop.f32.mrb[0].mxu0
      %v703 = vadd.f32 0.0, %v702
      %v704 = vpop.f32.mrb[0].mxu0
      %v705 = vpop.f32.mrb[0].mxu0
      %v706 = vadd.f32 0.0, %v705
      %v707 = vpop.f32.mrb[0].mxu0
      %708 = vmatprep.mubr.bf16.mxu0 0
      %709 = vmatmul.mubr.bf16.gmra.mrb[0].mxu0 %v489
      %v710 = vpop.f32.mrb[0].mxu0
      %v711 = vadd.f32 0.0, %v710
      %v712 = vpop.f32.mrb[0].mxu0
      %v713 = vpop.f32.mrb[0].mxu0
      %v714 = vadd.f32 0.0, %v713
      %v715 = vpop.f32.mrb[0].mxu0
      %716 = vmatprep.mubr.bf16.mxu0 0
      %717 = vmatmul.mubr.bf16.gmra.mrb[0].mxu0 %v492
      %v718 = vpop.f32.mrb[0].mxu0
      %v719 = vadd.f32 0.0, %v718
      %v720 = vpop.f32.mrb[0].mxu0
      %v721 = vpop.f32.mrb[0].mxu0
      %v722 = vadd.f32 0.0, %v721
      %v723 = vpop.f32.mrb[0].mxu0
      %724 = vmatprep.mubr.bf16.mxu0 0
      %725 = vmatmul.mubr.bf16.gmra.mrb[0].mxu0 %v495
      %v726 = vpop.f32.mrb[0].mxu0
      %v727 = vadd.f32 0.0, %v726
      %v728 = vpop.f32.mrb[0].mxu0
      %v729 = vpop.f32.mrb[0].mxu0
      %v730 = vadd.f32 0.0, %v729
      %v731 = vpop.f32.mrb[0].mxu0
      %732 = vmatprep.mubr.bf16.mxu0 0
      %733 = vmatmul.mubr.bf16.gmra.mrb[0].mxu0 %v498
      %v734 = vpop.f32.mrb[0].mxu0
      %v735 = vadd.f32 0.0, %v734
      %v736 = vpop.f32.mrb[0].mxu0
      %v737 = vpop.f32.mrb[0].mxu0
      %v738 = vadd.f32 0.0, %v737
      %v739 = vpop.f32.mrb[0].mxu0
      %740 = vmatprep.mubr.bf16.mxu0 0
      %741 = vmatmul.mubr.bf16.gmra.mrb[0].mxu0 %v501
      %v742 = vpop.f32.mrb[0].mxu0
      %v743 = vadd.f32 0.0, %v742
      %v744 = vpop.f32.mrb[0].mxu0
      %v745 = vpop.f32.mrb[0].mxu0
      %v746 = vadd.f32 0.0, %v745
      %v747 = vpop.f32.mrb[0].mxu0
      %748 = vmatprep.mubr.bf16.mxu0 0
      %749 = vmatmul.mubr.bf16.gmra.mrb[0].mxu0 %v504
      %v750 = vpop.f32.mrb[0].mxu0
      %v751 = vadd.f32 0.0, %v750
      %v752 = vpop.f32.mrb[0].mxu0
      %v753 = vpop.f32.mrb[0].mxu0
      %v754 = vadd.f32 0.0, %v753
      %v755 = vpop.f32.mrb[0].mxu0
      %756 = vmatprep.mubr.bf16.mxu0 0
      %757 = vmatmul.mubr.bf16.gmra.mrb[0].mxu0 %v507
      %v758 = vpop.f32.mrb[0].mxu0
      %v759 = vadd.f32 0.0, %v758
      %v760 = vpop.f32.mrb[0].mxu0
      %v761 = vpop.f32.mrb[0].mxu0
      %v762 = vadd.f32 0.0, %v761
      %v763 = vpop.f32.mrb[0].mxu0
      %764 = vmatprep.mubr.bf16.mxu0 0
      %765 = vmatmul.mubr.bf16.gmra.mrb[0].mxu0 %v510
      %v766 = vpop.f32.mrb[0].mxu0
      %v767 = vadd.f32 0.0, %v766
      %v768 = vpop.f32.mrb[0].mxu0
      %v769 = vpop.f32.mrb[0].mxu0
      %v770 = vadd.f32 0.0, %v769
      %v771 = vpop.f32.mrb[0].mxu0
      %772 = vmatprep.mubr.bf16.mxu0 0
      %773 = vmatmul.mubr.bf16.gmra.mrb[0].mxu0 %v513
      %v774 = vpop.f32.mrb[0].mxu0
      %v775 = vadd.f32 0.0, %v774
      %v776 = vpop.f32.mrb[0].mxu0
      %v777 = vpop.f32.mrb[0].mxu0
      %v778 = vadd.f32 0.0, %v777
      %v779 = vpop.f32.mrb[0].mxu0
      %780 = vmatprep.mubr.bf16.mxu0 0
      %781 = vmatmul.mubr.bf16.gmra.mrb[0].mxu0 %v516
      %v782 = vpop.f32.mrb[0].mxu0
      %v783 = vadd.f32 0.0, %v782
      %v784 = vpop.f32.mrb[0].mxu0
      %v785 = vpop.f32.mrb[0].mxu0
      %v786 = vadd.f32 0.0, %v785
      %v787 = vpop.f32.mrb[0].mxu0
      %788 = vmatprep.mubr.bf16.mxu0 0
      %789 = vmatmul.mubr.bf16.gmra.mrb[0].mxu0 %v519
      %v790 = vpop.f32.mrb[0].mxu0
      %v791 = vadd.f32 0.0, %v790
      %v792 = vpop.f32.mrb[0].mxu0
      %v793 = vpop.f32.mrb[0].mxu0
      %v794 = vadd.f32 0.0, %v793
      %v795 = vpop.f32.mrb[0].mxu0
      %796 = vmatprep.mubr.bf16.mxu0 0
      %797 = vmatmul.mubr.bf16.gmra.mrb[0].mxu0 %v522
      %v798 = vpop.f32.mrb[0].mxu0
      %v799 = vadd.f32 0.0, %v798
      %v800 = vpop.f32.mrb[0].mxu0
      %v801 = vpop.f32.mrb[0].mxu0
      %v802 = vadd.f32 0.0, %v801
      %v803 = vpop.f32.mrb[0].mxu0
      %804 = vmatprep.mubr.bf16.mxu0 0
      %805 = vmatmul.mubr.bf16.gmra.mrb[0].mxu0 %v525
      %v806 = vpop.f32.mrb[0].mxu0
      %v807 = vadd.f32 0.0, %v806
      %v808 = vpop.f32.mrb[0].mxu0
      %v809 = vpop.f32.mrb[0].mxu0
      %v810 = vadd.f32 0.0, %v809
      %v811 = vpop.f32.mrb[0].mxu0
      %812 = vmatprep.mubr.bf16.mxu0 0
      %813 = vmatmul.mubr.bf16.gmra.mrb[0].mxu0 %v528
      %v814 = vpop.f32.mrb[0].mxu0
      %v815 = vadd.f32 0.0, %v814
      %v816 = vpop.f32.mrb[0].mxu0
      %v817 = vpop.f32.mrb[0].mxu0
      %v818 = vadd.f32 0.0, %v817
      %v819 = vpop.f32.mrb[0].mxu0
      %820 = vmatprep.mubr.bf16.mxu0 0
      %821 = vmatmul.mubr.bf16.gmra.mrb[0].mxu0 %v531
      %v822 = vpop.f32.mrb[0].mxu0
      %v823 = vadd.f32 0.0, %v822
      %v824 = vpop.f32.mrb[0].mxu0
      %v825 = vpop.f32.mrb[0].mxu0
      %v826 = vadd.f32 0.0, %v825
      %v827 = vpop.f32.mrb[0].mxu0
      %828 = vdwg.mxu0
      %v829 = vmax.f32 %v575, %v639
      %v830 = vmax.f32 %v578, %v642
      %v831 = vmax.f32 %v583, %v647
      %v832 = vmax.f32 %v586, %v650
      %v833 = vmax.f32 %v591, %v655
      %v834 = vmax.f32 %v594, %v658
      %v835 = vmax.f32 %v599, %v663
      %v836 = vmax.f32 %v602, %v666
      %v837 = vmax.f32 %v607, %v671
      %v838 = vmax.f32 %v610, %v674
      %v839 = vmax.f32 %v615, %v679
      %v840 = vmax.f32 %v618, %v682
      %v841 = vmax.f32 %v623, %v687
      %v842 = vmax.f32 %v626, %v690
      %v843 = vmax.f32 %v631, %v695
      %v844 = vmax.f32 %v634, %v698
      %v845 = vmax.f32 %v703, %v767
      %v846 = vmax.f32 %v706, %v770
      %v847 = vmax.f32 %v711, %v775
      %v848 = vmax.f32 %v714, %v778
      %v849 = vmax.f32 %v719, %v783
      %v850 = vmax.f32 %v722, %v786
      %v851 = vmax.f32 %v727, %v791
      %v852 = vmax.f32 %v730, %v794
      %v853 = vmax.f32 %v735, %v799
      %v854 = vmax.f32 %v738, %v802
      %v855 = vmax.f32 %v743, %v807
      %v856 = vmax.f32 %v746, %v810
      %v857 = vmax.f32 %v751, %v815
      %v858 = vmax.f32 %v754, %v818
      %v859 = vmax.f32 %v759, %v823
      %v860 = vmax.f32 %v762, %v826
      %v861 = vmax.f32 %v829, %v845
      %v862 = vmax.f32 %v830, %v846
      %v863 = vmax.f32 %v831, %v847
      %v864 = vmax.f32 %v832, %v848
      %v865 = vmax.f32 %v833, %v849
      %v866 = vmax.f32 %v834, %v850
      %v867 = vmax.f32 %v835, %v851
      %v868 = vmax.f32 %v836, %v852
      %v869 = vmax.f32 %v837, %v853
      %v870 = vmax.f32 %v838, %v854
      %v871 = vmax.f32 %v839, %v855
      %v872 = vmax.f32 %v840, %v856
      %v873 = vmax.f32 %v841, %v857
      %v874 = vmax.f32 %v842, %v858
      %v875 = vmax.f32 %v843, %v859
      %v876 = vmax.f32 %v844, %v860
      %v878 = vlaneseq
      %v879 = vshrl.u32 %v878, 7
      %v880 = vsub.s32 0, %v879
      %v881 = vrot.slane %v172, %v880
      %v883 = vadd.f32 %v861, %v881
      %v884 = vadd.f32 %v862, %v881
      %v885 = vadd.f32 %v863, %v881
      %v886 = vadd.f32 %v864, %v881
      %v887 = vadd.f32 %v865, %v881
      %v888 = vadd.f32 %v866, %v881
      %v889 = vadd.f32 %v867, %v881
      %v890 = vadd.f32 %v868, %v881
      %v891 = vadd.f32 %v869, %v881
      %v892 = vadd.f32 %v870, %v881
      %v893 = vadd.f32 %v871, %v881
      %v894 = vadd.f32 %v872, %v881
      %v895 = vadd.f32 %v873, %v881
      %v896 = vadd.f32 %v874, %v881
      %v897 = vadd.f32 %v875, %v881
      %v898 = vadd.f32 %v876, %v881
      %vm899 = vcmask 261120
      %900 = vst.msk [vmem:[%s170] sm:$0xff] %vm899, %v883
      %901 = vst.msk [vmem:[%s170 + $0x8] sm:$0xff] %vm899, %v884
      %902 = vst.msk [vmem:[%s170 + $0x10] sm:$0xff] %vm899, %v885
      %903 = vst.msk [vmem:[%s170 + $0x18] sm:$0xff] %vm899, %v886
      %904 = vst.msk [vmem:[%s170 + $0x20] sm:$0xff] %vm899, %v887
      %905 = vst.msk [vmem:[%s170 + $0x28] sm:$0xff] %vm899, %v888
      %906 = vst.msk [vmem:[%s170 + $0x30] sm:$0xff] %vm899, %v889
      %907 = vst.msk [vmem:[%s170 + $0x38] sm:$0xff] %vm899, %v890
      %908 = vst.msk [vmem:[%s170 + $0x40] sm:$0xff] %vm899, %v891
      %909 = vst.msk [vmem:[%s170 + $0x48] sm:$0xff] %vm899, %v892
      %910 = vst.msk [vmem:[%s170 + $0x50] sm:$0xff] %vm899, %v893
      %911 = vst.msk [vmem:[%s170 + $0x58] sm:$0xff] %vm899, %v894
      %912 = vst.msk [vmem:[%s170 + $0x60] sm:$0xff] %vm899, %v895
      %913 = vst.msk [vmem:[%s170 + $0x68] sm:$0xff] %vm899, %v896
      %914 = vst.msk [vmem:[%s170 + $0x70] sm:$0xff] %vm899, %v897
      %915 = vst.msk [vmem:[%s170 + $0x78] sm:$0xff] %vm899, %v898
      %v916 = vld [vmem:[%s165 + $0x100] sm:$0xf]
      %v917 = vld [vmem:[%s165 + $0x104] sm:$0xf]
      %v918 = vld [vmem:[%s165 + $0x108] sm:$0xf]
      %v919 = vld [vmem:[%s165 + $0x10c] sm:$0xf]
      %v920 = vld [vmem:[%s165 + $0x110] sm:$0xf]
      %v921 = vld [vmem:[%s165 + $0x114] sm:$0xf]
      %v922 = vld [vmem:[%s165 + $0x118] sm:$0xf]
      %v923 = vld [vmem:[%s165 + $0x11c] sm:$0xf]
      %v924 = vld [vmem:[%s165 + $0x120] sm:$0xf]
      %v925 = vld [vmem:[%s165 + $0x124] sm:$0xf]
      %v926 = vld [vmem:[%s165 + $0x128] sm:$0xf]
      %v927 = vld [vmem:[%s165 + $0x12c] sm:$0xf]
      %v928 = vld [vmem:[%s165 + $0x130] sm:$0xf]
      %v929 = vld [vmem:[%s165 + $0x134] sm:$0xf]
      %v930 = vld [vmem:[%s165 + $0x138] sm:$0xf]
      %v931 = vld [vmem:[%s165 + $0x13c] sm:$0xf]
      %v932 = vld [vmem:[%s165 + $0x140] sm:$0xf]
      %v933 = vld [vmem:[%s165 + $0x144] sm:$0xf]
      %v934 = vld [vmem:[%s165 + $0x148] sm:$0xf]
      %v935 = vld [vmem:[%s165 + $0x14c] sm:$0xf]
      %v936 = vld [vmem:[%s165 + $0x150] sm:$0xf]
      %v937 = vld [vmem:[%s165 + $0x154] sm:$0xf]
      %v938 = vld [vmem:[%s165 + $0x158] sm:$0xf]
      %v939 = vld [vmem:[%s165 + $0x15c] sm:$0xf]
      %v940 = vld [vmem:[%s165 + $0x160] sm:$0xf]
      %v941 = vld [vmem:[%s165 + $0x164] sm:$0xf]
      %v942 = vld [vmem:[%s165 + $0x168] sm:$0xf]
      %v943 = vld [vmem:[%s165 + $0x16c] sm:$0xf]
      %v944 = vld [vmem:[%s165 + $0x170] sm:$0xf]
      %v945 = vld [vmem:[%s165 + $0x174] sm:$0xf]
      %v946 = vld [vmem:[%s165 + $0x178] sm:$0xf]
      %v947 = vld [vmem:[%s165 + $0x17c] sm:$0xf]
      %v948 = vld [vmem:[%s165 + $0x180] sm:$0xf]
      %v949 = vld [vmem:[%s165 + $0x184] sm:$0xf]
      %v950 = vld [vmem:[%s165 + $0x188] sm:$0xf]
      %v951 = vld [vmem:[%s165 + $0x18c] sm:$0xf]
      %v952 = vld [vmem:[%s165 + $0x190] sm:$0xf]
      %v953 = vld [vmem:[%s165 + $0x194] sm:$0xf]
      %v954 = vld [vmem:[%s165 + $0x198] sm:$0xf]
      %v955 = vld [vmem:[%s165 + $0x19c] sm:$0xf]
      %v956 = vld [vmem:[%s165 + $0x1a0] sm:$0xf]
      %v957 = vld [vmem:[%s165 + $0x1a4] sm:$0xf]
      %v958 = vld [vmem:[%s165 + $0x1a8] sm:$0xf]
      %v959 = vld [vmem:[%s165 + $0x1ac] sm:$0xf]
      %v960 = vld [vmem:[%s165 + $0x1b0] sm:$0xf]
      %v961 = vld [vmem:[%s165 + $0x1b4] sm:$0xf]
      %v962 = vld [vmem:[%s165 + $0x1b8] sm:$0xf]
      %v963 = vld [vmem:[%s165 + $0x1bc] sm:$0xf]
      %v964 = vld [vmem:[%s165 + $0x1c0] sm:$0xf]
      %v965 = vld [vmem:[%s165 + $0x1c4] sm:$0xf]
      %v966 = vld [vmem:[%s165 + $0x1c8] sm:$0xf]
      %v967 = vld [vmem:[%s165 + $0x1cc] sm:$0xf]
      %v968 = vld [vmem:[%s165 + $0x1d0] sm:$0xf]
      %v969 = vld [vmem:[%s165 + $0x1d4] sm:$0xf]
      %v970 = vld [vmem:[%s165 + $0x1d8] sm:$0xf]
      %v971 = vld [vmem:[%s165 + $0x1dc] sm:$0xf]
      %v972 = vld [vmem:[%s165 + $0x1e0] sm:$0xf]
      %v973 = vld [vmem:[%s165 + $0x1e4] sm:$0xf]
      %v974 = vld [vmem:[%s165 + $0x1e8] sm:$0xf]
      %v975 = vld [vmem:[%s165 + $0x1ec] sm:$0xf]
      %v976 = vld [vmem:[%s165 + $0x1f0] sm:$0xf]
      %v977 = vld [vmem:[%s165 + $0x1f4] sm:$0xf]
      %v978 = vld [vmem:[%s165 + $0x1f8] sm:$0xf]
      %v979 = vld [vmem:[%s165 + $0x1fc] sm:$0xf]
      %v980 = vld [vmem:[%s1] sm:$0xf]
      %v981 = vld [vmem:[%s1 + $0x4] sm:$0xf]
      %v982 = vld [vmem:[%s1 + $0x8] sm:$0xf]
      %v983 = vld [vmem:[%s1 + $0xc] sm:$0xf]
      %v984 = vld [vmem:[%s1 + $0x10] sm:$0xf]
      %v985 = vld [vmem:[%s1 + $0x14] sm:$0xf]
      %v986 = vld [vmem:[%s1 + $0x18] sm:$0xf]
      %v987 = vld [vmem:[%s1 + $0x1c] sm:$0xf]
      %v988 = vld [vmem:[%s1 + $0x20] sm:$0xf]
      %v989 = vld [vmem:[%s1 + $0x24] sm:$0x3]
      %v1054 = vunpack.c.l.b16 %v916
      %v1055 = vunpack.c.l.b16 %v917
      %v1056 = vunpack.c.l.b16 %v918
      %v1057 = vunpack.c.l.b16 %v919
      %v1058 = vunpack.c.l.b16 %v920
      %v1059 = vunpack.c.l.b16 %v921
      %v1060 = vunpack.c.l.b16 %v922
      %v1061 = vunpack.c.l.b16 %v923
      %v1062 = vunpack.c.l.b16 %v924
      %v1063 = vunpack.c.l.b16 %v925
      %v1064 = vunpack.c.l.b16 %v926
      %v1065 = vunpack.c.l.b16 %v927
      %v1066 = vunpack.c.l.b16 %v928
      %v1067 = vunpack.c.l.b16 %v929
      %v1068 = vunpack.c.l.b16 %v930
      %v1069 = vunpack.c.l.b16 %v931
      %v1070 = vunpack.c.l.b16 %v932
      %v1071 = vunpack.c.l.b16 %v933
      %v1072 = vunpack.c.l.b16 %v934
      %v1073 = vunpack.c.l.b16 %v935
      %v1074 = vunpack.c.l.b16 %v936
      %v1075 = vunpack.c.l.b16 %v937
      %v1076 = vunpack.c.l.b16 %v938
      %v1077 = vunpack.c.l.b16 %v939
      %v1078 = vunpack.c.l.b16 %v940
      %v1079 = vunpack.c.l.b16 %v941
      %v1080 = vunpack.c.l.b16 %v942
      %v1081 = vunpack.c.l.b16 %v943
      %v1082 = vunpack.c.l.b16 %v944
      %v1083 = vunpack.c.l.b16 %v945
      %v1084 = vunpack.c.l.b16 %v946
      %v1085 = vunpack.c.l.b16 %v947
      %v1086 = vunpack.c.l.b16 %v948
      %v1087 = vunpack.c.l.b16 %v949
      %v1088 = vunpack.c.l.b16 %v950
      %v1089 = vunpack.c.l.b16 %v951
      %v1090 = vunpack.c.l.b16 %v952
      %v1091 = vunpack.c.l.b16 %v953
      %v1092 = vunpack.c.l.b16 %v954
      %v1093 = vunpack.c.l.b16 %v955
      %v1094 = vunpack.c.l.b16 %v956
      %v1095 = vunpack.c.l.b16 %v957
      %v1096 = vunpack.c.l.b16 %v958
      %v1097 = vunpack.c.l.b16 %v959
      %v1098 = vunpack.c.l.b16 %v960
      %v1099 = vunpack.c.l.b16 %v961
      %v1100 = vunpack.c.l.b16 %v962
      %v1101 = vunpack.c.l.b16 %v963
      %v1102 = vunpack.c.l.b16 %v964
      %v1103 = vunpack.c.l.b16 %v965
      %v1104 = vunpack.c.l.b16 %v966
      %v1105 = vunpack.c.l.b16 %v967
      %v1106 = vunpack.c.l.b16 %v968
      %v1107 = vunpack.c.l.b16 %v969
      %v1108 = vunpack.c.l.b16 %v970
      %v1109 = vunpack.c.l.b16 %v971
      %v1110 = vunpack.c.l.b16 %v972
      %v1111 = vunpack.c.l.b16 %v973
      %v1112 = vunpack.c.l.b16 %v974
      %v1113 = vunpack.c.l.b16 %v975
      %v1114 = vunpack.c.l.b16 %v976
      %v1115 = vunpack.c.l.b16 %v977
      %v1116 = vunpack.c.l.b16 %v978
      %v1117 = vunpack.c.l.b16 %v979
      %v1118 = vpack.c.b16 %v1055, %v1054
      %v1119 = vpack.c.b16 %v1057, %v1056
      %v1120 = vpack.c.b16 %v1059, %v1058
      %v1121 = vpack.c.b16 %v1061, %v1060
      %v1122 = vpack.c.b16 %v1063, %v1062
      %v1123 = vpack.c.b16 %v1065, %v1064
      %v1124 = vpack.c.b16 %v1067, %v1066
      %v1125 = vpack.c.b16 %v1069, %v1068
      %v1126 = vpack.c.b16 %v1071, %v1070
      %v1127 = vpack.c.b16 %v1073, %v1072
      %v1128 = vpack.c.b16 %v1075, %v1074
      %v1129 = vpack.c.b16 %v1077, %v1076
      %v1130 = vpack.c.b16 %v1079, %v1078
      %v1131 = vpack.c.b16 %v1081, %v1080
      %v1132 = vpack.c.b16 %v1083, %v1082
      %v1133 = vpack.c.b16 %v1085, %v1084
      %v1134 = vpack.c.b16 %v1087, %v1086
      %v1135 = vpack.c.b16 %v1089, %v1088
      %v1136 = vpack.c.b16 %v1091, %v1090
      %v1137 = vpack.c.b16 %v1093, %v1092
      %v1138 = vpack.c.b16 %v1095, %v1094
      %v1139 = vpack.c.b16 %v1097, %v1096
      %v1140 = vpack.c.b16 %v1099, %v1098
      %v1141 = vpack.c.b16 %v1101, %v1100
      %v1142 = vpack.c.b16 %v1103, %v1102
      %v1143 = vpack.c.b16 %v1105, %v1104
      %v1144 = vpack.c.b16 %v1107, %v1106
      %v1145 = vpack.c.b16 %v1109, %v1108
      %v1146 = vpack.c.b16 %v1111, %v1110
      %v1147 = vpack.c.b16 %v1113, %v1112
      %v1148 = vpack.c.b16 %v1115, %v1114
      %v1149 = vpack.c.b16 %v1117, %v1116
      %v1160 = vunpack.c.l.b16 %v980
      %v1161 = vunpack.c.l.b16 %v981
      %v1162 = vunpack.c.l.b16 %v982
      %v1163 = vunpack.c.l.b16 %v983
      %v1164 = vunpack.c.l.b16 %v984
      %v1165 = vunpack.c.l.b16 %v985
      %v1166 = vunpack.c.l.b16 %v986
      %v1167 = vunpack.c.l.b16 %v987
      %v1168 = vunpack.c.l.b16 %v988
      %v1169 = vunpack.c.l.b16 %v989
      %v1170 = vpack.c.b16 %v1161, %v1160
      %v1171 = vpack.c.b16 %v1163, %v1162
      %v1172 = vpack.c.b16 %v1165, %v1164
      %v1173 = vpack.c.b16 %v1167, %v1166
      %v1174 = vpack.c.b16 %v1169, %v1168
      %v1180 = vsel %vm436, %v1118, 0
      %v1183 = vsel %vm436, %v1119, 0
      %v1186 = vsel %vm436, %v1120, 0
      %v1189 = vsel %vm436, %v1121, 0
      %v1192 = vsel %vm436, %v1122, 0
      %v1195 = vsel %vm436, %v1123, 0
      %v1198 = vsel %vm436, %v1124, 0
      %v1201 = vsel %vm436, %v1125, 0
      %v1204 = vsel %vm436, %v1126, 0
      %v1207 = vsel %vm436, %v1127, 0
      %v1210 = vsel %vm436, %v1128, 0
      %v1213 = vsel %vm436, %v1129, 0
      %v1216 = vsel %vm436, %v1130, 0
      %v1219 = vsel %vm436, %v1131, 0
      %v1222 = vsel %vm436, %v1132, 0
      %v1225 = vsel %vm436, %v1133, 0
      %v1228 = vsel %vm436, %v1134, 0
      %v1231 = vsel %vm436, %v1135, 0
      %v1234 = vsel %vm436, %v1136, 0
      %v1237 = vsel %vm436, %v1137, 0
      %v1240 = vsel %vm436, %v1138, 0
      %v1243 = vsel %vm436, %v1139, 0
      %v1246 = vsel %vm436, %v1140, 0
      %v1249 = vsel %vm436, %v1141, 0
      %v1252 = vsel %vm436, %v1142, 0
      %v1255 = vsel %vm436, %v1143, 0
      %v1258 = vsel %vm436, %v1144, 0
      %v1261 = vsel %vm436, %v1145, 0
      %v1264 = vsel %vm436, %v1146, 0
      %v1267 = vsel %vm436, %v1147, 0
      %v1270 = vsel %vm436, %v1148, 0
      %v1273 = vsel %vm436, %v1149, 0
      %v1276 = vand.u32 %v1174, %v536
      %1278 = vmatprep.subr.bf16.mxu0 0
      %1279 = vmatpush1.bf16.msra.mxu0 %v1170
      %1280 = vmatprep.subr.bf16.mxu0 0
      %1281 = vmatpush1.bf16.msra.mxu0 %v1171
      %1282 = vmatprep.subr.bf16.mxu0 0
      %1283 = vmatpush1.bf16.msra.mxu0 %v1172
      %1284 = vmatprep.subr.bf16.mxu0 0
      %1285 = vmatpush1.bf16.msra.mxu0 %v1173
      %1286 = vmatprep.subr.bf16.mxu0 0
      %1287 = vmatpush1.bf16.msra.mxu0 %v1276
      %1288 = vmatprep.subr.bf16.mxu0 0
      %1289 = vmatpush1.bf16.msra.mxu0 0
      %1290 = vmatprep.subr.bf16.mxu0 0
      %1291 = vmatpush1.bf16.msra.mxu0 0
      %1292 = vmatprep.subr.bf16.mxu0 0
      %1293 = vmatpush1.bf16.msra.mxu0 0
      %1294 = vmatprep.subr.bf16.mxu0 0
      %1295 = vmatpush1.bf16.msra.mxu0 0
      %1296 = vmatprep.subr.bf16.mxu0 0
      %1297 = vmatpush1.bf16.msra.mxu0 0
      %1298 = vmatprep.subr.bf16.mxu0 0
      %1299 = vmatpush1.bf16.msra.mxu0 0
      %1300 = vmatprep.subr.bf16.mxu0 0
      %1301 = vmatpush1.bf16.msra.mxu0 0
      %1302 = vmatprep.subr.bf16.mxu0 0
      %1303 = vmatpush1.bf16.msra.mxu0 0
      %1304 = vmatprep.subr.bf16.mxu0 0
      %1305 = vmatpush1.bf16.msra.mxu0 0
      %1306 = vmatprep.subr.bf16.mxu0 0
      %1307 = vmatpush1.bf16.msra.mxu0 0
      %1308 = vmatprep.subr.bf16.mxu0 0
      %1309 = vmatpush1.bf16.msra.mxu0 0
      %1310 = vmatprep.mubr.bf16.mxu0 0
      %1311 = vmatmul.mubr.bf16.gmra.mrb[0].mxu0 %v1180
      %v1312 = vpop.f32.mrb[0].mxu0
      %v1313 = vadd.f32 0.0, %v1312
      %v1314 = vpop.f32.mrb[0].mxu0
      %v1315 = vpop.f32.mrb[0].mxu0
      %v1316 = vadd.f32 0.0, %v1315
      %v1317 = vpop.f32.mrb[0].mxu0
      %1318 = vmatprep.mubr.bf16.mxu0 0
      %1319 = vmatmul.mubr.bf16.gmra.mrb[0].mxu0 %v1183
      %v1320 = vpop.f32.mrb[0].mxu0
      %v1321 = vadd.f32 0.0, %v1320
      %v1322 = vpop.f32.mrb[0].mxu0
      %v1323 = vpop.f32.mrb[0].mxu0
      %v1324 = vadd.f32 0.0, %v1323
      %v1325 = vpop.f32.mrb[0].mxu0
      %1326 = vmatprep.mubr.bf16.mxu0 0
      %1327 = vmatmul.mubr.bf16.gmra.mrb[0].mxu0 %v1186
      %v1328 = vpop.f32.mrb[0].mxu0
      %v1329 = vadd.f32 0.0, %v1328
      %v1330 = vpop.f32.mrb[0].mxu0
      %v1331 = vpop.f32.mrb[0].mxu0
      %v1332 = vadd.f32 0.0, %v1331
      %v1333 = vpop.f32.mrb[0].mxu0
      %1334 = vmatprep.mubr.bf16.mxu0 0
      %1335 = vmatmul.mubr.bf16.gmra.mrb[0].mxu0 %v1189
      %v1336 = vpop.f32.mrb[0].mxu0
      %v1337 = vadd.f32 0.0, %v1336
      %v1338 = vpop.f32.mrb[0].mxu0
      %v1339 = vpop.f32.mrb[0].mxu0
      %v1340 = vadd.f32 0.0, %v1339
      %v1341 = vpop.f32.mrb[0].mxu0
      %1342 = vmatprep.mubr.bf16.mxu0 0
      %1343 = vmatmul.mubr.bf16.gmra.mrb[0].mxu0 %v1192
      %v1344 = vpop.f32.mrb[0].mxu0
      %v1345 = vadd.f32 0.0, %v1344
      %v1346 = vpop.f32.mrb[0].mxu0
      %v1347 = vpop.f32.mrb[0].mxu0
      %v1348 = vadd.f32 0.0, %v1347
      %v1349 = vpop.f32.mrb[0].mxu0
      %1350 = vmatprep.mubr.bf16.mxu0 0
      %1351 = vmatmul.mubr.bf16.gmra.mrb[0].mxu0 %v1195
      %v1352 = vpop.f32.mrb[0].mxu0
      %v1353 = vadd.f32 0.0, %v1352
      %v1354 = vpop.f32.mrb[0].mxu0
      %v1355 = vpop.f32.mrb[0].mxu0
      %v1356 = vadd.f32 0.0, %v1355
      %v1357 = vpop.f32.mrb[0].mxu0
      %1358 = vmatprep.mubr.bf16.mxu0 0
      %1359 = vmatmul.mubr.bf16.gmra.mrb[0].mxu0 %v1198
      %v1360 = vpop.f32.mrb[0].mxu0
      %v1361 = vadd.f32 0.0, %v1360
      %v1362 = vpop.f32.mrb[0].mxu0
      %v1363 = vpop.f32.mrb[0].mxu0
      %v1364 = vadd.f32 0.0, %v1363
      %v1365 = vpop.f32.mrb[0].mxu0
      %1366 = vmatprep.mubr.bf16.mxu0 0
      %1367 = vmatmul.mubr.bf16.gmra.mrb[0].mxu0 %v1201
      %v1368 = vpop.f32.mrb[0].mxu0
      %v1369 = vadd.f32 0.0, %v1368
      %v1370 = vpop.f32.mrb[0].mxu0
      %v1371 = vpop.f32.mrb[0].mxu0
      %v1372 = vadd.f32 0.0, %v1371
      %v1373 = vpop.f32.mrb[0].mxu0
      %1374 = vmatprep.mubr.bf16.mxu0 0
      %1375 = vmatmul.mubr.bf16.gmra.mrb[0].mxu0 %v1204
      %v1376 = vpop.f32.mrb[0].mxu0
      %v1377 = vadd.f32 0.0, %v1376
      %v1378 = vpop.f32.mrb[0].mxu0
      %v1379 = vpop.f32.mrb[0].mxu0
      %v1380 = vadd.f32 0.0, %v1379
      %v1381 = vpop.f32.mrb[0].mxu0
      %1382 = vmatprep.mubr.bf16.mxu0 0
      %1383 = vmatmul.mubr.bf16.gmra.mrb[0].mxu0 %v1207
      %v1384 = vpop.f32.mrb[0].mxu0
      %v1385 = vadd.f32 0.0, %v1384
      %v1386 = vpop.f32.mrb[0].mxu0
      %v1387 = vpop.f32.mrb[0].mxu0
      %v1388 = vadd.f32 0.0, %v1387
      %v1389 = vpop.f32.mrb[0].mxu0
      %1390 = vmatprep.mubr.bf16.mxu0 0
      %1391 = vmatmul.mubr.bf16.gmra.mrb[0].mxu0 %v1210
      %v1392 = vpop.f32.mrb[0].mxu0
      %v1393 = vadd.f32 0.0, %v1392
      %v1394 = vpop.f32.mrb[0].mxu0
      %v1395 = vpop.f32.mrb[0].mxu0
      %v1396 = vadd.f32 0.0, %v1395
      %v1397 = vpop.f32.mrb[0].mxu0
      %1398 = vmatprep.mubr.bf16.mxu0 0
      %1399 = vmatmul.mubr.bf16.gmra.mrb[0].mxu0 %v1213
      %v1400 = vpop.f32.mrb[0].mxu0
      %v1401 = vadd.f32 0.0, %v1400
      %v1402 = vpop.f32.mrb[0].mxu0
      %v1403 = vpop.f32.mrb[0].mxu0
      %v1404 = vadd.f32 0.0, %v1403
      %v1405 = vpop.f32.mrb[0].mxu0
      %1406 = vmatprep.mubr.bf16.mxu0 0
      %1407 = vmatmul.mubr.bf16.gmra.mrb[0].mxu0 %v1216
      %v1408 = vpop.f32.mrb[0].mxu0
      %v1409 = vadd.f32 0.0, %v1408
      %v1410 = vpop.f32.mrb[0].mxu0
      %v1411 = vpop.f32.mrb[0].mxu0
      %v1412 = vadd.f32 0.0, %v1411
      %v1413 = vpop.f32.mrb[0].mxu0
      %1414 = vmatprep.mubr.bf16.mxu0 0
      %1415 = vmatmul.mubr.bf16.gmra.mrb[0].mxu0 %v1219
      %v1416 = vpop.f32.mrb[0].mxu0
      %v1417 = vadd.f32 0.0, %v1416
      %v1418 = vpop.f32.mrb[0].mxu0
      %v1419 = vpop.f32.mrb[0].mxu0
      %v1420 = vadd.f32 0.0, %v1419
      %v1421 = vpop.f32.mrb[0].mxu0
      %1422 = vmatprep.mubr.bf16.mxu0 0
      %1423 = vmatmul.mubr.bf16.gmra.mrb[0].mxu0 %v1222
      %v1424 = vpop.f32.mrb[0].mxu0
      %v1425 = vadd.f32 0.0, %v1424
      %v1426 = vpop.f32.mrb[0].mxu0
      %v1427 = vpop.f32.mrb[0].mxu0
      %v1428 = vadd.f32 0.0, %v1427
      %v1429 = vpop.f32.mrb[0].mxu0
      %1430 = vmatprep.mubr.bf16.mxu0 0
      %1431 = vmatmul.mubr.bf16.gmra.mrb[0].mxu0 %v1225
      %v1432 = vpop.f32.mrb[0].mxu0
      %v1433 = vadd.f32 0.0, %v1432
      %v1434 = vpop.f32.mrb[0].mxu0
      %v1435 = vpop.f32.mrb[0].mxu0
      %v1436 = vadd.f32 0.0, %v1435
      %v1437 = vpop.f32.mrb[0].mxu0
      %1438 = vmatprep.mubr.bf16.mxu0 0
      %1439 = vmatmul.mubr.bf16.gmra.mrb[0].mxu0 %v1228
      %v1440 = vpop.f32.mrb[0].mxu0
      %v1441 = vadd.f32 0.0, %v1440
      %v1442 = vpop.f32.mrb[0].mxu0
      %v1443 = vpop.f32.mrb[0].mxu0
      %v1444 = vadd.f32 0.0, %v1443
      %v1445 = vpop.f32.mrb[0].mxu0
      %1446 = vmatprep.mubr.bf16.mxu0 0
      %1447 = vmatmul.mubr.bf16.gmra.mrb[0].mxu0 %v1231
      %v1448 = vpop.f32.mrb[0].mxu0
      %v1449 = vadd.f32 0.0, %v1448
      %v1450 = vpop.f32.mrb[0].mxu0
      %v1451 = vpop.f32.mrb[0].mxu0
      %v1452 = vadd.f32 0.0, %v1451
      %v1453 = vpop.f32.mrb[0].mxu0
      %1454 = vmatprep.mubr.bf16.mxu0 0
      %1455 = vmatmul.mubr.bf16.gmra.mrb[0].mxu0 %v1234
      %v1456 = vpop.f32.mrb[0].mxu0
      %v1457 = vadd.f32 0.0, %v1456
      %v1458 = vpop.f32.mrb[0].mxu0
      %v1459 = vpop.f32.mrb[0].mxu0
      %v1460 = vadd.f32 0.0, %v1459
      %v1461 = vpop.f32.mrb[0].mxu0
      %1462 = vmatprep.mubr.bf16.mxu0 0
      %1463 = vmatmul.mubr.bf16.gmra.mrb[0].mxu0 %v1237
      %v1464 = vpop.f32.mrb[0].mxu0
      %v1465 = vadd.f32 0.0, %v1464
      %v1466 = vpop.f32.mrb[0].mxu0
      %v1467 = vpop.f32.mrb[0].mxu0
      %v1468 = vadd.f32 0.0, %v1467
      %v1469 = vpop.f32.mrb[0].mxu0
      %1470 = vmatprep.mubr.bf16.mxu0 0
      %1471 = vmatmul.mubr.bf16.gmra.mrb[0].mxu0 %v1240
      %v1472 = vpop.f32.mrb[0].mxu0
      %v1473 = vadd.f32 0.0, %v1472
      %v1474 = vpop.f32.mrb[0].mxu0
      %v1475 = vpop.f32.mrb[0].mxu0
      %v1476 = vadd.f32 0.0, %v1475
      %v1477 = vpop.f32.mrb[0].mxu0
      %1478 = vmatprep.mubr.bf16.mxu0 0
      %1479 = vmatmul.mubr.bf16.gmra.mrb[0].mxu0 %v1243
      %v1480 = vpop.f32.mrb[0].mxu0
      %v1481 = vadd.f32 0.0, %v1480
      %v1482 = vpop.f32.mrb[0].mxu0
      %v1483 = vpop.f32.mrb[0].mxu0
      %v1484 = vadd.f32 0.0, %v1483
      %v1485 = vpop.f32.mrb[0].mxu0
      %1486 = vmatprep.mubr.bf16.mxu0 0
      %1487 = vmatmul.mubr.bf16.gmra.mrb[0].mxu0 %v1246
      %v1488 = vpop.f32.mrb[0].mxu0
      %v1489 = vadd.f32 0.0, %v1488
      %v1490 = vpop.f32.mrb[0].mxu0
      %v1491 = vpop.f32.mrb[0].mxu0
      %v1492 = vadd.f32 0.0, %v1491
      %v1493 = vpop.f32.mrb[0].mxu0
      %1494 = vmatprep.mubr.bf16.mxu0 0
      %1495 = vmatmul.mubr.bf16.gmra.mrb[0].mxu0 %v1249
      %v1496 = vpop.f32.mrb[0].mxu0
      %v1497 = vadd.f32 0.0, %v1496
      %v1498 = vpop.f32.mrb[0].mxu0
      %v1499 = vpop.f32.mrb[0].mxu0
      %v1500 = vadd.f32 0.0, %v1499
      %v1501 = vpop.f32.mrb[0].mxu0
      %1502 = vmatprep.mubr.bf16.mxu0 0
      %1503 = vmatmul.mubr.bf16.gmra.mrb[0].mxu0 %v1252
      %v1504 = vpop.f32.mrb[0].mxu0
      %v1505 = vadd.f32 0.0, %v1504
      %v1506 = vpop.f32.mrb[0].mxu0
      %v1507 = vpop.f32.mrb[0].mxu0
      %v1508 = vadd.f32 0.0, %v1507
      %v1509 = vpop.f32.mrb[0].mxu0
      %1510 = vmatprep.mubr.bf16.mxu0 0
      %1511 = vmatmul.mubr.bf16.gmra.mrb[0].mxu0 %v1255
      %v1512 = vpop.f32.mrb[0].mxu0
      %v1513 = vadd.f32 0.0, %v1512
      %v1514 = vpop.f32.mrb[0].mxu0
      %v1515 = vpop.f32.mrb[0].mxu0
      %v1516 = vadd.f32 0.0, %v1515
      %v1517 = vpop.f32.mrb[0].mxu0
      %1518 = vmatprep.mubr.bf16.mxu0 0
      %1519 = vmatmul.mubr.bf16.gmra.mrb[0].mxu0 %v1258
      %v1520 = vpop.f32.mrb[0].mxu0
      %v1521 = vadd.f32 0.0, %v1520
      %v1522 = vpop.f32.mrb[0].mxu0
      %v1523 = vpop.f32.mrb[0].mxu0
      %v1524 = vadd.f32 0.0, %v1523
      %v1525 = vpop.f32.mrb[0].mxu0
      %1526 = vmatprep.mubr.bf16.mxu0 0
      %1527 = vmatmul.mubr.bf16.gmra.mrb[0].mxu0 %v1261
      %v1528 = vpop.f32.mrb[0].mxu0
      %v1529 = vadd.f32 0.0, %v1528
      %v1530 = vpop.f32.mrb[0].mxu0
      %v1531 = vpop.f32.mrb[0].mxu0
      %v1532 = vadd.f32 0.0, %v1531
      %v1533 = vpop.f32.mrb[0].mxu0
      %1534 = vmatprep.mubr.bf16.mxu0 0
      %1535 = vmatmul.mubr.bf16.gmra.mrb[0].mxu0 %v1264
      %v1536 = vpop.f32.mrb[0].mxu0
      %v1537 = vadd.f32 0.0, %v1536
      %v1538 = vpop.f32.mrb[0].mxu0
      %v1539 = vpop.f32.mrb[0].mxu0
      %v1540 = vadd.f32 0.0, %v1539
      %v1541 = vpop.f32.mrb[0].mxu0
      %1542 = vmatprep.mubr.bf16.mxu0 0
      %1543 = vmatmul.mubr.bf16.gmra.mrb[0].mxu0 %v1267
      %v1544 = vpop.f32.mrb[0].mxu0
      %v1545 = vadd.f32 0.0, %v1544
      %v1546 = vpop.f32.mrb[0].mxu0
      %v1547 = vpop.f32.mrb[0].mxu0
      %v1548 = vadd.f32 0.0, %v1547
      %v1549 = vpop.f32.mrb[0].mxu0
      %1550 = vmatprep.mubr.bf16.mxu0 0
      %1551 = vmatmul.mubr.bf16.gmra.mrb[0].mxu0 %v1270
      %v1552 = vpop.f32.mrb[0].mxu0
      %v1553 = vadd.f32 0.0, %v1552
      %v1554 = vpop.f32.mrb[0].mxu0
      %v1555 = vpop.f32.mrb[0].mxu0
      %v1556 = vadd.f32 0.0, %v1555
      %v1557 = vpop.f32.mrb[0].mxu0
      %1558 = vmatprep.mubr.bf16.mxu0 0
      %1559 = vmatmul.mubr.bf16.gmra.mrb[0].mxu0 %v1273
      %v1560 = vpop.f32.mrb[0].mxu0
      %v1561 = vadd.f32 0.0, %v1560
      %v1562 = vpop.f32.mrb[0].mxu0
      %v1563 = vpop.f32.mrb[0].mxu0
      %v1564 = vadd.f32 0.0, %v1563
      %v1565 = vpop.f32.mrb[0].mxu0
      %1566 = vdwg.mxu0
      %v1567 = vmax.f32 %v1313, %v1377
      %v1568 = vmax.f32 %v1316, %v1380
      %v1569 = vmax.f32 %v1321, %v1385
      %v1570 = vmax.f32 %v1324, %v1388
      %v1571 = vmax.f32 %v1329, %v1393
      %v1572 = vmax.f32 %v1332, %v1396
      %v1573 = vmax.f32 %v1337, %v1401
      %v1574 = vmax.f32 %v1340, %v1404
      %v1575 = vmax.f32 %v1345, %v1409
      %v1576 = vmax.f32 %v1348, %v1412
      %v1577 = vmax.f32 %v1353, %v1417
      %v1578 = vmax.f32 %v1356, %v1420
      %v1579 = vmax.f32 %v1361, %v1425
      %v1580 = vmax.f32 %v1364, %v1428
      %v1581 = vmax.f32 %v1369, %v1433
      %v1582 = vmax.f32 %v1372, %v1436
      %v1583 = vmax.f32 %v1441, %v1505
      %v1584 = vmax.f32 %v1444, %v1508
      %v1585 = vmax.f32 %v1449, %v1513
      %v1586 = vmax.f32 %v1452, %v1516
      %v1587 = vmax.f32 %v1457, %v1521
      %v1588 = vmax.f32 %v1460, %v1524
      %v1589 = vmax.f32 %v1465, %v1529
      %v1590 = vmax.f32 %v1468, %v1532
      %v1591 = vmax.f32 %v1473, %v1537
      %v1592 = vmax.f32 %v1476, %v1540
      %v1593 = vmax.f32 %v1481, %v1545
      %v1594 = vmax.f32 %v1484, %v1548
      %v1595 = vmax.f32 %v1489, %v1553
      %v1596 = vmax.f32 %v1492, %v1556
      %v1597 = vmax.f32 %v1497, %v1561
      %v1598 = vmax.f32 %v1500, %v1564
      %v1599 = vmax.f32 %v1567, %v1583
      %v1600 = vmax.f32 %v1568, %v1584
      %v1601 = vmax.f32 %v1569, %v1585
      %v1602 = vmax.f32 %v1570, %v1586
      %v1603 = vmax.f32 %v1571, %v1587
      %v1604 = vmax.f32 %v1572, %v1588
      %v1605 = vmax.f32 %v1573, %v1589
      %v1606 = vmax.f32 %v1574, %v1590
      %v1607 = vmax.f32 %v1575, %v1591
      %v1608 = vmax.f32 %v1576, %v1592
      %v1609 = vmax.f32 %v1577, %v1593
      %v1610 = vmax.f32 %v1578, %v1594
      %v1611 = vmax.f32 %v1579, %v1595
      %v1612 = vmax.f32 %v1580, %v1596
      %v1613 = vmax.f32 %v1581, %v1597
      %v1614 = vmax.f32 %v1582, %v1598
      %v1615 = vadd.f32 %v1599, %v881
      %v1616 = vadd.f32 %v1600, %v881
      %v1617 = vadd.f32 %v1601, %v881
      %v1618 = vadd.f32 %v1602, %v881
      %v1619 = vadd.f32 %v1603, %v881
      %v1620 = vadd.f32 %v1604, %v881
      %v1621 = vadd.f32 %v1605, %v881
      %v1622 = vadd.f32 %v1606, %v881
      %v1623 = vadd.f32 %v1607, %v881
      %v1624 = vadd.f32 %v1608, %v881
      %v1625 = vadd.f32 %v1609, %v881
      %v1626 = vadd.f32 %v1610, %v881
      %v1627 = vadd.f32 %v1611, %v881
      %v1628 = vadd.f32 %v1612, %v881
      %v1629 = vadd.f32 %v1613, %v881
      %v1630 = vadd.f32 %v1614, %v881
      %1631 = vst.msk [vmem:[%s170 + $0x80] sm:$0xff] %vm899, %v1615
      %1632 = vst.msk [vmem:[%s170 + $0x88] sm:$0xff] %vm899, %v1616
      %1633 = vst.msk [vmem:[%s170 + $0x90] sm:$0xff] %vm899, %v1617
      %1634 = vst.msk [vmem:[%s170 + $0x98] sm:$0xff] %vm899, %v1618
      %1635 = vst.msk [vmem:[%s170 + $0xa0] sm:$0xff] %vm899, %v1619
      %1636 = vst.msk [vmem:[%s170 + $0xa8] sm:$0xff] %vm899, %v1620
      %1637 = vst.msk [vmem:[%s170 + $0xb0] sm:$0xff] %vm899, %v1621
      %1638 = vst.msk [vmem:[%s170 + $0xb8] sm:$0xff] %vm899, %v1622
      %1639 = vst.msk [vmem:[%s170 + $0xc0] sm:$0xff] %vm899, %v1623
      %1640 = vst.msk [vmem:[%s170 + $0xc8] sm:$0xff] %vm899, %v1624
      %1641 = vst.msk [vmem:[%s170 + $0xd0] sm:$0xff] %vm899, %v1625
      %1642 = vst.msk [vmem:[%s170 + $0xd8] sm:$0xff] %vm899, %v1626
      %1643 = vst.msk [vmem:[%s170 + $0xe0] sm:$0xff] %vm899, %v1627
      %1644 = vst.msk [vmem:[%s170 + $0xe8] sm:$0xff] %vm899, %v1628
      %1645 = vst.msk [vmem:[%s170 + $0xf0] sm:$0xff] %vm899, %v1629
      %1646 = vst.msk [vmem:[%s170 + $0xf8] sm:$0xff] %vm899, %v1630
      %p1647 = scmp.lt.s32.totalorder %s14, 1
      %s1648 = scalar_select %p1647, %s14, 1
      %s1649 = smul.addr %s1648, 32
      %s1650 = smul.addr %s1649, 8
      %s1651 = scalar_lea.vmem %s3, %s1650
      // Predicated region
      $region33: #{cnn_cifar10_forward.4} parent=31 // pred_check
        %p1652 = pneg %p100
      $region34: #{cnn_cifar10_forward.4} parent=31 // pred_check_branch
        %1654 = sbr.rel (%p1652) target = $region36
      $region35: #{cnn_cifar10_forward.4} parent=31 // pred_region
        _
      $region36: #{cnn_cifar10_forward.4} parent=31 // pred_fallthru
        _
    $region32: #{cnn_cifar10_forward.4} parent=5 // pred_fallthru
      _
    %p1655 = scmp.le.s32.totalorder 2, %s9
    // Predicated region
    $region37: #{cnn_cifar10_forward.4} parent=5 // pred_check
      %p1656 = pneg %p1655
    $region38: #{cnn_cifar10_forward.4} parent=5 // pred_check_branch
      %1658 = sbr.rel (%p1656) target = $region40
    $region39: #{cnn_cifar10_forward.4} parent=5 // pred_region
      %s1659 = ssub.s32 %s9, 2
      // Predicated region
      $region41: #{cnn_cifar10_forward.4} parent=39 // pred_check
        %p1660 = pneg %p106
      $region42: #{cnn_cifar10_forward.4} parent=39 // pred_check_branch
        %1662 = sbr.rel (%p1660) target = $region44
      $region43: #{cnn_cifar10_forward.4} parent=39 // pred_region
        %p1663 = scmp.lt.s32.totalorder %s15, 1
        %s1664 = scalar_select %p1663, %s15, 1
        %s1665 = smul.addr %s1664, 32
        %s1666 = smul.addr %s1665, 8
        %s1667 = scalar_lea.vmem %s3, %s1666
      $region44: #{cnn_cifar10_forward.4} parent=39 // pred_fallthru
        _
    $region40: #{cnn_cifar10_forward.4} parent=5 // pred_fallthru
      _
  $region6: #{cnn_cifar10_forward.4} parent=0 // loop_footer
    %s13 = sadd.s32 1, %s9
  $region7: #{cnn_cifar10_forward.4} parent=0 // loop_footer_branch
    %8 = sbr.rel target = $region3
  $region8: #{cnn_cifar10_forward.4} parent=0 // loop_exit
    _

// kernel: cnn_cifar10_forward.5
$region0: #{cnn_cifar10_forward.5}
  #allocation0 [shape = 'u32[]', space=smem, size = 0x4, offset = 0x4, fixed_abs, tag = 'smem constant byte address 0x4 - core index']
  #allocation1 [shape = 'u32[144,128]{1,0:T(1,128)}', space=vmem, size = 0x12000, scoped, tag = 'internal scratch']
  %s0 = inlined_call_operand.vmem [shape: bf16[2,320,160], index: 0, kind: input, shape index: {}]
  %s1 = inlined_call_operand.vmem [shape: bf16[5,160,32], index: 1, kind: input, shape index: {}]
  %s2 = inlined_call_operand.vmem [shape: f32[1,32], index: 2, kind: input, shape index: {}]
  %s3 = inlined_call_operand.vmem [shape: f32[2,64,32], index: 3, kind: output, shape index: {}]
  %s4 = sld [smem:[#allocation0]]
  $region45: #{cnn_cifar10_forward.5} parent=0
    _
  %s6 = ssub.s32 1, %s4
  %s7 = scalar_select 0, %s6, %s4
  loop: start=0, step=1, limit=4
  $region2: #{cnn_cifar10_forward.5} parent=0 // loop_pre_header
    _
  $region3: #{cnn_cifar10_forward.5} parent=0 // loop_header
    %s9 = sphi 0, %s13
    %p10 = scmp.ge.s32.totalorder %s9, 4
    %s19 = sphi 0, %s21
    %s22 = sphi 0, %s19
    %s23 = sphi 0, %s22
    %s39 = sphi 0, %s23
    %s43 = sphi 0, %s43
    %s45 = sphi 0, %s43
    %s46 = sphi 0, %s45
    %s60 = sphi 0, %s46
    %s64 = sphi 0, %s64
    %s66 = sphi 0, %s64
    %s67 = sphi 0, %s66
    %s81 = sphi 0, %s67
    %s87 = sphi 0, %s89
    %s90 = sphi 0, %s87
    %s91 = sphi 0, %s90
    %s107 = sphi 0, %s91
  $region4: #{cnn_cifar10_forward.5} parent=0 // loop_header_branch
    %12 = sbr.rel (%p10) target = $region8
  $region5: #{cnn_cifar10_forward.5} parent=0 // loop_body
    %s14 = ssub.s32 %s9, 1
    %s15 = ssub.s32 %s9, 2
    %s16 = sadd.s32 %s9, 1
    %s17 = ssub.s32 %s9, %s16
    %p18 = scmp.eq.s32.totalorder %s17, 0
    %s20 = sadd.s32 %s19, 1
    %s21 = scalar_select %p18, %s19, %s20
    %p24 = pneg %p18
    %p25 = scmp.eq.s32.totalorder %s9, 1
    %p26 = por %p24, %p25
    %p27 = scmp.ne.s32.totalorder %s19, %s22
    %p28 = scmp.eq.s32.totalorder %s9, 0
    %p29 = por %p27, %p28
    %p30 = scmp.ne.s32.totalorder %s19, %s22
    %p31 = scmp.eq.s32.totalorder %s14, 1
    %p32 = por %p30, %p31
    %p33 = scmp.ne.s32.totalorder %s22, %s23
    %p34 = scmp.eq.s32.totalorder %s14, 0
    %p35 = por %p33, %p34
    %p36 = scmp.ne.s32.totalorder %s22, %s23
    %p37 = scmp.eq.s32.totalorder %s15, 1
    %p38 = por %p36, %p37
    %p40 = scmp.ne.s32.totalorder %s23, %s39
    %p41 = scmp.eq.s32.totalorder %s15, 0
    %p42 = por %p40, %p41
    %s44 = sadd.s32 %s43, 1
    %p47 = scmp.eq.s32.totalorder %s9, 1
    %p48 = scmp.ne.s32.totalorder %s43, %s45
    %p49 = scmp.eq.s32.totalorder %s9, 0
    %p50 = por %p48, %p49
    %p51 = scmp.ne.s32.totalorder %s43, %s45
    %p52 = scmp.eq.s32.totalorder %s14, 1
    %p53 = por %p51, %p52
    %p54 = scmp.ne.s32.totalorder %s45, %s46
    %p55 = scmp.eq.s32.totalorder %s14, 0
    %p56 = por %p54, %p55
    %p57 = scmp.ne.s32.totalorder %s45, %s46
    %p58 = scmp.eq.s32.totalorder %s15, 1
    %p59 = por %p57, %p58
    %p61 = scmp.ne.s32.totalorder %s46, %s60
    %p62 = scmp.eq.s32.totalorder %s15, 0
    %p63 = por %p61, %p62
    %s65 = sadd.s32 %s64, 1
    %p68 = scmp.eq.s32.totalorder %s9, 1
    %p69 = scmp.ne.s32.totalorder %s64, %s66
    %p70 = scmp.eq.s32.totalorder %s9, 0
    %p71 = por %p69, %p70
    %p72 = scmp.ne.s32.totalorder %s64, %s66
    %p73 = scmp.eq.s32.totalorder %s14, 1
    %p74 = por %p72, %p73
    %p75 = scmp.ne.s32.totalorder %s66, %s67
    %p76 = scmp.eq.s32.totalorder %s14, 0
    %p77 = por %p75, %p76
    %p78 = scmp.ne.s32.totalorder %s66, %s67
    %p79 = scmp.eq.s32.totalorder %s15, 1
    %p80 = por %p78, %p79
    %p82 = scmp.ne.s32.totalorder %s67, %s81
    %p83 = scmp.eq.s32.totalorder %s15, 0
    %p84 = por %p82, %p83
    %s85 = ssub.s32 %s9, %s16
    %p86 = scmp.eq.s32.totalorder %s85, 0
    %s88 = sadd.s32 %s87, 1
    %s89 = scalar_select %p86, %s87, %s88
    %p92 = pneg %p86
    %p93 = scmp.eq.s32.totalorder %s9, 1
    %p94 = por %p92, %p93
    %p95 = scmp.ne.s32.totalorder %s87, %s90
    %p96 = scmp.eq.s32.totalorder %s9, 0
    %p97 = por %p95, %p96
    %p98 = scmp.ne.s32.totalorder %s87, %s90
    %p99 = scmp.eq.s32.totalorder %s14, 1
    %p100 = por %p98, %p99
    %p101 = scmp.ne.s32.totalorder %s90, %s91
    %p102 = scmp.eq.s32.totalorder %s14, 0
    %p103 = por %p101, %p102
    %p104 = scmp.ne.s32.totalorder %s90, %s91
    %p105 = scmp.eq.s32.totalorder %s15, 1
    %p106 = por %p104, %p105
    %p108 = scmp.ne.s32.totalorder %s91, %s107
    %p109 = scmp.eq.s32.totalorder %s15, 0
    %p110 = por %p108, %p109
    %p111 = scmp.le.s32.totalorder 1, %s9
    %p112 = scmp.lt.s32.totalorder %s9, 3
    %p113 = pnand %p111, %p112
    %p114 = pneg %p113
    // Predicated region
    $region9: #{cnn_cifar10_forward.5} parent=5 // pred_check
      _
    $region10: #{cnn_cifar10_forward.5} parent=5 // pred_check_branch
      %116 = sbr.rel (%p113) target = $region12
    $region11: #{cnn_cifar10_forward.5} parent=5 // pred_region
      %s117 = ssub.s32 %s9, 1
      // Predicated region
      $region13: #{cnn_cifar10_forward.5} parent=11 // pred_check
        %p118 = pneg %p56
      $region14: #{cnn_cifar10_forward.5} parent=11 // pred_check_branch
        %120 = sbr.rel (%p118) target = $region16
      $region15: #{cnn_cifar10_forward.5} parent=11 // pred_region
        _
      $region16: #{cnn_cifar10_forward.5} parent=11 // pred_fallthru
        _
      // Predicated region
      $region17: #{cnn_cifar10_forward.5} parent=11 // pred_check
        %p121 = pneg %p77
      $region18: #{cnn_cifar10_forward.5} parent=11 // pred_check_branch
        %123 = sbr.rel (%p121) target = $region20
      $region19: #{cnn_cifar10_forward.5} parent=11 // pred_region
        _
      $region20: #{cnn_cifar10_forward.5} parent=11 // pred_fallthru
        _
    $region12: #{cnn_cifar10_forward.5} parent=5 // pred_fallthru
      _
    %p124 = scmp.lt.s32.totalorder %s9, 2
    // Predicated region
    $region21: #{cnn_cifar10_forward.5} parent=5 // pred_check
      %p125 = pneg %p124
    $region22: #{cnn_cifar10_forward.5} parent=5 // pred_check_branch
      %127 = sbr.rel (%p125) target = $region24
    $region23: #{cnn_cifar10_forward.5} parent=5 // pred_region
      // Predicated region
      $region25: #{cnn_cifar10_forward.5} parent=23 // pred_check
        %p128 = pneg %p29
      $region26: #{cnn_cifar10_forward.5} parent=23 // pred_check_branch
        %130 = sbr.rel (%p128) target = $region28
      $region27: #{cnn_cifar10_forward.5} parent=23 // pred_region
        %p131 = scmp.lt.s32.totalorder %s9, 1
        %s132 = scalar_select %p131, %s9, 1
        %s133 = smul.addr %s132, 80
        %s134 = smul.addr %s133, 4
        %s135 = scalar_lea.vmem %s0, %s134
      $region28: #{cnn_cifar10_forward.5} parent=23 // pred_fallthru
        _
    $region24: #{cnn_cifar10_forward.5} parent=5 // pred_fallthru
      _
    %p136 = scmp.le.s32.totalorder 1, %s9
    %p137 = scmp.lt.s32.totalorder %s9, 3
    %p138 = pnand %p136, %p137
    %p139 = pneg %p138
    // Predicated region
    $region29: #{cnn_cifar10_forward.5} parent=5 // pred_check
      _
    $region30: #{cnn_cifar10_forward.5} parent=5 // pred_check_branch
      %141 = sbr.rel (%p138) target = $region32
    $region31: #{cnn_cifar10_forward.5} parent=5 // pred_region
      %s142 = ssub.s32 %s9, 1
      %p143 = scmp.lt.s32.totalorder %s14, 1
      %s144 = scalar_select %p143, %s14, 1
      %s145 = smul.addr %s144, 80
      %s146 = smul.addr %s145, 4
      %s147 = scalar_lea.vmem %s0, %s146
      %p148 = pneg %p35
      %p149 = pneg %p32
      %p150 = pneg %p56
      %p151 = pneg %p53
      %p152 = pneg %p77
      %p153 = pneg %p74
      %p154 = pneg %p103
      %p155 = pneg %p100
      %p156 = scmp.lt.s32.totalorder %s14, 1
      %s157 = scalar_select %p156, %s14, 1
      %s158 = smul.addr %s157, 8
      %s159 = smul.addr %s158, 8
      %s160 = scalar_lea.vmem %s3, %s159
      %p161 = scmp.lt.s32.totalorder %s14, 1
      %s162 = scalar_select %p161, %s14, 1
      %s163 = smul.addr %s162, 80
      %s164 = smul.addr %s163, 4
      %s165 = scalar_lea.vmem %s0, %s164
      %p166 = scmp.lt.s32.totalorder %s14, 1
      %s167 = scalar_select %p166, %s14, 1
      %s168 = smul.addr %s167, 8
      %s169 = smul.addr %s168, 8
      %s170 = scalar_lea.vmem %s3, %s169
      %v172 = vld [vmem:[%s2] sm:$0x1]
      %v173 = vld [vmem:[%s165] sm:$0xff]
      %v174 = vld [vmem:[%s165 + $0x8] sm:$0xff]
      %v175 = vld [vmem:[%s165 + $0x10] sm:$0xff]
      %v176 = vld [vmem:[%s165 + $0x18] sm:$0xff]
      %v177 = vld [vmem:[%s165 + $0x20] sm:$0xff]
      %v178 = vld [vmem:[%s165 + $0x28] sm:$0xff]
      %v179 = vld [vmem:[%s165 + $0x30] sm:$0xff]
      %v180 = vld [vmem:[%s165 + $0x38] sm:$0xff]
      %v181 = vld [vmem:[%s165 + $0x40] sm:$0xff]
      %v182 = vld [vmem:[%s165 + $0x48] sm:$0xff]
      %v183 = vld [vmem:[%s165 + $0x50] sm:$0xff]
      %v184 = vld [vmem:[%s165 + $0x58] sm:$0xff]
      %v185 = vld [vmem:[%s165 + $0x60] sm:$0xff]
      %v186 = vld [vmem:[%s165 + $0x68] sm:$0xff]
      %v187 = vld [vmem:[%s165 + $0x70] sm:$0xff]
      %v188 = vld [vmem:[%s165 + $0x78] sm:$0xff]
      %v189 = vld [vmem:[%s165 + $0x80] sm:$0xff]
      %v190 = vld [vmem:[%s165 + $0x88] sm:$0xff]
      %v191 = vld [vmem:[%s165 + $0x90] sm:$0xff]
      %v192 = vld [vmem:[%s165 + $0x98] sm:$0xff]
      %v193 = vld [vmem:[%s165 + $0xa0] sm:$0xff]
      %v194 = vld [vmem:[%s165 + $0xa8] sm:$0xff]
      %v195 = vld [vmem:[%s165 + $0xb0] sm:$0xff]
      %v196 = vld [vmem:[%s165 + $0xb8] sm:$0xff]
      %v197 = vld [vmem:[%s165 + $0xc0] sm:$0xff]
      %v198 = vld [vmem:[%s165 + $0xc8] sm:$0xff]
      %v199 = vld [vmem:[%s165 + $0xd0] sm:$0xff]
      %v200 = vld [vmem:[%s165 + $0xd8] sm:$0xff]
      %v201 = vld [vmem:[%s165 + $0xe0] sm:$0xff]
      %v202 = vld [vmem:[%s165 + $0xe8] sm:$0xff]
      %v203 = vld [vmem:[%s165 + $0xf0] sm:$0xff]
      %v204 = vld [vmem:[%s165 + $0xf8] sm:$0xff]
      %v205 = vld [vmem:[%s1] sm:$0xf]
      %v206 = vld [vmem:[%s1 + $0x4] sm:$0xf]
      %v207 = vld [vmem:[%s1 + $0x8] sm:$0xf]
      %v208 = vld [vmem:[%s1 + $0xc] sm:$0xf]
      %v209 = vld [vmem:[%s1 + $0x10] sm:$0xf]
      %v210 = vld [vmem:[%s1 + $0x14] sm:$0xf]
      %v211 = vld [vmem:[%s1 + $0x18] sm:$0xf]
      %v212 = vld [vmem:[%s1 + $0x1c] sm:$0xf]
      %v213 = vld [vmem:[%s1 + $0x20] sm:$0xf]
      %v214 = vld [vmem:[%s1 + $0x24] sm:$0xf]
      %v215 = vld [vmem:[%s1 + $0x28] sm:$0xf]
      %v216 = vld [vmem:[%s1 + $0x2c] sm:$0xf]
      %v217 = vld [vmem:[%s1 + $0x30] sm:$0xf]
      %v218 = vld [vmem:[%s1 + $0x34] sm:$0xf]
      %v219 = vld [vmem:[%s1 + $0x38] sm:$0xf]
      %v220 = vld [vmem:[%s1 + $0x3c] sm:$0xf]
      %v221 = vld [vmem:[%s1 + $0x40] sm:$0xf]
      %v222 = vld [vmem:[%s1 + $0x44] sm:$0xf]
      %v223 = vld [vmem:[%s1 + $0x48] sm:$0xf]
      %v224 = vld [vmem:[%s1 + $0x4c] sm:$0xf]
      %v225 = vld [vmem:[%s165 + $0x100] sm:$0xff]
      %v226 = vld [vmem:[%s165 + $0x108] sm:$0xff]
      %s227 = scalar_lea.vmem %s1, 80
      %v228 = vld [vmem:[%s227] sm:$0xf]
      %v229 = vld [vmem:[%s227 + $0x4] sm:$0xf]
      %v230 = vld [vmem:[%s227 + $0x8] sm:$0xf]
      %v231 = vld [vmem:[%s227 + $0xc] sm:$0xf]
      %v232 = vld [vmem:[%s227 + $0x10] sm:$0xf]
      %v233 = vld [vmem:[%s227 + $0x14] sm:$0xf]
      %v234 = vld [vmem:[%s227 + $0x18] sm:$0xf]
      %v235 = vld [vmem:[%s227 + $0x1c] sm:$0xf]
      %v236 = vld [vmem:[%s227 + $0x20] sm:$0xf]
      %v237 = vld [vmem:[%s227 + $0x24] sm:$0xf]
      %v238 = vld [vmem:[%s227 + $0x28] sm:$0xf]
      %v239 = vld [vmem:[%s227 + $0x2c] sm:$0xf]
      %v240 = vld [vmem:[%s227 + $0x30] sm:$0xf]
      %v241 = vld [vmem:[%s227 + $0x34] sm:$0xf]
      %v242 = vld [vmem:[%s227 + $0x38] sm:$0xf]
      %v243 = vld [vmem:[%s227 + $0x3c] sm:$0xf]
      %v244 = vld [vmem:[%s227 + $0x40] sm:$0xf]
      %v245 = vld [vmem:[%s227 + $0x44] sm:$0xf]
      %v246 = vld [vmem:[%s227 + $0x48] sm:$0xf]
      %v247 = vld [vmem:[%s227 + $0x4c] sm:$0xf]
      %v280 = vunpack.c.l.b16 %v175
      %v281 = vunpack.c.h.b16 %v175
      %v282 = vunpack.c.l.b16 %v176
      %v283 = vunpack.c.h.b16 %v176
      %v284 = vunpack.c.l.b16 %v177
      %v285 = vunpack.c.h.b16 %v177
      %v286 = vunpack.c.l.b16 %v178
      %v287 = vunpack.c.h.b16 %v178
      %v288 = vunpack.c.l.b16 %v179
      %v289 = vunpack.c.h.b16 %v179
      %v290 = vunpack.c.l.b16 %v180
      %v291 = vunpack.c.h.b16 %v180
      %v292 = vunpack.c.l.b16 %v181
      %v293 = vunpack.c.h.b16 %v181
      %v294 = vunpack.c.l.b16 %v182
      %v295 = vunpack.c.h.b16 %v182
      %v296 = vunpack.c.l.b16 %v183
      %v297 = vunpack.c.h.b16 %v183
      %v298 = vunpack.c.l.b16 %v184
      %v299 = vunpack.c.h.b16 %v184
      %v300 = vunpack.c.l.b16 %v185
      %v301 = vunpack.c.h.b16 %v185
      %v302 = vunpack.c.l.b16 %v186
      %v303 = vunpack.c.h.b16 %v186
      %v304 = vunpack.c.l.b16 %v187
      %v305 = vunpack.c.h.b16 %v187
      %v306 = vunpack.c.l.b16 %v188
      %v307 = vunpack.c.h.b16 %v188
      %v308 = vunpack.c.l.b16 %v189
      %v309 = vunpack.c.h.b16 %v189
      %v310 = vunpack.c.l.b16 %v190
      %v311 = vunpack.c.h.b16 %v190
      %v312 = vunpack.c.l.b16 %v191
      %v313 = vunpack.c.h.b16 %v191
      %v314 = vunpack.c.l.b16 %v192
      %v315 = vunpack.c.h.b16 %v192
      %v316 = vunpack.c.l.b16 %v193
      %v317 = vunpack.c.h.b16 %v193
      %v318 = vunpack.c.l.b16 %v194
      %v319 = vunpack.c.h.b16 %v194
      %v320 = vunpack.c.l.b16 %v195
      %v321 = vunpack.c.h.b16 %v195
      %v322 = vunpack.c.l.b16 %v196
      %v323 = vunpack.c.h.b16 %v196
      %v324 = vunpack.c.l.b16 %v197
      %v325 = vunpack.c.h.b16 %v197
      %v326 = vunpack.c.l.b16 %v198
      %v327 = vunpack.c.h.b16 %v198
      %v328 = vunpack.c.l.b16 %v199
      %v329 = vunpack.c.h.b16 %v199
      %v330 = vunpack.c.l.b16 %v200
      %v331 = vunpack.c.h.b16 %v200
      %v332 = vunpack.c.l.b16 %v201
      %v333 = vunpack.c.h.b16 %v201
      %v334 = vunpack.c.l.b16 %v202
      %v335 = vunpack.c.h.b16 %v202
      %v336 = vunpack.c.l.b16 %v203
      %v337 = vunpack.c.h.b16 %v203
      %v338 = vunpack.c.l.b16 %v204
      %v339 = vunpack.c.h.b16 %v204
      %v340 = vunpack.c.l.b16 %v225
      %v341 = vunpack.c.h.b16 %v225
      %v342 = vunpack.c.l.b16 %v226
      %v343 = vunpack.c.h.b16 %v226
      %v344 = vpack.c.b16 %v282, %v280
      %v345 = vpack.c.b16 %v283, %v281
      %v346 = vpack.c.b16 %v286, %v284
      %v347 = vpack.c.b16 %v287, %v285
      %v348 = vpack.c.b16 %v290, %v288
      %v349 = vpack.c.b16 %v291, %v289
      %v350 = vpack.c.b16 %v294, %v292
      %v351 = vpack.c.b16 %v295, %v293
      %v352 = vpack.c.b16 %v298, %v296
      %v353 = vpack.c.b16 %v299, %v297
      %v354 = vpack.c.b16 %v302, %v300
      %v355 = vpack.c.b16 %v303, %v301
      %v356 = vpack.c.b16 %v306, %v304
      %v357 = vpack.c.b16 %v307, %v305
      %v358 = vpack.c.b16 %v310, %v308
      %v359 = vpack.c.b16 %v311, %v309
      %v360 = vpack.c.b16 %v314, %v312
      %v361 = vpack.c.b16 %v315, %v313
      %v362 = vpack.c.b16 %v318, %v316
      %v363 = vpack.c.b16 %v319, %v317
      %v364 = vpack.c.b16 %v322, %v320
      %v365 = vpack.c.b16 %v323, %v321
      %v366 = vpack.c.b16 %v326, %v324
      %v367 = vpack.c.b16 %v327, %v325
      %v368 = vpack.c.b16 %v330, %v328
      %v369 = vpack.c.b16 %v331, %v329
      %v370 = vpack.c.b16 %v334, %v332
      %v371 = vpack.c.b16 %v335, %v333
      %v372 = vpack.c.b16 %v338, %v336
      %v373 = vpack.c.b16 %v339, %v337
      %v374 = vpack.c.b16 %v342, %v340
      %v375 = vpack.c.b16 %v343, %v341
      %v412 = vunpack.c.l.b16 %v228
      %v413 = vunpack.c.l.b16 %v229
      %v414 = vunpack.c.l.b16 %v230
      %v415 = vunpack.c.l.b16 %v231
      %v416 = vunpack.c.l.b16 %v232
      %v417 = vunpack.c.l.b16 %v233
      %v418 = vunpack.c.l.b16 %v234
      %v419 = vunpack.c.l.b16 %v235
      %v420 = vunpack.c.l.b16 %v236
      %v421 = vunpack.c.l.b16 %v237
      %v422 = vunpack.c.l.b16 %v238
      %v423 = vunpack.c.l.b16 %v239
      %v424 = vunpack.c.l.b16 %v240
      %v425 = vunpack.c.l.b16 %v241
      %v426 = vunpack.c.l.b16 %v242
      %v427 = vunpack.c.l.b16 %v243
      %v428 = vunpack.c.l.b16 %v244
      %v429 = vunpack.c.l.b16 %v245
      %v430 = vunpack.c.l.b16 %v246
      %v431 = vunpack.c.l.b16 %v247
      %v432 = vpack.c.b16 %v413, %v412
      %v433 = vpack.c.b16 %v415, %v414
      %v434 = vpack.c.b16 %v417, %v416
      %v435 = vpack.c.b16 %v419, %v418
      %v436 = vpack.c.b16 %v421, %v420
      %v437 = vpack.c.b16 %v423, %v422
      %v438 = vpack.c.b16 %v425, %v424
      %v439 = vpack.c.b16 %v427, %v426
      %v440 = vpack.c.b16 %v429, %v428
      %v441 = vpack.c.b16 %v431, %v430
      %vm452 = vcmask 261120
      %v454 = vsel %vm452, %v345, 0
      %v457 = vsel %vm452, %v347, 0
      %v460 = vsel %vm452, %v349, 0
      %v463 = vsel %vm452, %v351, 0
      %v466 = vsel %vm452, %v353, 0
      %v469 = vsel %vm452, %v355, 0
      %v472 = vsel %vm452, %v357, 0
      %v475 = vsel %vm452, %v359, 0
      %v478 = vsel %vm452, %v361, 0
      %v481 = vsel %vm452, %v363, 0
      %v484 = vsel %vm452, %v365, 0
      %v487 = vsel %vm452, %v367, 0
      %v490 = vsel %vm452, %v369, 0
      %v493 = vsel %vm452, %v371, 0
      %v496 = vsel %vm452, %v373, 0
      %v499 = vsel %vm452, %v375, 0
      %501 = vmatprep.subr.bf16.mxu0 0
      %502 = vmatpush1.bf16.msra.mxu0 %v432
      %503 = vmatprep.subr.bf16.mxu0 0
      %504 = vmatpush1.bf16.msra.mxu0 %v433
      %505 = vmatprep.subr.bf16.mxu0 0
      %506 = vmatpush1.bf16.msra.mxu0 %v434
      %507 = vmatprep.subr.bf16.mxu0 0
      %508 = vmatpush1.bf16.msra.mxu0 %v435
      %509 = vmatprep.subr.bf16.mxu0 0
      %510 = vmatpush1.bf16.msra.mxu0 %v436
      %511 = vmatprep.subr.bf16.mxu0 0
      %512 = vmatpush1.bf16.msra.mxu0 %v437
      %513 = vmatprep.subr.bf16.mxu0 0
      %514 = vmatpush1.bf16.msra.mxu0 %v438
      %515 = vmatprep.subr.bf16.mxu0 0
      %516 = vmatpush1.bf16.msra.mxu0 %v439
      %517 = vmatprep.subr.bf16.mxu0 0
      %518 = vmatpush1.bf16.msra.mxu0 %v440
      %519 = vmatprep.subr.bf16.mxu0 0
      %520 = vmatpush1.bf16.msra.mxu0 %v441
      %521 = vmatprep.subr.bf16.mxu0 0
      %522 = vmatpush1.bf16.msra.mxu0 0
      %523 = vmatprep.subr.bf16.mxu0 0
      %524 = vmatpush1.bf16.msra.mxu0 0
      %525 = vmatprep.subr.bf16.mxu0 0
      %526 = vmatpush1.bf16.msra.mxu0 0
      %527 = vmatprep.subr.bf16.mxu0 0
      %528 = vmatpush1.bf16.msra.mxu0 0
      %529 = vmatprep.subr.bf16.mxu0 0
      %530 = vmatpush1.bf16.msra.mxu0 0
      %531 = vmatprep.subr.bf16.mxu0 0
      %532 = vmatpush1.bf16.msra.mxu0 0
      %533 = vmatprep.mubr.bf16.mxu0 %v454
      %534 = vmatmul.mubr.bf16.gmra.mrb[0].mxu0 %v344
      %v535 = vpop.f32.mrb[0].mxu0
      %v536 = vadd.f32 0.0, %v535
      %v537 = vpop.f32.mrb[0].mxu0
      %v538 = vpop.f32.mrb[0].mxu0
      %v539 = vadd.f32 0.0, %v538
      %v540 = vpop.f32.mrb[0].mxu0
      %541 = vmatprep.mubr.bf16.mxu0 %v457
      %542 = vmatmul.mubr.bf16.gmra.mrb[0].mxu0 %v346
      %v543 = vpop.f32.mrb[0].mxu0
      %v544 = vadd.f32 0.0, %v543
      %v545 = vpop.f32.mrb[0].mxu0
      %v546 = vpop.f32.mrb[0].mxu0
      %v547 = vadd.f32 0.0, %v546
      %v548 = vpop.f32.mrb[0].mxu0
      %549 = vmatprep.mubr.bf16.mxu0 %v460
      %550 = vmatmul.mubr.bf16.gmra.mrb[0].mxu0 %v348
      %v551 = vpop.f32.mrb[0].mxu0
      %v552 = vadd.f32 0.0, %v551
      %v553 = vpop.f32.mrb[0].mxu0
      %v554 = vpop.f32.mrb[0].mxu0
      %v555 = vadd.f32 0.0, %v554
      %v556 = vpop.f32.mrb[0].mxu0
      %557 = vmatprep.mubr.bf16.mxu0 %v463
      %558 = vmatmul.mubr.bf16.gmra.mrb[0].mxu0 %v350
      %v559 = vpop.f32.mrb[0].mxu0
      %v560 = vadd.f32 0.0, %v559
      %v561 = vpop.f32.mrb[0].mxu0
      %v562 = vpop.f32.mrb[0].mxu0
      %v563 = vadd.f32 0.0, %v562
      %v564 = vpop.f32.mrb[0].mxu0
      %565 = vmatprep.mubr.bf16.mxu0 %v466
      %566 = vmatmul.mubr.bf16.gmra.mrb[0].mxu0 %v352
      %v567 = vpop.f32.mrb[0].mxu0
      %v568 = vadd.f32 0.0, %v567
      %v569 = vpop.f32.mrb[0].mxu0
      %v570 = vpop.f32.mrb[0].mxu0
      %v571 = vadd.f32 0.0, %v570
      %v572 = vpop.f32.mrb[0].mxu0
      %573 = vmatprep.mubr.bf16.mxu0 %v469
      %574 = vmatmul.mubr.bf16.gmra.mrb[0].mxu0 %v354
      %v575 = vpop.f32.mrb[0].mxu0
      %v576 = vadd.f32 0.0, %v575
      %v577 = vpop.f32.mrb[0].mxu0
      %v578 = vpop.f32.mrb[0].mxu0
      %v579 = vadd.f32 0.0, %v578
      %v580 = vpop.f32.mrb[0].mxu0
      %581 = vmatprep.mubr.bf16.mxu0 %v472
      %582 = vmatmul.mubr.bf16.gmra.mrb[0].mxu0 %v356
      %v583 = vpop.f32.mrb[0].mxu0
      %v584 = vadd.f32 0.0, %v583
      %v585 = vpop.f32.mrb[0].mxu0
      %v586 = vpop.f32.mrb[0].mxu0
      %v587 = vadd.f32 0.0, %v586
      %v588 = vpop.f32.mrb[0].mxu0
      %589 = vmatprep.mubr.bf16.mxu0 %v475
      %590 = vmatmul.mubr.bf16.gmra.mrb[0].mxu0 %v358
      %v591 = vpop.f32.mrb[0].mxu0
      %v592 = vadd.f32 0.0, %v591
      %v593 = vpop.f32.mrb[0].mxu0
      %v594 = vpop.f32.mrb[0].mxu0
      %v595 = vadd.f32 0.0, %v594
      %v596 = vpop.f32.mrb[0].mxu0
      %597 = vmatprep.mubr.bf16.mxu0 %v478
      %598 = vmatmul.mubr.bf16.gmra.mrb[0].mxu0 %v360
      %v599 = vpop.f32.mrb[0].mxu0
      %v600 = vadd.f32 0.0, %v599
      %v601 = vpop.f32.mrb[0].mxu0
      %v602 = vpop.f32.mrb[0].mxu0
      %v603 = vadd.f32 0.0, %v602
      %v604 = vpop.f32.mrb[0].mxu0
      %605 = vmatprep.mubr.bf16.mxu0 %v481
      %606 = vmatmul.mubr.bf16.gmra.mrb[0].mxu0 %v362
      %v607 = vpop.f32.mrb[0].mxu0
      %v608 = vadd.f32 0.0, %v607
      %v609 = vpop.f32.mrb[0].mxu0
      %v610 = vpop.f32.mrb[0].mxu0
      %v611 = vadd.f32 0.0, %v610
      %v612 = vpop.f32.mrb[0].mxu0
      %613 = vmatprep.mubr.bf16.mxu0 %v484
      %614 = vmatmul.mubr.bf16.gmra.mrb[0].mxu0 %v364
      %v615 = vpop.f32.mrb[0].mxu0
      %v616 = vadd.f32 0.0, %v615
      %v617 = vpop.f32.mrb[0].mxu0
      %v618 = vpop.f32.mrb[0].mxu0
      %v619 = vadd.f32 0.0, %v618
      %v620 = vpop.f32.mrb[0].mxu0
      %621 = vmatprep.mubr.bf16.mxu0 %v487
      %622 = vmatmul.mubr.bf16.gmra.mrb[0].mxu0 %v366
      %v623 = vpop.f32.mrb[0].mxu0
      %v624 = vadd.f32 0.0, %v623
      %v625 = vpop.f32.mrb[0].mxu0
      %v626 = vpop.f32.mrb[0].mxu0
      %v627 = vadd.f32 0.0, %v626
      %v628 = vpop.f32.mrb[0].mxu0
      %629 = vmatprep.mubr.bf16.mxu0 %v490
      %630 = vmatmul.mubr.bf16.gmra.mrb[0].mxu0 %v368
      %v631 = vpop.f32.mrb[0].mxu0
      %v632 = vadd.f32 0.0, %v631
      %v633 = vpop.f32.mrb[0].mxu0
      %v634 = vpop.f32.mrb[0].mxu0
      %v635 = vadd.f32 0.0, %v634
      %v636 = vpop.f32.mrb[0].mxu0
      %637 = vmatprep.mubr.bf16.mxu0 %v493
      %638 = vmatmul.mubr.bf16.gmra.mrb[0].mxu0 %v370
      %v639 = vpop.f32.mrb[0].mxu0
      %v640 = vadd.f32 0.0, %v639
      %v641 = vpop.f32.mrb[0].mxu0
      %v642 = vpop.f32.mrb[0].mxu0
      %v643 = vadd.f32 0.0, %v642
      %v644 = vpop.f32.mrb[0].mxu0
      %645 = vmatprep.mubr.bf16.mxu0 %v496
      %646 = vmatmul.mubr.bf16.gmra.mrb[0].mxu0 %v372
      %v647 = vpop.f32.mrb[0].mxu0
      %v648 = vadd.f32 0.0, %v647
      %v649 = vpop.f32.mrb[0].mxu0
      %v650 = vpop.f32.mrb[0].mxu0
      %v651 = vadd.f32 0.0, %v650
      %v652 = vpop.f32.mrb[0].mxu0
      %653 = vmatprep.mubr.bf16.mxu0 %v499
      %654 = vmatmul.mubr.bf16.gmra.mrb[0].mxu0 %v374
      %v655 = vpop.f32.mrb[0].mxu0
      %v656 = vadd.f32 0.0, %v655
      %v657 = vpop.f32.mrb[0].mxu0
      %v658 = vpop.f32.mrb[0].mxu0
      %v659 = vadd.f32 0.0, %v658
      %v660 = vpop.f32.mrb[0].mxu0
      %661 = vdwg.mxu0
      %v664 = vunpack.c.l.b16 %v173
      %v665 = vunpack.c.h.b16 %v173
      %v666 = vunpack.c.l.b16 %v174
      %v667 = vunpack.c.h.b16 %v174
      %v668 = vpack.c.b16 %v666, %v664
      %v669 = vpack.c.b16 %v667, %v665
      %v691 = vunpack.c.l.b16 %v205
      %v692 = vunpack.c.l.b16 %v206
      %v693 = vunpack.c.l.b16 %v207
      %v694 = vunpack.c.l.b16 %v208
      %v695 = vunpack.c.l.b16 %v209
      %v696 = vunpack.c.l.b16 %v210
      %v697 = vunpack.c.l.b16 %v211
      %v698 = vunpack.c.l.b16 %v212
      %v699 = vunpack.c.l.b16 %v213
      %v700 = vunpack.c.l.b16 %v214
      %v701 = vunpack.c.l.b16 %v215
      %v702 = vunpack.c.l.b16 %v216
      %v703 = vunpack.c.l.b16 %v217
      %v704 = vunpack.c.l.b16 %v218
      %v705 = vunpack.c.l.b16 %v219
      %v706 = vunpack.c.l.b16 %v220
      %v707 = vunpack.c.l.b16 %v221
      %v708 = vunpack.c.l.b16 %v222
      %v709 = vunpack.c.l.b16 %v223
      %v710 = vunpack.c.l.b16 %v224
      %v711 = vpack.c.b16 %v692, %v691
      %v712 = vpack.c.b16 %v694, %v693
      %v713 = vpack.c.b16 %v696, %v695
      %v714 = vpack.c.b16 %v698, %v697
      %v715 = vpack.c.b16 %v700, %v699
      %v716 = vpack.c.b16 %v702, %v701
      %v717 = vpack.c.b16 %v704, %v703
      %v718 = vpack.c.b16 %v706, %v705
      %v719 = vpack.c.b16 %v708, %v707
      %v720 = vpack.c.b16 %v710, %v709
      %v732 = vsel %vm452, %v669, 0
      %734 = vmatprep.subr.bf16.mxu0 0
      %735 = vmatpush1.bf16.msra.mxu0 %v711
      %736 = vmatprep.subr.bf16.mxu0 0
      %737 = vmatpush1.bf16.msra.mxu0 %v712
      %738 = vmatprep.subr.bf16.mxu0 0
      %739 = vmatpush1.bf16.msra.mxu0 %v713
      %740 = vmatprep.subr.bf16.mxu0 0
      %741 = vmatpush1.bf16.msra.mxu0 %v714
      %742 = vmatprep.subr.bf16.mxu0 0
      %743 = vmatpush1.bf16.msra.mxu0 %v715
      %744 = vmatprep.subr.bf16.mxu0 0
      %745 = vmatpush1.bf16.msra.mxu0 %v716
      %746 = vmatprep.subr.bf16.mxu0 0
      %747 = vmatpush1.bf16.msra.mxu0 %v717
      %748 = vmatprep.subr.bf16.mxu0 0
      %749 = vmatpush1.bf16.msra.mxu0 %v718
      %750 = vmatprep.subr.bf16.mxu0 0
      %751 = vmatpush1.bf16.msra.mxu0 %v719
      %752 = vmatprep.subr.bf16.mxu0 0
      %753 = vmatpush1.bf16.msra.mxu0 %v720
      %754 = vmatprep.subr.bf16.mxu0 0
      %755 = vmatpush1.bf16.msra.mxu0 0
      %756 = vmatprep.subr.bf16.mxu0 0
      %757 = vmatpush1.bf16.msra.mxu0 0
      %758 = vmatprep.subr.bf16.mxu0 0
      %759 = vmatpush1.bf16.msra.mxu0 0
      %760 = vmatprep.subr.bf16.mxu0 0
      %761 = vmatpush1.bf16.msra.mxu0 0
      %762 = vmatprep.subr.bf16.mxu0 0
      %763 = vmatpush1.bf16.msra.mxu0 0
      %764 = vmatprep.subr.bf16.mxu0 0
      %765 = vmatpush1.bf16.msra.mxu0 0
      %766 = vmatprep.mubr.bf16.mxu0 %v732
      %767 = vmatmul.mubr.bf16.gmra.mrb[0].mxu0 %v668
      %v768 = vpop.f32.mrb[0].mxu0
      %v769 = vadd.f32 %v536, %v768
      %v770 = vpop.f32.mrb[0].mxu0
      %v771 = vpop.f32.mrb[0].mxu0
      %v772 = vadd.f32 %v539, %v771
      %v773 = vpop.f32.mrb[0].mxu0
      %774 = vmatprep.mubr.bf16.mxu0 %v454
      %775 = vmatmul.mubr.bf16.gmra.mrb[0].mxu0 %v344
      %v776 = vpop.f32.mrb[0].mxu0
      %v777 = vadd.f32 %v544, %v776
      %v778 = vpop.f32.mrb[0].mxu0
      %v779 = vpop.f32.mrb[0].mxu0
      %v780 = vadd.f32 %v547, %v779
      %v781 = vpop.f32.mrb[0].mxu0
      %782 = vmatprep.mubr.bf16.mxu0 %v457
      %783 = vmatmul.mubr.bf16.gmra.mrb[0].mxu0 %v346
      %v784 = vpop.f32.mrb[0].mxu0
      %v785 = vadd.f32 %v552, %v784
      %v786 = vpop.f32.mrb[0].mxu0
      %v787 = vpop.f32.mrb[0].mxu0
      %v788 = vadd.f32 %v555, %v787
      %v789 = vpop.f32.mrb[0].mxu0
      %790 = vmatprep.mubr.bf16.mxu0 %v460
      %791 = vmatmul.mubr.bf16.gmra.mrb[0].mxu0 %v348
      %v792 = vpop.f32.mrb[0].mxu0
      %v793 = vadd.f32 %v560, %v792
      %v794 = vpop.f32.mrb[0].mxu0
      %v795 = vpop.f32.mrb[0].mxu0
      %v796 = vadd.f32 %v563, %v795
      %v797 = vpop.f32.mrb[0].mxu0
      %798 = vmatprep.mubr.bf16.mxu0 %v463
      %799 = vmatmul.mubr.bf16.gmra.mrb[0].mxu0 %v350
      %v800 = vpop.f32.mrb[0].mxu0
      %v801 = vadd.f32 %v568, %v800
      %v802 = vpop.f32.mrb[0].mxu0
      %v803 = vpop.f32.mrb[0].mxu0
      %v804 = vadd.f32 %v571, %v803
      %v805 = vpop.f32.mrb[0].mxu0
      %806 = vmatprep.mubr.bf16.mxu0 %v466
      %807 = vmatmul.mubr.bf16.gmra.mrb[0].mxu0 %v352
      %v808 = vpop.f32.mrb[0].mxu0
      %v809 = vadd.f32 %v576, %v808
      %v810 = vpop.f32.mrb[0].mxu0
      %v811 = vpop.f32.mrb[0].mxu0
      %v812 = vadd.f32 %v579, %v811
      %v813 = vpop.f32.mrb[0].mxu0
      %814 = vmatprep.mubr.bf16.mxu0 %v469
      %815 = vmatmul.mubr.bf16.gmra.mrb[0].mxu0 %v354
      %v816 = vpop.f32.mrb[0].mxu0
      %v817 = vadd.f32 %v584, %v816
      %v818 = vpop.f32.mrb[0].mxu0
      %v819 = vpop.f32.mrb[0].mxu0
      %v820 = vadd.f32 %v587, %v819
      %v821 = vpop.f32.mrb[0].mxu0
      %822 = vmatprep.mubr.bf16.mxu0 %v472
      %823 = vmatmul.mubr.bf16.gmra.mrb[0].mxu0 %v356
      %v824 = vpop.f32.mrb[0].mxu0
      %v825 = vadd.f32 %v592, %v824
      %v826 = vpop.f32.mrb[0].mxu0
      %v827 = vpop.f32.mrb[0].mxu0
      %v828 = vadd.f32 %v595, %v827
      %v829 = vpop.f32.mrb[0].mxu0
      %830 = vmatprep.mubr.bf16.mxu0 %v475
      %831 = vmatmul.mubr.bf16.gmra.mrb[0].mxu0 %v358
      %v832 = vpop.f32.mrb[0].mxu0
      %v833 = vadd.f32 %v600, %v832
      %v834 = vpop.f32.mrb[0].mxu0
      %v835 = vpop.f32.mrb[0].mxu0
      %v836 = vadd.f32 %v603, %v835
      %v837 = vpop.f32.mrb[0].mxu0
      %838 = vmatprep.mubr.bf16.mxu0 %v478
      %839 = vmatmul.mubr.bf16.gmra.mrb[0].mxu0 %v360
      %v840 = vpop.f32.mrb[0].mxu0
      %v841 = vadd.f32 %v608, %v840
      %v842 = vpop.f32.mrb[0].mxu0
      %v843 = vpop.f32.mrb[0].mxu0
      %v844 = vadd.f32 %v611, %v843
      %v845 = vpop.f32.mrb[0].mxu0
      %846 = vmatprep.mubr.bf16.mxu0 %v481
      %847 = vmatmul.mubr.bf16.gmra.mrb[0].mxu0 %v362
      %v848 = vpop.f32.mrb[0].mxu0
      %v849 = vadd.f32 %v616, %v848
      %v850 = vpop.f32.mrb[0].mxu0
      %v851 = vpop.f32.mrb[0].mxu0
      %v852 = vadd.f32 %v619, %v851
      %v853 = vpop.f32.mrb[0].mxu0
      %854 = vmatprep.mubr.bf16.mxu0 %v484
      %855 = vmatmul.mubr.bf16.gmra.mrb[0].mxu0 %v364
      %v856 = vpop.f32.mrb[0].mxu0
      %v857 = vadd.f32 %v624, %v856
      %v858 = vpop.f32.mrb[0].mxu0
      %v859 = vpop.f32.mrb[0].mxu0
      %v860 = vadd.f32 %v627, %v859
      %v861 = vpop.f32.mrb[0].mxu0
      %862 = vmatprep.mubr.bf16.mxu0 %v487
      %863 = vmatmul.mubr.bf16.gmra.mrb[0].mxu0 %v366
      %v864 = vpop.f32.mrb[0].mxu0
      %v865 = vadd.f32 %v632, %v864
      %v866 = vpop.f32.mrb[0].mxu0
      %v867 = vpop.f32.mrb[0].mxu0
      %v868 = vadd.f32 %v635, %v867
      %v869 = vpop.f32.mrb[0].mxu0
      %870 = vmatprep.mubr.bf16.mxu0 %v490
      %871 = vmatmul.mubr.bf16.gmra.mrb[0].mxu0 %v368
      %v872 = vpop.f32.mrb[0].mxu0
      %v873 = vadd.f32 %v640, %v872
      %v874 = vpop.f32.mrb[0].mxu0
      %v875 = vpop.f32.mrb[0].mxu0
      %v876 = vadd.f32 %v643, %v875
      %v877 = vpop.f32.mrb[0].mxu0
      %878 = vmatprep.mubr.bf16.mxu0 %v493
      %879 = vmatmul.mubr.bf16.gmra.mrb[0].mxu0 %v370
      %v880 = vpop.f32.mrb[0].mxu0
      %v881 = vadd.f32 %v648, %v880
      %v882 = vpop.f32.mrb[0].mxu0
      %v883 = vpop.f32.mrb[0].mxu0
      %v884 = vadd.f32 %v651, %v883
      %v885 = vpop.f32.mrb[0].mxu0
      %886 = vmatprep.mubr.bf16.mxu0 %v496
      %887 = vmatmul.mubr.bf16.gmra.mrb[0].mxu0 %v372
      %v888 = vpop.f32.mrb[0].mxu0
      %v889 = vadd.f32 %v656, %v888
      %v890 = vpop.f32.mrb[0].mxu0
      %v891 = vpop.f32.mrb[0].mxu0
      %v892 = vadd.f32 %v659, %v891
      %v893 = vpop.f32.mrb[0].mxu0
      %894 = vdwg.mxu0
      %v895 = vld [vmem:[%s165 + $0x20] sm:$0xff]
      %v896 = vld [vmem:[%s165 + $0x28] sm:$0xff]
      %v897 = vld [vmem:[%s165 + $0x30] sm:$0xff]
      %v898 = vld [vmem:[%s165 + $0x38] sm:$0xff]
      %v899 = vld [vmem:[%s165 + $0x40] sm:$0xff]
      %v900 = vld [vmem:[%s165 + $0x48] sm:$0xff]
      %v901 = vld [vmem:[%s165 + $0x50] sm:$0xff]
      %v902 = vld [vmem:[%s165 + $0x58] sm:$0xff]
      %v903 = vld [vmem:[%s165 + $0x60] sm:$0xff]
      %v904 = vld [vmem:[%s165 + $0x68] sm:$0xff]
      %v905 = vld [vmem:[%s165 + $0x70] sm:$0xff]
      %v906 = vld [vmem:[%s165 + $0x78] sm:$0xff]
      %v907 = vld [vmem:[%s165 + $0x80] sm:$0xff]
      %v908 = vld [vmem:[%s165 + $0x88] sm:$0xff]
      %v909 = vld [vmem:[%s165 + $0x90] sm:$0xff]
      %v910 = vld [vmem:[%s165 + $0x98] sm:$0xff]
      %v911 = vld [vmem:[%s165 + $0xa0] sm:$0xff]
      %v912 = vld [vmem:[%s165 + $0xa8] sm:$0xff]
      %v913 = vld [vmem:[%s165 + $0xb0] sm:$0xff]
      %v914 = vld [vmem:[%s165 + $0xb8] sm:$0xff]
      %v915 = vld [vmem:[%s165 + $0xc0] sm:$0xff]
      %v916 = vld [vmem:[%s165 + $0xc8] sm:$0xff]
      %v917 = vld [vmem:[%s165 + $0xd0] sm:$0xff]
      %v918 = vld [vmem:[%s165 + $0xd8] sm:$0xff]
      %v919 = vld [vmem:[%s165 + $0xe0] sm:$0xff]
      %v920 = vld [vmem:[%s165 + $0xe8] sm:$0xff]
      %v921 = vld [vmem:[%s165 + $0xf0] sm:$0xff]
      %v922 = vld [vmem:[%s165 + $0xf8] sm:$0xff]
      %v923 = vld [vmem:[%s165 + $0x100] sm:$0xff]
      %v924 = vld [vmem:[%s165 + $0x108] sm:$0xff]
      %v925 = vld [vmem:[%s165 + $0x110] sm:$0xff]
      %v926 = vld [vmem:[%s165 + $0x118] sm:$0xff]
      %s927 = scalar_lea.vmem %s1, 160
      %v928 = vld [vmem:[%s927] sm:$0xf]
      %v929 = vld [vmem:[%s927 + $0x4] sm:$0xf]
      %v930 = vld [vmem:[%s927 + $0x8] sm:$0xf]
      %v931 = vld [vmem:[%s927 + $0xc] sm:$0xf]
      %v932 = vld [vmem:[%s927 + $0x10] sm:$0xf]
      %v933 = vld [vmem:[%s927 + $0x14] sm:$0xf]
      %v934 = vld [vmem:[%s927 + $0x18] sm:$0xf]
      %v935 = vld [vmem:[%s927 + $0x1c] sm:$0xf]
      %v936 = vld [vmem:[%s927 + $0x20] sm:$0xf]
      %v937 = vld [vmem:[%s927 + $0x24] sm:$0xf]
      %v938 = vld [vmem:[%s927 + $0x28] sm:$0xf]
      %v939 = vld [vmem:[%s927 + $0x2c] sm:$0xf]
      %v940 = vld [vmem:[%s927 + $0x30] sm:$0xf]
      %v941 = vld [vmem:[%s927 + $0x34] sm:$0xf]
      %v942 = vld [vmem:[%s927 + $0x38] sm:$0xf]
      %v943 = vld [vmem:[%s927 + $0x3c] sm:$0xf]
      %v944 = vld [vmem:[%s927 + $0x40] sm:$0xf]
      %v945 = vld [vmem:[%s927 + $0x44] sm:$0xf]
      %v946 = vld [vmem:[%s927 + $0x48] sm:$0xf]
      %v947 = vld [vmem:[%s927 + $0x4c] sm:$0xf]
      %v980 = vunpack.c.l.b16 %v895
      %v981 = vunpack.c.h.b16 %v895
      %v982 = vunpack.c.l.b16 %v896
      %v983 = vunpack.c.h.b16 %v896
      %v984 = vunpack.c.l.b16 %v897
      %v985 = vunpack.c.h.b16 %v897
      %v986 = vunpack.c.l.b16 %v898
      %v987 = vunpack.c.h.b16 %v898
      %v988 = vunpack.c.l.b16 %v899
      %v989 = vunpack.c.h.b16 %v899
      %v990 = vunpack.c.l.b16 %v900
      %v991 = vunpack.c.h.b16 %v900
      %v992 = vunpack.c.l.b16 %v901
      %v993 = vunpack.c.h.b16 %v901
      %v994 = vunpack.c.l.b16 %v902
      %v995 = vunpack.c.h.b16 %v902
      %v996 = vunpack.c.l.b16 %v903
      %v997 = vunpack.c.h.b16 %v903
      %v998 = vunpack.c.l.b16 %v904
      %v999 = vunpack.c.h.b16 %v904
      %v1000 = vunpack.c.l.b16 %v905
      %v1001 = vunpack.c.h.b16 %v905
      %v1002 = vunpack.c.l.b16 %v906
      %v1003 = vunpack.c.h.b16 %v906
      %v1004 = vunpack.c.l.b16 %v907
      %v1005 = vunpack.c.h.b16 %v907
      %v1006 = vunpack.c.l.b16 %v908
      %v1007 = vunpack.c.h.b16 %v908
      %v1008 = vunpack.c.l.b16 %v909
      %v1009 = vunpack.c.h.b16 %v909
      %v1010 = vunpack.c.l.b16 %v910
      %v1011 = vunpack.c.h.b16 %v910
      %v1012 = vunpack.c.l.b16 %v911
      %v1013 = vunpack.c.h.b16 %v911
      %v1014 = vunpack.c.l.b16 %v912
      %v1015 = vunpack.c.h.b16 %v912
      %v1016 = vunpack.c.l.b16 %v913
      %v1017 = vunpack.c.h.b16 %v913
      %v1018 = vunpack.c.l.b16 %v914
      %v1019 = vunpack.c.h.b16 %v914
      %v1020 = vunpack.c.l.b16 %v915
      %v1021 = vunpack.c.h.b16 %v915
      %v1022 = vunpack.c.l.b16 %v916
      %v1023 = vunpack.c.h.b16 %v916
      %v1024 = vunpack.c.l.b16 %v917
      %v1025 = vunpack.c.h.b16 %v917
      %v1026 = vunpack.c.l.b16 %v918
      %v1027 = vunpack.c.h.b16 %v918
      %v1028 = vunpack.c.l.b16 %v919
      %v1029 = vunpack.c.h.b16 %v919
      %v1030 = vunpack.c.l.b16 %v920
      %v1031 = vunpack.c.h.b16 %v920
      %v1032 = vunpack.c.l.b16 %v921
      %v1033 = vunpack.c.h.b16 %v921
      %v1034 = vunpack.c.l.b16 %v922
      %v1035 = vunpack.c.h.b16 %v922
      %v1036 = vunpack.c.l.b16 %v923
      %v1037 = vunpack.c.h.b16 %v923
      %v1038 = vunpack.c.l.b16 %v924
      %v1039 = vunpack.c.h.b16 %v924
      %v1040 = vunpack.c.l.b16 %v925
      %v1041 = vunpack.c.h.b16 %v925
      %v1042 = vunpack.c.l.b16 %v926
      %v1043 = vunpack.c.h.b16 %v926
      %v1044 = vpack.c.b16 %v982, %v980
      %v1045 = vpack.c.b16 %v983, %v981
      %v1046 = vpack.c.b16 %v986, %v984
      %v1047 = vpack.c.b16 %v987, %v985
      %v1048 = vpack.c.b16 %v990, %v988
      %v1049 = vpack.c.b16 %v991, %v989
      %v1050 = vpack.c.b16 %v994, %v992
      %v1051 = vpack.c.b16 %v995, %v993
      %v1052 = vpack.c.b16 %v998, %v996
      %v1053 = vpack.c.b16 %v999, %v997
      %v1054 = vpack.c.b16 %v1002, %v1000
      %v1055 = vpack.c.b16 %v1003, %v1001
      %v1056 = vpack.c.b16 %v1006, %v1004
      %v1057 = vpack.c.b16 %v1007, %v1005
      %v1058 = vpack.c.b16 %v1010, %v1008
      %v1059 = vpack.c.b16 %v1011, %v1009
      %v1060 = vpack.c.b16 %v1014, %v1012
      %v1061 = vpack.c.b16 %v1015, %v1013
      %v1062 = vpack.c.b16 %v1018, %v1016
      %v1063 = vpack.c.b16 %v1019, %v1017
      %v1064 = vpack.c.b16 %v1022, %v1020
      %v1065 = vpack.c.b16 %v1023, %v1021
      %v1066 = vpack.c.b16 %v1026, %v1024
      %v1067 = vpack.c.b16 %v1027, %v1025
      %v1068 = vpack.c.b16 %v1030, %v1028
      %v1069 = vpack.c.b16 %v1031, %v1029
      %v1070 = vpack.c.b16 %v1034, %v1032
      %v1071 = vpack.c.b16 %v1035, %v1033
      %v1072 = vpack.c.b16 %v1038, %v1036
      %v1073 = vpack.c.b16 %v1039, %v1037
      %v1074 = vpack.c.b16 %v1042, %v1040
      %v1075 = vpack.c.b16 %v1043, %v1041
      %v1112 = vunpack.c.l.b16 %v928
      %v1113 = vunpack.c.l.b16 %v929
      %v1114 = vunpack.c.l.b16 %v930
      %v1115 = vunpack.c.l.b16 %v931
      %v1116 = vunpack.c.l.b16 %v932
      %v1117 = vunpack.c.l.b16 %v933
      %v1118 = vunpack.c.l.b16 %v934
      %v1119 = vunpack.c.l.b16 %v935
      %v1120 = vunpack.c.l.b16 %v936
      %v1121 = vunpack.c.l.b16 %v937
      %v1122 = vunpack.c.l.b16 %v938
      %v1123 = vunpack.c.l.b16 %v939
      %v1124 = vunpack.c.l.b16 %v940
      %v1125 = vunpack.c.l.b16 %v941
      %v1126 = vunpack.c.l.b16 %v942
      %v1127 = vunpack.c.l.b16 %v943
      %v1128 = vunpack.c.l.b16 %v944
      %v1129 = vunpack.c.l.b16 %v945
      %v1130 = vunpack.c.l.b16 %v946
      %v1131 = vunpack.c.l.b16 %v947
      %v1132 = vpack.c.b16 %v1113, %v1112
      %v1133 = vpack.c.b16 %v1115, %v1114
      %v1134 = vpack.c.b16 %v1117, %v1116
      %v1135 = vpack.c.b16 %v1119, %v1118
      %v1136 = vpack.c.b16 %v1121, %v1120
      %v1137 = vpack.c.b16 %v1123, %v1122
      %v1138 = vpack.c.b16 %v1125, %v1124
      %v1139 = vpack.c.b16 %v1127, %v1126
      %v1140 = vpack.c.b16 %v1129, %v1128
      %v1141 = vpack.c.b16 %v1131, %v1130
      %v1153 = vsel %vm452, %v1045, 0
      %v1156 = vsel %vm452, %v1047, 0
      %v1159 = vsel %vm452, %v1049, 0
      %v1162 = vsel %vm452, %v1051, 0
      %v1165 = vsel %vm452, %v1053, 0
      %v1168 = vsel %vm452, %v1055, 0
      %v1171 = vsel %vm452, %v1057, 0
      %v1174 = vsel %vm452, %v1059, 0
      %v1177 = vsel %vm452, %v1061, 0
      %v1180 = vsel %vm452, %v1063, 0
      %v1183 = vsel %vm452, %v1065, 0
      %v1186 = vsel %vm452, %v1067, 0
      %v1189 = vsel %vm452, %v1069, 0
      %v1192 = vsel %vm452, %v1071, 0
      %v1195 = vsel %vm452, %v1073, 0
      %v1198 = vsel %vm452, %v1075, 0
      %1200 = vmatprep.subr.bf16.mxu0 0
      %1201 = vmatpush1.bf16.msra.mxu0 %v1132
      %1202 = vmatprep.subr.bf16.mxu0 0
      %1203 = vmatpush1.bf16.msra.mxu0 %v1133
      %1204 = vmatprep.subr.bf16.mxu0 0
      %1205 = vmatpush1.bf16.msra.mxu0 %v1134
      %1206 = vmatprep.subr.bf16.mxu0 0
      %1207 = vmatpush1.bf16.msra.mxu0 %v1135
      %1208 = vmatprep.subr.bf16.mxu0 0
      %1209 = vmatpush1.bf16.msra.mxu0 %v1136
      %1210 = vmatprep.subr.bf16.mxu0 0
      %1211 = vmatpush1.bf16.msra.mxu0 %v1137
      %1212 = vmatprep.subr.bf16.mxu0 0
      %1213 = vmatpush1.bf16.msra.mxu0 %v1138
      %1214 = vmatprep.subr.bf16.mxu0 0
      %1215 = vmatpush1.bf16.msra.mxu0 %v1139
      %1216 = vmatprep.subr.bf16.mxu0 0
      %1217 = vmatpush1.bf16.msra.mxu0 %v1140
      %1218 = vmatprep.subr.bf16.mxu0 0
      %1219 = vmatpush1.bf16.msra.mxu0 %v1141
      %1220 = vmatprep.subr.bf16.mxu0 0
      %1221 = vmatpush1.bf16.msra.mxu0 0
      %1222 = vmatprep.subr.bf16.mxu0 0
      %1223 = vmatpush1.bf16.msra.mxu0 0
      %1224 = vmatprep.subr.bf16.mxu0 0
      %1225 = vmatpush1.bf16.msra.mxu0 0
      %1226 = vmatprep.subr.bf16.mxu0 0
      %1227 = vmatpush1.bf16.msra.mxu0 0
      %1228 = vmatprep.subr.bf16.mxu0 0
      %1229 = vmatpush1.bf16.msra.mxu0 0
      %1230 = vmatprep.subr.bf16.mxu0 0
      %1231 = vmatpush1.bf16.msra.mxu0 0
      %1232 = vmatprep.mubr.bf16.mxu0 %v1153
      %1233 = vmatmul.mubr.bf16.gmra.mrb[0].mxu0 %v1044
      %v1234 = vpop.f32.mrb[0].mxu0
      %v1235 = vadd.f32 0.0, %v1234
      %v1236 = vpop.f32.mrb[0].mxu0
      %v1237 = vpop.f32.mrb[0].mxu0
      %v1238 = vadd.f32 0.0, %v1237
      %v1239 = vpop.f32.mrb[0].mxu0
      %1240 = vmatprep.mubr.bf16.mxu0 %v1156
      %1241 = vmatmul.mubr.bf16.gmra.mrb[0].mxu0 %v1046
      %v1242 = vpop.f32.mrb[0].mxu0
      %v1243 = vadd.f32 0.0, %v1242
      %v1244 = vpop.f32.mrb[0].mxu0
      %v1245 = vpop.f32.mrb[0].mxu0
      %v1246 = vadd.f32 0.0, %v1245
      %v1247 = vpop.f32.mrb[0].mxu0
      %1248 = vmatprep.mubr.bf16.mxu0 %v1159
      %1249 = vmatmul.mubr.bf16.gmra.mrb[0].mxu0 %v1048
      %v1250 = vpop.f32.mrb[0].mxu0
      %v1251 = vadd.f32 0.0, %v1250
      %v1252 = vpop.f32.mrb[0].mxu0
      %v1253 = vpop.f32.mrb[0].mxu0
      %v1254 = vadd.f32 0.0, %v1253
      %v1255 = vpop.f32.mrb[0].mxu0
      %1256 = vmatprep.mubr.bf16.mxu0 %v1162
      %1257 = vmatmul.mubr.bf16.gmra.mrb[0].mxu0 %v1050
      %v1258 = vpop.f32.mrb[0].mxu0
      %v1259 = vadd.f32 0.0, %v1258
      %v1260 = vpop.f32.mrb[0].mxu0
      %v1261 = vpop.f32.mrb[0].mxu0
      %v1262 = vadd.f32 0.0, %v1261
      %v1263 = vpop.f32.mrb[0].mxu0
      %1264 = vmatprep.mubr.bf16.mxu0 %v1165
      %1265 = vmatmul.mubr.bf16.gmra.mrb[0].mxu0 %v1052
      %v1266 = vpop.f32.mrb[0].mxu0
      %v1267 = vadd.f32 0.0, %v1266
      %v1268 = vpop.f32.mrb[0].mxu0
      %v1269 = vpop.f32.mrb[0].mxu0
      %v1270 = vadd.f32 0.0, %v1269
      %v1271 = vpop.f32.mrb[0].mxu0
      %1272 = vmatprep.mubr.bf16.mxu0 %v1168
      %1273 = vmatmul.mubr.bf16.gmra.mrb[0].mxu0 %v1054
      %v1274 = vpop.f32.mrb[0].mxu0
      %v1275 = vadd.f32 0.0, %v1274
      %v1276 = vpop.f32.mrb[0].mxu0
      %v1277 = vpop.f32.mrb[0].mxu0
      %v1278 = vadd.f32 0.0, %v1277
      %v1279 = vpop.f32.mrb[0].mxu0
      %1280 = vmatprep.mubr.bf16.mxu0 %v1171
      %1281 = vmatmul.mubr.bf16.gmra.mrb[0].mxu0 %v1056
      %v1282 = vpop.f32.mrb[0].mxu0
      %v1283 = vadd.f32 0.0, %v1282
      %v1284 = vpop.f32.mrb[0].mxu0
      %v1285 = vpop.f32.mrb[0].mxu0
      %v1286 = vadd.f32 0.0, %v1285
      %v1287 = vpop.f32.mrb[0].mxu0
      %1288 = vmatprep.mubr.bf16.mxu0 %v1174
      %1289 = vmatmul.mubr.bf16.gmra.mrb[0].mxu0 %v1058
      %v1290 = vpop.f32.mrb[0].mxu0
      %v1291 = vadd.f32 0.0, %v1290
      %v1292 = vpop.f32.mrb[0].mxu0
      %v1293 = vpop.f32.mrb[0].mxu0
      %v1294 = vadd.f32 0.0, %v1293
      %v1295 = vpop.f32.mrb[0].mxu0
      %1296 = vmatprep.mubr.bf16.mxu0 %v1177
      %1297 = vmatmul.mubr.bf16.gmra.mrb[0].mxu0 %v1060
      %v1298 = vpop.f32.mrb[0].mxu0
      %v1299 = vadd.f32 0.0, %v1298
      %v1300 = vpop.f32.mrb[0].mxu0
      %v1301 = vpop.f32.mrb[0].mxu0
      %v1302 = vadd.f32 0.0, %v1301
      %v1303 = vpop.f32.mrb[0].mxu0
      %1304 = vmatprep.mubr.bf16.mxu0 %v1180
      %1305 = vmatmul.mubr.bf16.gmra.mrb[0].mxu0 %v1062
      %v1306 = vpop.f32.mrb[0].mxu0
      %v1307 = vadd.f32 0.0, %v1306
      %v1308 = vpop.f32.mrb[0].mxu0
      %v1309 = vpop.f32.mrb[0].mxu0
      %v1310 = vadd.f32 0.0, %v1309
      %v1311 = vpop.f32.mrb[0].mxu0
      %1312 = vmatprep.mubr.bf16.mxu0 %v1183
      %1313 = vmatmul.mubr.bf16.gmra.mrb[0].mxu0 %v1064
      %v1314 = vpop.f32.mrb[0].mxu0
      %v1315 = vadd.f32 0.0, %v1314
      %v1316 = vpop.f32.mrb[0].mxu0
      %v1317 = vpop.f32.mrb[0].mxu0
      %v1318 = vadd.f32 0.0, %v1317
      %v1319 = vpop.f32.mrb[0].mxu0
      %1320 = vmatprep.mubr.bf16.mxu0 %v1186
      %1321 = vmatmul.mubr.bf16.gmra.mrb[0].mxu0 %v1066
      %v1322 = vpop.f32.mrb[0].mxu0
      %v1323 = vadd.f32 0.0, %v1322
      %v1324 = vpop.f32.mrb[0].mxu0
      %v1325 = vpop.f32.mrb[0].mxu0
      %v1326 = vadd.f32 0.0, %v1325
      %v1327 = vpop.f32.mrb[0].mxu0
      %1328 = vmatprep.mubr.bf16.mxu0 %v1189
      %1329 = vmatmul.mubr.bf16.gmra.mrb[0].mxu0 %v1068
      %v1330 = vpop.f32.mrb[0].mxu0
      %v1331 = vadd.f32 0.0, %v1330
      %v1332 = vpop.f32.mrb[0].mxu0
      %v1333 = vpop.f32.mrb[0].mxu0
      %v1334 = vadd.f32 0.0, %v1333
      %v1335 = vpop.f32.mrb[0].mxu0
      %1336 = vmatprep.mubr.bf16.mxu0 %v1192
      %1337 = vmatmul.mubr.bf16.gmra.mrb[0].mxu0 %v1070
      %v1338 = vpop.f32.mrb[0].mxu0
      %v1339 = vadd.f32 0.0, %v1338
      %v1340 = vpop.f32.mrb[0].mxu0
      %v1341 = vpop.f32.mrb[0].mxu0
      %v1342 = vadd.f32 0.0, %v1341
      %v1343 = vpop.f32.mrb[0].mxu0
      %1344 = vmatprep.mubr.bf16.mxu0 %v1195
      %1345 = vmatmul.mubr.bf16.gmra.mrb[0].mxu0 %v1072
      %v1346 = vpop.f32.mrb[0].mxu0
      %v1347 = vadd.f32 0.0, %v1346
      %v1348 = vpop.f32.mrb[0].mxu0
      %v1349 = vpop.f32.mrb[0].mxu0
      %v1350 = vadd.f32 0.0, %v1349
      %v1351 = vpop.f32.mrb[0].mxu0
      %1352 = vmatprep.mubr.bf16.mxu0 %v1198
      %1353 = vmatmul.mubr.bf16.gmra.mrb[0].mxu0 %v1074
      %v1354 = vpop.f32.mrb[0].mxu0
      %v1355 = vadd.f32 0.0, %v1354
      %v1356 = vpop.f32.mrb[0].mxu0
      %v1357 = vpop.f32.mrb[0].mxu0
      %v1358 = vadd.f32 0.0, %v1357
      %v1359 = vpop.f32.mrb[0].mxu0
      %1360 = vdwg.mxu0
      %v1361 = vadd.f32 %v769, %v1235
      %v1362 = vadd.f32 %v772, %v1238
      %v1363 = vadd.f32 %v777, %v1243
      %v1364 = vadd.f32 %v780, %v1246
      %v1365 = vadd.f32 %v785, %v1251
      %v1366 = vadd.f32 %v788, %v1254
      %v1367 = vadd.f32 %v793, %v1259
      %v1368 = vadd.f32 %v796, %v1262
      %v1369 = vadd.f32 %v801, %v1267
      %v1370 = vadd.f32 %v804, %v1270
      %v1371 = vadd.f32 %v809, %v1275
      %v1372 = vadd.f32 %v812, %v1278
      %v1373 = vadd.f32 %v817, %v1283
      %v1374 = vadd.f32 %v820, %v1286
      %v1375 = vadd.f32 %v825, %v1291
      %v1376 = vadd.f32 %v828, %v1294
      %v1377 = vadd.f32 %v833, %v1299
      %v1378 = vadd.f32 %v836, %v1302
      %v1379 = vadd.f32 %v841, %v1307
      %v1380 = vadd.f32 %v844, %v1310
      %v1381 = vadd.f32 %v849, %v1315
      %v1382 = vadd.f32 %v852, %v1318
      %v1383 = vadd.f32 %v857, %v1323
      %v1384 = vadd.f32 %v860, %v1326
      %v1385 = vadd.f32 %v865, %v1331
      %v1386 = vadd.f32 %v868, %v1334
      %v1387 = vadd.f32 %v873, %v1339
      %v1388 = vadd.f32 %v876, %v1342
      %v1389 = vadd.f32 %v881, %v1347
      %v1390 = vadd.f32 %v884, %v1350
      %v1391 = vadd.f32 %v889, %v1355
      %v1392 = vadd.f32 %v892, %v1358
      %v1393 = vld [vmem:[%s165 + $0x30] sm:$0xff]
      %v1394 = vld [vmem:[%s165 + $0x38] sm:$0xff]
      %v1395 = vld [vmem:[%s165 + $0x40] sm:$0xff]
      %v1396 = vld [vmem:[%s165 + $0x48] sm:$0xff]
      %v1397 = vld [vmem:[%s165 + $0x50] sm:$0xff]
      %v1398 = vld [vmem:[%s165 + $0x58] sm:$0xff]
      %v1399 = vld [vmem:[%s165 + $0x60] sm:$0xff]
      %v1400 = vld [vmem:[%s165 + $0x68] sm:$0xff]
      %v1401 = vld [vmem:[%s165 + $0x70] sm:$0xff]
      %v1402 = vld [vmem:[%s165 + $0x78] sm:$0xff]
      %v1403 = vld [vmem:[%s165 + $0x80] sm:$0xff]
      %v1404 = vld [vmem:[%s165 + $0x88] sm:$0xff]
      %v1405 = vld [vmem:[%s165 + $0x90] sm:$0xff]
      %v1406 = vld [vmem:[%s165 + $0x98] sm:$0xff]
      %v1407 = vld [vmem:[%s165 + $0xa0] sm:$0xff]
      %v1408 = vld [vmem:[%s165 + $0xa8] sm:$0xff]
      %v1409 = vld [vmem:[%s165 + $0xb0] sm:$0xff]
      %v1410 = vld [vmem:[%s165 + $0xb8] sm:$0xff]
      %v1411 = vld [vmem:[%s165 + $0xc0] sm:$0xff]
      %v1412 = vld [vmem:[%s165 + $0xc8] sm:$0xff]
      %v1413 = vld [vmem:[%s165 + $0xd0] sm:$0xff]
      %v1414 = vld [vmem:[%s165 + $0xd8] sm:$0xff]
      %v1415 = vld [vmem:[%s165 + $0xe0] sm:$0xff]
      %v1416 = vld [vmem:[%s165 + $0xe8] sm:$0xff]
      %v1417 = vld [vmem:[%s165 + $0xf0] sm:$0xff]
      %v1418 = vld [vmem:[%s165 + $0xf8] sm:$0xff]
      %v1419 = vld [vmem:[%s165 + $0x100] sm:$0xff]
      %v1420 = vld [vmem:[%s165 + $0x108] sm:$0xff]
      %v1421 = vld [vmem:[%s165 + $0x110] sm:$0xff]
      %v1422 = vld [vmem:[%s165 + $0x118] sm:$0xff]
      %v1423 = vld [vmem:[%s165 + $0x120] sm:$0xff]
      %v1424 = vld [vmem:[%s165 + $0x128] sm:$0xff]
      %s1425 = scalar_lea.vmem %s1, 240
      %v1426 = vld [vmem:[%s1425] sm:$0xf]
      %v1427 = vld [vmem:[%s1425 + $0x4] sm:$0xf]
      %v1428 = vld [vmem:[%s1425 + $0x8] sm:$0xf]
      %v1429 = vld [vmem:[%s1425 + $0xc] sm:$0xf]
      %v1430 = vld [vmem:[%s1425 + $0x10] sm:$0xf]
      %v1431 = vld [vmem:[%s1425 + $0x14] sm:$0xf]
      %v1432 = vld [vmem:[%s1425 + $0x18] sm:$0xf]
      %v1433 = vld [vmem:[%s1425 + $0x1c] sm:$0xf]
      %v1434 = vld [vmem:[%s1425 + $0x20] sm:$0xf]
      %v1435 = vld [vmem:[%s1425 + $0x24] sm:$0xf]
      %v1436 = vld [vmem:[%s1425 + $0x28] sm:$0xf]
      %v1437 = vld [vmem:[%s1425 + $0x2c] sm:$0xf]
      %v1438 = vld [vmem:[%s1425 + $0x30] sm:$0xf]
      %v1439 = vld [vmem:[%s1425 + $0x34] sm:$0xf]
      %v1440 = vld [vmem:[%s1425 + $0x38] sm:$0xf]
      %v1441 = vld [vmem:[%s1425 + $0x3c] sm:$0xf]
      %v1442 = vld [vmem:[%s1425 + $0x40] sm:$0xf]
      %v1443 = vld [vmem:[%s1425 + $0x44] sm:$0xf]
      %v1444 = vld [vmem:[%s1425 + $0x48] sm:$0xf]
      %v1445 = vld [vmem:[%s1425 + $0x4c] sm:$0xf]
      %v1478 = vunpack.c.l.b16 %v1393
      %v1479 = vunpack.c.h.b16 %v1393
      %v1480 = vunpack.c.l.b16 %v1394
      %v1481 = vunpack.c.h.b16 %v1394
      %v1482 = vunpack.c.l.b16 %v1395
      %v1483 = vunpack.c.h.b16 %v1395
      %v1484 = vunpack.c.l.b16 %v1396
      %v1485 = vunpack.c.h.b16 %v1396
      %v1486 = vunpack.c.l.b16 %v1397
      %v1487 = vunpack.c.h.b16 %v1397
      %v1488 = vunpack.c.l.b16 %v1398
      %v1489 = vunpack.c.h.b16 %v1398
      %v1490 = vunpack.c.l.b16 %v1399
      %v1491 = vunpack.c.h.b16 %v1399
      %v1492 = vunpack.c.l.b16 %v1400
      %v1493 = vunpack.c.h.b16 %v1400
      %v1494 = vunpack.c.l.b16 %v1401
      %v1495 = vunpack.c.h.b16 %v1401
      %v1496 = vunpack.c.l.b16 %v1402
      %v1497 = vunpack.c.h.b16 %v1402
      %v1498 = vunpack.c.l.b16 %v1403
      %v1499 = vunpack.c.h.b16 %v1403
      %v1500 = vunpack.c.l.b16 %v1404
      %v1501 = vunpack.c.h.b16 %v1404
      %v1502 = vunpack.c.l.b16 %v1405
      %v1503 = vunpack.c.h.b16 %v1405
      %v1504 = vunpack.c.l.b16 %v1406
      %v1505 = vunpack.c.h.b16 %v1406
      %v1506 = vunpack.c.l.b16 %v1407
      %v1507 = vunpack.c.h.b16 %v1407
      %v1508 = vunpack.c.l.b16 %v1408
      %v1509 = vunpack.c.h.b16 %v1408
      %v1510 = vunpack.c.l.b16 %v1409
      %v1511 = vunpack.c.h.b16 %v1409
      %v1512 = vunpack.c.l.b16 %v1410
      %v1513 = vunpack.c.h.b16 %v1410
      %v1514 = vunpack.c.l.b16 %v1411
      %v1515 = vunpack.c.h.b16 %v1411
      %v1516 = vunpack.c.l.b16 %v1412
      %v1517 = vunpack.c.h.b16 %v1412
      %v1518 = vunpack.c.l.b16 %v1413
      %v1519 = vunpack.c.h.b16 %v1413
      %v1520 = vunpack.c.l.b16 %v1414
      %v1521 = vunpack.c.h.b16 %v1414
      %v1522 = vunpack.c.l.b16 %v1415
      %v1523 = vunpack.c.h.b16 %v1415
      %v1524 = vunpack.c.l.b16 %v1416
      %v1525 = vunpack.c.h.b16 %v1416
      %v1526 = vunpack.c.l.b16 %v1417
      %v1527 = vunpack.c.h.b16 %v1417
      %v1528 = vunpack.c.l.b16 %v1418
      %v1529 = vunpack.c.h.b16 %v1418
      %v1530 = vunpack.c.l.b16 %v1419
      %v1531 = vunpack.c.h.b16 %v1419
      %v1532 = vunpack.c.l.b16 %v1420
      %v1533 = vunpack.c.h.b16 %v1420
      %v1534 = vunpack.c.l.b16 %v1421
      %v1535 = vunpack.c.h.b16 %v1421
      %v1536 = vunpack.c.l.b16 %v1422
      %v1537 = vunpack.c.h.b16 %v1422
      %v1538 = vunpack.c.l.b16 %v1423
      %v1539 = vunpack.c.h.b16 %v1423
      %v1540 = vunpack.c.l.b16 %v1424
      %v1541 = vunpack.c.h.b16 %v1424
      %v1542 = vpack.c.b16 %v1480, %v1478
      %v1543 = vpack.c.b16 %v1481, %v1479
      %v1544 = vpack.c.b16 %v1484, %v1482
      %v1545 = vpack.c.b16 %v1485, %v1483
      %v1546 = vpack.c.b16 %v1488, %v1486
      %v1547 = vpack.c.b16 %v1489, %v1487
      %v1548 = vpack.c.b16 %v1492, %v1490
      %v1549 = vpack.c.b16 %v1493, %v1491
      %v1550 = vpack.c.b16 %v1496, %v1494
      %v1551 = vpack.c.b16 %v1497, %v1495
      %v1552 = vpack.c.b16 %v1500, %v1498
      %v1553 = vpack.c.b16 %v1501, %v1499
      %v1554 = vpack.c.b16 %v1504, %v1502
      %v1555 = vpack.c.b16 %v1505, %v1503
      %v1556 = vpack.c.b16 %v1508, %v1506
      %v1557 = vpack.c.b16 %v1509, %v1507
      %v1558 = vpack.c.b16 %v1512, %v1510
      %v1559 = vpack.c.b16 %v1513, %v1511
      %v1560 = vpack.c.b16 %v1516, %v1514
      %v1561 = vpack.c.b16 %v1517, %v1515
      %v1562 = vpack.c.b16 %v1520, %v1518
      %v1563 = vpack.c.b16 %v1521, %v1519
      %v1564 = vpack.c.b16 %v1524, %v1522
      %v1565 = vpack.c.b16 %v1525, %v1523
      %v1566 = vpack.c.b16 %v1528, %v1526
      %v1567 = vpack.c.b16 %v1529, %v1527
      %v1568 = vpack.c.b16 %v1532, %v1530
      %v1569 = vpack.c.b16 %v1533, %v1531
      %v1570 = vpack.c.b16 %v1536, %v1534
      %v1571 = vpack.c.b16 %v1537, %v1535
      %v1572 = vpack.c.b16 %v1540, %v1538
      %v1573 = vpack.c.b16 %v1541, %v1539
      %v1610 = vunpack.c.l.b16 %v1426
      %v1611 = vunpack.c.l.b16 %v1427
      %v1612 = vunpack.c.l.b16 %v1428
      %v1613 = vunpack.c.l.b16 %v1429
      %v1614 = vunpack.c.l.b16 %v1430
      %v1615 = vunpack.c.l.b16 %v1431
      %v1616 = vunpack.c.l.b16 %v1432
      %v1617 = vunpack.c.l.b16 %v1433
      %v1618 = vunpack.c.l.b16 %v1434
      %v1619 = vunpack.c.l.b16 %v1435
      %v1620 = vunpack.c.l.b16 %v1436
      %v1621 = vunpack.c.l.b16 %v1437
      %v1622 = vunpack.c.l.b16 %v1438
      %v1623 = vunpack.c.l.b16 %v1439
      %v1624 = vunpack.c.l.b16 %v1440
      %v1625 = vunpack.c.l.b16 %v1441
      %v1626 = vunpack.c.l.b16 %v1442
      %v1627 = vunpack.c.l.b16 %v1443
      %v1628 = vunpack.c.l.b16 %v1444
      %v1629 = vunpack.c.l.b16 %v1445
      %v1630 = vpack.c.b16 %v1611, %v1610
      %v1631 = vpack.c.b16 %v1613, %v1612
      %v1632 = vpack.c.b16 %v1615, %v1614
      %v1633 = vpack.c.b16 %v1617, %v1616
      %v1634 = vpack.c.b16 %v1619, %v1618
      %v1635 = vpack.c.b16 %v1621, %v1620
      %v1636 = vpack.c.b16 %v1623, %v1622
      %v1637 = vpack.c.b16 %v1625, %v1624
      %v1638 = vpack.c.b16 %v1627, %v1626
      %v1639 = vpack.c.b16 %v1629, %v1628
      %v1651 = vsel %vm452, %v1543, 0
      %v1654 = vsel %vm452, %v1545, 0
      %v1657 = vsel %vm452, %v1547, 0
      %v1660 = vsel %vm452, %v1549, 0
      %v1663 = vsel %vm452, %v1551, 0
      %v1666 = vsel %vm452, %v1553, 0
      %v1669 = vsel %vm452, %v1555, 0
      %v1672 = vsel %vm452, %v1557, 0
      %v1675 = vsel %vm452, %v1559, 0
      %v1678 = vsel %vm452, %v1561, 0
      %v1681 = vsel %vm452, %v1563, 0
      %v1684 = vsel %vm452, %v1565, 0
      %v1687 = vsel %vm452, %v1567, 0
      %v1690 = vsel %vm452, %v1569, 0
      %v1693 = vsel %vm452, %v1571, 0
      %v1696 = vsel %vm452, %v1573, 0
      %1698 = vmatprep.subr.bf16.mxu0 0
      %1699 = vmatpush1.bf16.msra.mxu0 %v1630
      %1700 = vmatprep.subr.bf16.mxu0 0
      %1701 = vmatpush1.bf16.msra.mxu0 %v1631
      %1702 = vmatprep.subr.bf16.mxu0 0
      %1703 = vmatpush1.bf16.msra.mxu0 %v1632
      %1704 = vmatprep.subr.bf16.mxu0 0
      %1705 = vmatpush1.bf16.msra.mxu0 %v1633
      %1706 = vmatprep.subr.bf16.mxu0 0
      %1707 = vmatpush1.bf16.msra.mxu0 %v1634
      %1708 = vmatprep.subr.bf16.mxu0 0
      %1709 = vmatpush1.bf16.msra.mxu0 %v1635
      %1710 = vmatprep.subr.bf16.mxu0 0
      %1711 = vmatpush1.bf16.msra.mxu0 %v1636
      %1712 = vmatprep.subr.bf16.mxu0 0
      %1713 = vmatpush1.bf16.msra.mxu0 %v1637
      %1714 = vmatprep.subr.bf16.mxu0 0
      %1715 = vmatpush1.bf16.msra.mxu0 %v1638
      %1716 = vmatprep.subr.bf16.mxu0 0
      %1717 = vmatpush1.bf16.msra.mxu0 %v1639
      %1718 = vmatprep.subr.bf16.mxu0 0
      %1719 = vmatpush1.bf16.msra.mxu0 0
      %1720 = vmatprep.subr.bf16.mxu0 0
      %1721 = vmatpush1.bf16.msra.mxu0 0
      %1722 = vmatprep.subr.bf16.mxu0 0
      %1723 = vmatpush1.bf16.msra.mxu0 0
      %1724 = vmatprep.subr.bf16.mxu0 0
      %1725 = vmatpush1.bf16.msra.mxu0 0
      %1726 = vmatprep.subr.bf16.mxu0 0
      %1727 = vmatpush1.bf16.msra.mxu0 0
      %1728 = vmatprep.subr.bf16.mxu0 0
      %1729 = vmatpush1.bf16.msra.mxu0 0
      %1730 = vmatprep.mubr.bf16.mxu0 %v1651
      %1731 = vmatmul.mubr.bf16.gmra.mrb[0].mxu0 %v1542
      %v1732 = vpop.f32.mrb[0].mxu0
      %v1733 = vadd.f32 0.0, %v1732
      %v1734 = vpop.f32.mrb[0].mxu0
      %v1735 = vpop.f32.mrb[0].mxu0
      %v1736 = vadd.f32 0.0, %v1735
      %v1737 = vpop.f32.mrb[0].mxu0
      %1738 = vmatprep.mubr.bf16.mxu0 %v1654
      %1739 = vmatmul.mubr.bf16.gmra.mrb[0].mxu0 %v1544
      %v1740 = vpop.f32.mrb[0].mxu0
      %v1741 = vadd.f32 0.0, %v1740
      %v1742 = vpop.f32.mrb[0].mxu0
      %v1743 = vpop.f32.mrb[0].mxu0
      %v1744 = vadd.f32 0.0, %v1743
      %v1745 = vpop.f32.mrb[0].mxu0
      %1746 = vmatprep.mubr.bf16.mxu0 %v1657
      %1747 = vmatmul.mubr.bf16.gmra.mrb[0].mxu0 %v1546
      %v1748 = vpop.f32.mrb[0].mxu0
      %v1749 = vadd.f32 0.0, %v1748
      %v1750 = vpop.f32.mrb[0].mxu0
      %v1751 = vpop.f32.mrb[0].mxu0
      %v1752 = vadd.f32 0.0, %v1751
      %v1753 = vpop.f32.mrb[0].mxu0
      %1754 = vmatprep.mubr.bf16.mxu0 %v1660
      %1755 = vmatmul.mubr.bf16.gmra.mrb[0].mxu0 %v1548
      %v1756 = vpop.f32.mrb[0].mxu0
      %v1757 = vadd.f32 0.0, %v1756
      %v1758 = vpop.f32.mrb[0].mxu0
      %v1759 = vpop.f32.mrb[0].mxu0
      %v1760 = vadd.f32 0.0, %v1759
      %v1761 = vpop.f32.mrb[0].mxu0
      %1762 = vmatprep.mubr.bf16.mxu0 %v1663
      %1763 = vmatmul.mubr.bf16.gmra.mrb[0].mxu0 %v1550
      %v1764 = vpop.f32.mrb[0].mxu0
      %v1765 = vadd.f32 0.0, %v1764
      %v1766 = vpop.f32.mrb[0].mxu0
      %v1767 = vpop.f32.mrb[0].mxu0
      %v1768 = vadd.f32 0.0, %v1767
      %v1769 = vpop.f32.mrb[0].mxu0
      %1770 = vmatprep.mubr.bf16.mxu0 %v1666
      %1771 = vmatmul.mubr.bf16.gmra.mrb[0].mxu0 %v1552
      %v1772 = vpop.f32.mrb[0].mxu0
      %v1773 = vadd.f32 0.0, %v1772
      %v1774 = vpop.f32.mrb[0].mxu0
      %v1775 = vpop.f32.mrb[0].mxu0
      %v1776 = vadd.f32 0.0, %v1775
      %v1777 = vpop.f32.mrb[0].mxu0
      %1778 = vmatprep.mubr.bf16.mxu0 %v1669
      %1779 = vmatmul.mubr.bf16.gmra.mrb[0].mxu0 %v1554
      %v1780 = vpop.f32.mrb[0].mxu0
      %v1781 = vadd.f32 0.0, %v1780
      %v1782 = vpop.f32.mrb[0].mxu0
      %v1783 = vpop.f32.mrb[0].mxu0
      %v1784 = vadd.f32 0.0, %v1783
      %v1785 = vpop.f32.mrb[0].mxu0
      %1786 = vmatprep.mubr.bf16.mxu0 %v1672
      %1787 = vmatmul.mubr.bf16.gmra.mrb[0].mxu0 %v1556
      %v1788 = vpop.f32.mrb[0].mxu0
      %v1789 = vadd.f32 0.0, %v1788
      %v1790 = vpop.f32.mrb[0].mxu0
      %v1791 = vpop.f32.mrb[0].mxu0
      %v1792 = vadd.f32 0.0, %v1791
      %v1793 = vpop.f32.mrb[0].mxu0
      %1794 = vmatprep.mubr.bf16.mxu0 %v1675
      %1795 = vmatmul.mubr.bf16.gmra.mrb[0].mxu0 %v1558
      %v1796 = vpop.f32.mrb[0].mxu0
      %v1797 = vadd.f32 0.0, %v1796
      %v1798 = vpop.f32.mrb[0].mxu0
      %v1799 = vpop.f32.mrb[0].mxu0
      %v1800 = vadd.f32 0.0, %v1799
      %v1801 = vpop.f32.mrb[0].mxu0
      %1802 = vmatprep.mubr.bf16.mxu0 %v1678
      %1803 = vmatmul.mubr.bf16.gmra.mrb[0].mxu0 %v1560
      %v1804 = vpop.f32.mrb[0].mxu0
      %v1805 = vadd.f32 0.0, %v1804
      %v1806 = vpop.f32.mrb[0].mxu0
      %v1807 = vpop.f32.mrb[0].mxu0
      %v1808 = vadd.f32 0.0, %v1807
      %v1809 = vpop.f32.mrb[0].mxu0
      %1810 = vmatprep.mubr.bf16.mxu0 %v1681
      %1811 = vmatmul.mubr.bf16.gmra.mrb[0].mxu0 %v1562
      %v1812 = vpop.f32.mrb[0].mxu0
      %v1813 = vadd.f32 0.0, %v1812
      %v1814 = vpop.f32.mrb[0].mxu0
      %v1815 = vpop.f32.mrb[0].mxu0
      %v1816 = vadd.f32 0.0, %v1815
      %v1817 = vpop.f32.mrb[0].mxu0
      %1818 = vmatprep.mubr.bf16.mxu0 %v1684
      %1819 = vmatmul.mubr.bf16.gmra.mrb[0].mxu0 %v1564
      %v1820 = vpop.f32.mrb[0].mxu0
      %v1821 = vadd.f32 0.0, %v1820
      %v1822 = vpop.f32.mrb[0].mxu0
      %v1823 = vpop.f32.mrb[0].mxu0
      %v1824 = vadd.f32 0.0, %v1823
      %v1825 = vpop.f32.mrb[0].mxu0
      %1826 = vmatprep.mubr.bf16.mxu0 %v1687
      %1827 = vmatmul.mubr.bf16.gmra.mrb[0].mxu0 %v1566
      %v1828 = vpop.f32.mrb[0].mxu0
      %v1829 = vadd.f32 0.0, %v1828
      %v1830 = vpop.f32.mrb[0].mxu0
      %v1831 = vpop.f32.mrb[0].mxu0
      %v1832 = vadd.f32 0.0, %v1831
      %v1833 = vpop.f32.mrb[0].mxu0
      %1834 = vmatprep.mubr.bf16.mxu0 %v1690
      %1835 = vmatmul.mubr.bf16.gmra.mrb[0].mxu0 %v1568
      %v1836 = vpop.f32.mrb[0].mxu0
      %v1837 = vadd.f32 0.0, %v1836
      %v1838 = vpop.f32.mrb[0].mxu0
      %v1839 = vpop.f32.mrb[0].mxu0
      %v1840 = vadd.f32 0.0, %v1839
      %v1841 = vpop.f32.mrb[0].mxu0
      %1842 = vmatprep.mubr.bf16.mxu0 %v1693
      %1843 = vmatmul.mubr.bf16.gmra.mrb[0].mxu0 %v1570
      %v1844 = vpop.f32.mrb[0].mxu0
      %v1845 = vadd.f32 0.0, %v1844
      %v1846 = vpop.f32.mrb[0].mxu0
      %v1847 = vpop.f32.mrb[0].mxu0
      %v1848 = vadd.f32 0.0, %v1847
      %v1849 = vpop.f32.mrb[0].mxu0
      %1850 = vmatprep.mubr.bf16.mxu0 %v1696
      %1851 = vmatmul.mubr.bf16.gmra.mrb[0].mxu0 %v1572
      %v1852 = vpop.f32.mrb[0].mxu0
      %v1853 = vadd.f32 0.0, %v1852
      %v1854 = vpop.f32.mrb[0].mxu0
      %v1855 = vpop.f32.mrb[0].mxu0
      %v1856 = vadd.f32 0.0, %v1855
      %v1857 = vpop.f32.mrb[0].mxu0
      %1858 = vdwg.mxu0
      %v1859 = vadd.f32 %v1361, %v1733
      %v1860 = vadd.f32 %v1362, %v1736
      %v1861 = vadd.f32 %v1363, %v1741
      %v1862 = vadd.f32 %v1364, %v1744
      %v1863 = vadd.f32 %v1365, %v1749
      %v1864 = vadd.f32 %v1366, %v1752
      %v1865 = vadd.f32 %v1367, %v1757
      %v1866 = vadd.f32 %v1368, %v1760
      %v1867 = vadd.f32 %v1369, %v1765
      %v1868 = vadd.f32 %v1370, %v1768
      %v1869 = vadd.f32 %v1371, %v1773
      %v1870 = vadd.f32 %v1372, %v1776
      %v1871 = vadd.f32 %v1373, %v1781
      %v1872 = vadd.f32 %v1374, %v1784
      %v1873 = vadd.f32 %v1375, %v1789
      %v1874 = vadd.f32 %v1376, %v1792
      %v1875 = vadd.f32 %v1377, %v1797
      %v1876 = vadd.f32 %v1378, %v1800
      %v1877 = vadd.f32 %v1379, %v1805
      %v1878 = vadd.f32 %v1380, %v1808
      %v1879 = vadd.f32 %v1381, %v1813
      %v1880 = vadd.f32 %v1382, %v1816
      %v1881 = vadd.f32 %v1383, %v1821
      %v1882 = vadd.f32 %v1384, %v1824
      %v1883 = vadd.f32 %v1385, %v1829
      %v1884 = vadd.f32 %v1386, %v1832
      %v1885 = vadd.f32 %v1387, %v1837
      %v1886 = vadd.f32 %v1388, %v1840
      %v1887 = vadd.f32 %v1389, %v1845
      %v1888 = vadd.f32 %v1390, %v1848
      %v1889 = vadd.f32 %v1391, %v1853
      %v1890 = vadd.f32 %v1392, %v1856
      %v1891 = vld [vmem:[%s165 + $0x40] sm:$0xff]
      %v1892 = vld [vmem:[%s165 + $0x48] sm:$0xff]
      %v1893 = vld [vmem:[%s165 + $0x50] sm:$0xff]
      %v1894 = vld [vmem:[%s165 + $0x58] sm:$0xff]
      %v1895 = vld [vmem:[%s165 + $0x60] sm:$0xff]
      %v1896 = vld [vmem:[%s165 + $0x68] sm:$0xff]
      %v1897 = vld [vmem:[%s165 + $0x70] sm:$0xff]
      %v1898 = vld [vmem:[%s165 + $0x78] sm:$0xff]
      %v1899 = vld [vmem:[%s165 + $0x80] sm:$0xff]
      %v1900 = vld [vmem:[%s165 + $0x88] sm:$0xff]
      %v1901 = vld [vmem:[%s165 + $0x90] sm:$0xff]
      %v1902 = vld [vmem:[%s165 + $0x98] sm:$0xff]
      %v1903 = vld [vmem:[%s165 + $0xa0] sm:$0xff]
      %v1904 = vld [vmem:[%s165 + $0xa8] sm:$0xff]
      %v1905 = vld [vmem:[%s165 + $0xb0] sm:$0xff]
      %v1906 = vld [vmem:[%s165 + $0xb8] sm:$0xff]
      %v1907 = vld [vmem:[%s165 + $0xc0] sm:$0xff]
      %v1908 = vld [vmem:[%s165 + $0xc8] sm:$0xff]
      %v1909 = vld [vmem:[%s165 + $0xd0] sm:$0xff]
      %v1910 = vld [vmem:[%s165 + $0xd8] sm:$0xff]
      %v1911 = vld [vmem:[%s165 + $0xe0] sm:$0xff]
      %v1912 = vld [vmem:[%s165 + $0xe8] sm:$0xff]
      %v1913 = vld [vmem:[%s165 + $0xf0] sm:$0xff]
      %v1914 = vld [vmem:[%s165 + $0xf8] sm:$0xff]
      %v1915 = vld [vmem:[%s165 + $0x100] sm:$0xff]
      %v1916 = vld [vmem:[%s165 + $0x108] sm:$0xff]
      %v1917 = vld [vmem:[%s165 + $0x110] sm:$0xff]
      %v1918 = vld [vmem:[%s165 + $0x118] sm:$0xff]
      %v1919 = vld [vmem:[%s165 + $0x120] sm:$0xff]
      %v1920 = vld [vmem:[%s165 + $0x128] sm:$0xff]
      %v1921 = vld [vmem:[%s165 + $0x130] sm:$0xff]
      %v1922 = vld [vmem:[%s165 + $0x138] sm:$0xff]
      %s1923 = scalar_lea.vmem %s1, 320
      %v1924 = vld [vmem:[%s1923] sm:$0xf]
      %v1925 = vld [vmem:[%s1923 + $0x4] sm:$0xf]
      %v1926 = vld [vmem:[%s1923 + $0x8] sm:$0xf]
      %v1927 = vld [vmem:[%s1923 + $0xc] sm:$0xf]
      %v1928 = vld [vmem:[%s1923 + $0x10] sm:$0xf]
      %v1929 = vld [vmem:[%s1923 + $0x14] sm:$0xf]
      %v1930 = vld [vmem:[%s1923 + $0x18] sm:$0xf]
      %v1931 = vld [vmem:[%s1923 + $0x1c] sm:$0xf]
      %v1932 = vld [vmem:[%s1923 + $0x20] sm:$0xf]
      %v1933 = vld [vmem:[%s1923 + $0x24] sm:$0xf]
      %v1934 = vld [vmem:[%s1923 + $0x28] sm:$0xf]
      %v1935 = vld [vmem:[%s1923 + $0x2c] sm:$0xf]
      %v1936 = vld [vmem:[%s1923 + $0x30] sm:$0xf]
      %v1937 = vld [vmem:[%s1923 + $0x34] sm:$0xf]
      %v1938 = vld [vmem:[%s1923 + $0x38] sm:$0xf]
      %v1939 = vld [vmem:[%s1923 + $0x3c] sm:$0xf]
      %v1940 = vld [vmem:[%s1923 + $0x40] sm:$0xf]
      %v1941 = vld [vmem:[%s1923 + $0x44] sm:$0xf]
      %v1942 = vld [vmem:[%s1923 + $0x48] sm:$0xf]
      %v1943 = vld [vmem:[%s1923 + $0x4c] sm:$0xf]
      %v1976 = vunpack.c.l.b16 %v1891
      %v1977 = vunpack.c.h.b16 %v1891
      %v1978 = vunpack.c.l.b16 %v1892
      %v1979 = vunpack.c.h.b16 %v1892
      %v1980 = vunpack.c.l.b16 %v1893
      %v1981 = vunpack.c.h.b16 %v1893
      %v1982 = vunpack.c.l.b16 %v1894
      %v1983 = vunpack.c.h.b16 %v1894
      %v1984 = vunpack.c.l.b16 %v1895
      %v1985 = vunpack.c.h.b16 %v1895
      %v1986 = vunpack.c.l.b16 %v1896
      %v1987 = vunpack.c.h.b16 %v1896
      %v1988 = vunpack.c.l.b16 %v1897
      %v1989 = vunpack.c.h.b16 %v1897
      %v1990 = vunpack.c.l.b16 %v1898
      %v1991 = vunpack.c.h.b16 %v1898
      %v1992 = vunpack.c.l.b16 %v1899
      %v1993 = vunpack.c.h.b16 %v1899
      %v1994 = vunpack.c.l.b16 %v1900
      %v1995 = vunpack.c.h.b16 %v1900
      %v1996 = vunpack.c.l.b16 %v1901
      %v1997 = vunpack.c.h.b16 %v1901
      %v1998 = vunpack.c.l.b16 %v1902
      %v1999 = vunpack.c.h.b16 %v1902
      %v2000 = vunpack.c.l.b16 %v1903
      %v2001 = vunpack.c.h.b16 %v1903
      %v2002 = vunpack.c.l.b16 %v1904
      %v2003 = vunpack.c.h.b16 %v1904
      %v2004 = vunpack.c.l.b16 %v1905
      %v2005 = vunpack.c.h.b16 %v1905
      %v2006 = vunpack.c.l.b16 %v1906
      %v2007 = vunpack.c.h.b16 %v1906
      %v2008 = vunpack.c.l.b16 %v1907
      %v2009 = vunpack.c.h.b16 %v1907
      %v2010 = vunpack.c.l.b16 %v1908
      %v2011 = vunpack.c.h.b16 %v1908
      %v2012 = vunpack.c.l.b16 %v1909
      %v2013 = vunpack.c.h.b16 %v1909
      %v2014 = vunpack.c.l.b16 %v1910
      %v2015 = vunpack.c.h.b16 %v1910
      %v2016 = vunpack.c.l.b16 %v1911
      %v2017 = vunpack.c.h.b16 %v1911
      %v2018 = vunpack.c.l.b16 %v1912
      %v2019 = vunpack.c.h.b16 %v1912
      %v2020 = vunpack.c.l.b16 %v1913
      %v2021 = vunpack.c.h.b16 %v1913
      %v2022 = vunpack.c.l.b16 %v1914
      %v2023 = vunpack.c.h.b16 %v1914
      %v2024 = vunpack.c.l.b16 %v1915
      %v2025 = vunpack.c.h.b16 %v1915
      %v2026 = vunpack.c.l.b16 %v1916
      %v2027 = vunpack.c.h.b16 %v1916
      %v2028 = vunpack.c.l.b16 %v1917
      %v2029 = vunpack.c.h.b16 %v1917
      %v2030 = vunpack.c.l.b16 %v1918
      %v2031 = vunpack.c.h.b16 %v1918
      %v2032 = vunpack.c.l.b16 %v1919
      %v2033 = vunpack.c.h.b16 %v1919
      %v2034 = vunpack.c.l.b16 %v1920
      %v2035 = vunpack.c.h.b16 %v1920
      %v2036 = vunpack.c.l.b16 %v1921
      %v2037 = vunpack.c.h.b16 %v1921
      %v2038 = vunpack.c.l.b16 %v1922
      %v2039 = vunpack.c.h.b16 %v1922
      %v2040 = vpack.c.b16 %v1978, %v1976
      %v2041 = vpack.c.b16 %v1979, %v1977
      %v2042 = vpack.c.b16 %v1982, %v1980
      %v2043 = vpack.c.b16 %v1983, %v1981
      %v2044 = vpack.c.b16 %v1986, %v1984
      %v2045 = vpack.c.b16 %v1987, %v1985
      %v2046 = vpack.c.b16 %v1990, %v1988
      %v2047 = vpack.c.b16 %v1991, %v1989
      %v2048 = vpack.c.b16 %v1994, %v1992
      %v2049 = vpack.c.b16 %v1995, %v1993
      %v2050 = vpack.c.b16 %v1998, %v1996
      %v2051 = vpack.c.b16 %v1999, %v1997
      %v2052 = vpack.c.b16 %v2002, %v2000
      %v2053 = vpack.c.b16 %v2003, %v2001
      %v2054 = vpack.c.b16 %v2006, %v2004
      %v2055 = vpack.c.b16 %v2007, %v2005
      %v2056 = vpack.c.b16 %v2010, %v2008
      %v2057 = vpack.c.b16 %v2011, %v2009
      %v2058 = vpack.c.b16 %v2014, %v2012
      %v2059 = vpack.c.b16 %v2015, %v2013
      %v2060 = vpack.c.b16 %v2018, %v2016
      %v2061 = vpack.c.b16 %v2019, %v2017
      %v2062 = vpack.c.b16 %v2022, %v2020
      %v2063 = vpack.c.b16 %v2023, %v2021
      %v2064 = vpack.c.b16 %v2026, %v2024
      %v2065 = vpack.c.b16 %v2027, %v2025
      %v2066 = vpack.c.b16 %v2030, %v2028
      %v2067 = vpack.c.b16 %v2031, %v2029
      %v2068 = vpack.c.b16 %v2034, %v2032
      %v2069 = vpack.c.b16 %v2035, %v2033
      %v2070 = vpack.c.b16 %v2038, %v2036
      %v2071 = vpack.c.b16 %v2039, %v2037
      %v2108 = vunpack.c.l.b16 %v1924
      %v2109 = vunpack.c.l.b16 %v1925
      %v2110 = vunpack.c.l.b16 %v1926
      %v2111 = vunpack.c.l.b16 %v1927
      %v2112 = vunpack.c.l.b16 %v1928
      %v2113 = vunpack.c.l.b16 %v1929
      %v2114 = vunpack.c.l.b16 %v1930
      %v2115 = vunpack.c.l.b16 %v1931
      %v2116 = vunpack.c.l.b16 %v1932
      %v2117 = vunpack.c.l.b16 %v1933
      %v2118 = vunpack.c.l.b16 %v1934
      %v2119 = vunpack.c.l.b16 %v1935
      %v2120 = vunpack.c.l.b16 %v1936
      %v2121 = vunpack.c.l.b16 %v1937
      %v2122 = vunpack.c.l.b16 %v1938
      %v2123 = vunpack.c.l.b16 %v1939
      %v2124 = vunpack.c.l.b16 %v1940
      %v2125 = vunpack.c.l.b16 %v1941
      %v2126 = vunpack.c.l.b16 %v1942
      %v2127 = vunpack.c.l.b16 %v1943
      %v2128 = vpack.c.b16 %v2109, %v2108
      %v2129 = vpack.c.b16 %v2111, %v2110
      %v2130 = vpack.c.b16 %v2113, %v2112
      %v2131 = vpack.c.b16 %v2115, %v2114
      %v2132 = vpack.c.b16 %v2117, %v2116
      %v2133 = vpack.c.b16 %v2119, %v2118
      %v2134 = vpack.c.b16 %v2121, %v2120
      %v2135 = vpack.c.b16 %v2123, %v2122
      %v2136 = vpack.c.b16 %v2125, %v2124
      %v2137 = vpack.c.b16 %v2127, %v2126
      %v2149 = vsel %vm452, %v2041, 0
      %v2152 = vsel %vm452, %v2043, 0
      %v2155 = vsel %vm452, %v2045, 0
      %v2158 = vsel %vm452, %v2047, 0
      %v2161 = vsel %vm452, %v2049, 0
      %v2164 = vsel %vm452, %v2051, 0
      %v2167 = vsel %vm452, %v2053, 0
      %v2170 = vsel %vm452, %v2055, 0
      %v2173 = vsel %vm452, %v2057, 0
      %v2176 = vsel %vm452, %v2059, 0
      %v2179 = vsel %vm452, %v2061, 0
      %v2182 = vsel %vm452, %v2063, 0
      %v2185 = vsel %vm452, %v2065, 0
      %v2188 = vsel %vm452, %v2067, 0
      %v2191 = vsel %vm452, %v2069, 0
      %v2194 = vsel %vm452, %v2071, 0
      %2196 = vmatprep.subr.bf16.mxu0 0
      %2197 = vmatpush1.bf16.msra.mxu0 %v2128
      %2198 = vmatprep.subr.bf16.mxu0 0
      %2199 = vmatpush1.bf16.msra.mxu0 %v2129
      %2200 = vmatprep.subr.bf16.mxu0 0
      %2201 = vmatpush1.bf16.msra.mxu0 %v2130
      %2202 = vmatprep.subr.bf16.mxu0 0
      %2203 = vmatpush1.bf16.msra.mxu0 %v2131
      %2204 = vmatprep.subr.bf16.mxu0 0
      %2205 = vmatpush1.bf16.msra.mxu0 %v2132
      %2206 = vmatprep.subr.bf16.mxu0 0
      %2207 = vmatpush1.bf16.msra.mxu0 %v2133
      %2208 = vmatprep.subr.bf16.mxu0 0
      %2209 = vmatpush1.bf16.msra.mxu0 %v2134
      %2210 = vmatprep.subr.bf16.mxu0 0
      %2211 = vmatpush1.bf16.msra.mxu0 %v2135
      %2212 = vmatprep.subr.bf16.mxu0 0
      %2213 = vmatpush1.bf16.msra.mxu0 %v2136
      %2214 = vmatprep.subr.bf16.mxu0 0
      %2215 = vmatpush1.bf16.msra.mxu0 %v2137
      %2216 = vmatprep.subr.bf16.mxu0 0
      %2217 = vmatpush1.bf16.msra.mxu0 0
      %2218 = vmatprep.subr.bf16.mxu0 0
      %2219 = vmatpush1.bf16.msra.mxu0 0
      %2220 = vmatprep.subr.bf16.mxu0 0
      %2221 = vmatpush1.bf16.msra.mxu0 0
      %2222 = vmatprep.subr.bf16.mxu0 0
      %2223 = vmatpush1.bf16.msra.mxu0 0
      %2224 = vmatprep.subr.bf16.mxu0 0
      %2225 = vmatpush1.bf16.msra.mxu0 0
      %2226 = vmatprep.subr.bf16.mxu0 0
      %2227 = vmatpush1.bf16.msra.mxu0 0
      %2228 = vmatprep.mubr.bf16.mxu0 %v2149
      %2229 = vmatmul.mubr.bf16.gmra.mrb[0].mxu0 %v2040
      %v2230 = vpop.f32.mrb[0].mxu0
      %v2231 = vadd.f32 0.0, %v2230
      %v2232 = vpop.f32.mrb[0].mxu0
      %v2233 = vpop.f32.mrb[0].mxu0
      %v2234 = vadd.f32 0.0, %v2233
      %v2235 = vpop.f32.mrb[0].mxu0
      %2236 = vmatprep.mubr.bf16.mxu0 %v2152
      %2237 = vmatmul.mubr.bf16.gmra.mrb[0].mxu0 %v2042
      %v2238 = vpop.f32.mrb[0].mxu0
      %v2239 = vadd.f32 0.0, %v2238
      %v2240 = vpop.f32.mrb[0].mxu0
      %v2241 = vpop.f32.mrb[0].mxu0
      %v2242 = vadd.f32 0.0, %v2241
      %v2243 = vpop.f32.mrb[0].mxu0
      %2244 = vmatprep.mubr.bf16.mxu0 %v2155
      %2245 = vmatmul.mubr.bf16.gmra.mrb[0].mxu0 %v2044
      %v2246 = vpop.f32.mrb[0].mxu0
      %v2247 = vadd.f32 0.0, %v2246
      %v2248 = vpop.f32.mrb[0].mxu0
      %v2249 = vpop.f32.mrb[0].mxu0
      %v2250 = vadd.f32 0.0, %v2249
      %v2251 = vpop.f32.mrb[0].mxu0
      %2252 = vmatprep.mubr.bf16.mxu0 %v2158
      %2253 = vmatmul.mubr.bf16.gmra.mrb[0].mxu0 %v2046
      %v2254 = vpop.f32.mrb[0].mxu0
      %v2255 = vadd.f32 0.0, %v2254
      %v2256 = vpop.f32.mrb[0].mxu0
      %v2257 = vpop.f32.mrb[0].mxu0
      %v2258 = vadd.f32 0.0, %v2257
      %v2259 = vpop.f32.mrb[0].mxu0
      %2260 = vmatprep.mubr.bf16.mxu0 %v2161
      %2261 = vmatmul.mubr.bf16.gmra.mrb[0].mxu0 %v2048
      %v2262 = vpop.f32.mrb[0].mxu0
      %v2263 = vadd.f32 0.0, %v2262
      %v2264 = vpop.f32.mrb[0].mxu0
      %v2265 = vpop.f32.mrb[0].mxu0
      %v2266 = vadd.f32 0.0, %v2265
      %v2267 = vpop.f32.mrb[0].mxu0
      %2268 = vmatprep.mubr.bf16.mxu0 %v2164
      %2269 = vmatmul.mubr.bf16.gmra.mrb[0].mxu0 %v2050
      %v2270 = vpop.f32.mrb[0].mxu0
      %v2271 = vadd.f32 0.0, %v2270
      %v2272 = vpop.f32.mrb[0].mxu0
      %v2273 = vpop.f32.mrb[0].mxu0
      %v2274 = vadd.f32 0.0, %v2273
      %v2275 = vpop.f32.mrb[0].mxu0
      %2276 = vmatprep.mubr.bf16.mxu0 %v2167
      %2277 = vmatmul.mubr.bf16.gmra.mrb[0].mxu0 %v2052
      %v2278 = vpop.f32.mrb[0].mxu0
      %v2279 = vadd.f32 0.0, %v2278
      %v2280 = vpop.f32.mrb[0].mxu0
      %v2281 = vpop.f32.mrb[0].mxu0
      %v2282 = vadd.f32 0.0, %v2281
      %v2283 = vpop.f32.mrb[0].mxu0
      %2284 = vmatprep.mubr.bf16.mxu0 %v2170
      %2285 = vmatmul.mubr.bf16.gmra.mrb[0].mxu0 %v2054
      %v2286 = vpop.f32.mrb[0].mxu0
      %v2287 = vadd.f32 0.0, %v2286
      %v2288 = vpop.f32.mrb[0].mxu0
      %v2289 = vpop.f32.mrb[0].mxu0
      %v2290 = vadd.f32 0.0, %v2289
      %v2291 = vpop.f32.mrb[0].mxu0
      %2292 = vmatprep.mubr.bf16.mxu0 %v2173
      %2293 = vmatmul.mubr.bf16.gmra.mrb[0].mxu0 %v2056
      %v2294 = vpop.f32.mrb[0].mxu0
      %v2295 = vadd.f32 0.0, %v2294
      %v2296 = vpop.f32.mrb[0].mxu0
      %v2297 = vpop.f32.mrb[0].mxu0
      %v2298 = vadd.f32 0.0, %v2297
      %v2299 = vpop.f32.mrb[0].mxu0
      %2300 = vmatprep.mubr.bf16.mxu0 %v2176
      %2301 = vmatmul.mubr.bf16.gmra.mrb[0].mxu0 %v2058
      %v2302 = vpop.f32.mrb[0].mxu0
      %v2303 = vadd.f32 0.0, %v2302
      %v2304 = vpop.f32.mrb[0].mxu0
      %v2305 = vpop.f32.mrb[0].mxu0
      %v2306 = vadd.f32 0.0, %v2305
      %v2307 = vpop.f32.mrb[0].mxu0
      %2308 = vmatprep.mubr.bf16.mxu0 %v2179
      %2309 = vmatmul.mubr.bf16.gmra.mrb[0].mxu0 %v2060
      %v2310 = vpop.f32.mrb[0].mxu0
      %v2311 = vadd.f32 0.0, %v2310
      %v2312 = vpop.f32.mrb[0].mxu0
      %v2313 = vpop.f32.mrb[0].mxu0
      %v2314 = vadd.f32 0.0, %v2313
      %v2315 = vpop.f32.mrb[0].mxu0
      %2316 = vmatprep.mubr.bf16.mxu0 %v2182
      %2317 = vmatmul.mubr.bf16.gmra.mrb[0].mxu0 %v2062
      %v2318 = vpop.f32.mrb[0].mxu0
      %v2319 = vadd.f32 0.0, %v2318
      %v2320 = vpop.f32.mrb[0].mxu0
      %v2321 = vpop.f32.mrb[0].mxu0
      %v2322 = vadd.f32 0.0, %v2321
      %v2323 = vpop.f32.mrb[0].mxu0
      %2324 = vmatprep.mubr.bf16.mxu0 %v2185
      %2325 = vmatmul.mubr.bf16.gmra.mrb[0].mxu0 %v2064
      %v2326 = vpop.f32.mrb[0].mxu0
      %v2327 = vadd.f32 0.0, %v2326
      %v2328 = vpop.f32.mrb[0].mxu0
      %v2329 = vpop.f32.mrb[0].mxu0
      %v2330 = vadd.f32 0.0, %v2329
      %v2331 = vpop.f32.mrb[0].mxu0
      %2332 = vmatprep.mubr.bf16.mxu0 %v2188
      %2333 = vmatmul.mubr.bf16.gmra.mrb[0].mxu0 %v2066
      %v2334 = vpop.f32.mrb[0].mxu0
      %v2335 = vadd.f32 0.0, %v2334
      %v2336 = vpop.f32.mrb[0].mxu0
      %v2337 = vpop.f32.mrb[0].mxu0
      %v2338 = vadd.f32 0.0, %v2337
      %v2339 = vpop.f32.mrb[0].mxu0
      %2340 = vmatprep.mubr.bf16.mxu0 %v2191
      %2341 = vmatmul.mubr.bf16.gmra.mrb[0].mxu0 %v2068
      %v2342 = vpop.f32.mrb[0].mxu0
      %v2343 = vadd.f32 0.0, %v2342
      %v2344 = vpop.f32.mrb[0].mxu0
      %v2345 = vpop.f32.mrb[0].mxu0
      %v2346 = vadd.f32 0.0, %v2345
      %v2347 = vpop.f32.mrb[0].mxu0
      %2348 = vmatprep.mubr.bf16.mxu0 %v2194
      %2349 = vmatmul.mubr.bf16.gmra.mrb[0].mxu0 %v2070
      %v2350 = vpop.f32.mrb[0].mxu0
      %v2351 = vadd.f32 0.0, %v2350
      %v2352 = vpop.f32.mrb[0].mxu0
      %v2353 = vpop.f32.mrb[0].mxu0
      %v2354 = vadd.f32 0.0, %v2353
      %v2355 = vpop.f32.mrb[0].mxu0
      %2356 = vdwg.mxu0
      %v2357 = vadd.f32 %v1859, %v2231
      %v2358 = vadd.f32 %v1860, %v2234
      %v2359 = vadd.f32 %v1861, %v2239
      %v2360 = vadd.f32 %v1862, %v2242
      %v2361 = vadd.f32 %v1863, %v2247
      %v2362 = vadd.f32 %v1864, %v2250
      %v2363 = vadd.f32 %v1865, %v2255
      %v2364 = vadd.f32 %v1866, %v2258
      %v2365 = vadd.f32 %v1867, %v2263
      %v2366 = vadd.f32 %v1868, %v2266
      %v2367 = vadd.f32 %v1869, %v2271
      %v2368 = vadd.f32 %v1870, %v2274
      %v2369 = vadd.f32 %v1871, %v2279
      %v2370 = vadd.f32 %v1872, %v2282
      %v2371 = vadd.f32 %v1873, %v2287
      %v2372 = vadd.f32 %v1874, %v2290
      %v2373 = vadd.f32 %v1875, %v2295
      %v2374 = vadd.f32 %v1876, %v2298
      %v2375 = vadd.f32 %v1877, %v2303
      %v2376 = vadd.f32 %v1878, %v2306
      %v2377 = vadd.f32 %v1879, %v2311
      %v2378 = vadd.f32 %v1880, %v2314
      %v2379 = vadd.f32 %v1881, %v2319
      %v2380 = vadd.f32 %v1882, %v2322
      %v2381 = vadd.f32 %v1883, %v2327
      %v2382 = vadd.f32 %v1884, %v2330
      %v2383 = vadd.f32 %v1885, %v2335
      %v2384 = vadd.f32 %v1886, %v2338
      %v2385 = vadd.f32 %v1887, %v2343
      %v2386 = vadd.f32 %v1888, %v2346
      %v2387 = vadd.f32 %v1889, %v2351
      %v2388 = vadd.f32 %v1890, %v2354
      %v2389 = vmax.f32 %v2357, %v2359
      %v2390 = vmax.f32 %v2358, %v2360
      %v2391 = vmax.f32 %v2389, %v2390
      %v2393 = vlaneseq
      %v2394 = vshrl.u32 %v2393, 7
      %v2395 = vsub.s32 0, %v2394
      %v2396 = vrot.slane %v172, %v2395
      %v2398 = vadd.f32 %v2391, %v2396
      %2399 = vst.msk [vmem:[%s170] sm:$0xff] %vm452, %v2398
      %v2400 = vmax.f32 %v2361, %v2363
      %v2401 = vmax.f32 %v2362, %v2364
      %v2402 = vmax.f32 %v2400, %v2401
      %v2403 = vadd.f32 %v2402, %v2396
      %2404 = vst.msk [vmem:[%s170 + $0x8] sm:$0xff] %vm452, %v2403
      %v2405 = vmax.f32 %v2365, %v2367
      %v2406 = vmax.f32 %v2366, %v2368
      %v2407 = vmax.f32 %v2405, %v2406
      %v2408 = vadd.f32 %v2407, %v2396
      %2409 = vst.msk [vmem:[%s170 + $0x10] sm:$0xff] %vm452, %v2408
      %v2410 = vmax.f32 %v2369, %v2371
      %v2411 = vmax.f32 %v2370, %v2372
      %v2412 = vmax.f32 %v2410, %v2411
      %v2413 = vadd.f32 %v2412, %v2396
      %2414 = vst.msk [vmem:[%s170 + $0x18] sm:$0xff] %vm452, %v2413
      %v2415 = vmax.f32 %v2373, %v2375
      %v2416 = vmax.f32 %v2374, %v2376
      %v2417 = vmax.f32 %v2415, %v2416
      %v2418 = vadd.f32 %v2417, %v2396
      %2419 = vst.msk [vmem:[%s170 + $0x20] sm:$0xff] %vm452, %v2418
      %v2420 = vmax.f32 %v2377, %v2379
      %v2421 = vmax.f32 %v2378, %v2380
      %v2422 = vmax.f32 %v2420, %v2421
      %v2423 = vadd.f32 %v2422, %v2396
      %2424 = vst.msk [vmem:[%s170 + $0x28] sm:$0xff] %vm452, %v2423
      %v2425 = vmax.f32 %v2381, %v2383
      %v2426 = vmax.f32 %v2382, %v2384
      %v2427 = vmax.f32 %v2425, %v2426
      %v2428 = vadd.f32 %v2427, %v2396
      %2429 = vst.msk [vmem:[%s170 + $0x30] sm:$0xff] %vm452, %v2428
      %v2430 = vmax.f32 %v2385, %v2387
      %v2431 = vmax.f32 %v2386, %v2388
      %v2432 = vmax.f32 %v2430, %v2431
      %v2433 = vadd.f32 %v2432, %v2396
      %2434 = vst.msk [vmem:[%s170 + $0x38] sm:$0xff] %vm452, %v2433
      %p2435 = scmp.lt.s32.totalorder %s14, 1
      %s2436 = scalar_select %p2435, %s14, 1
      %s2437 = smul.addr %s2436, 8
      %s2438 = smul.addr %s2437, 8
      %s2439 = scalar_lea.vmem %s3, %s2438
      // Predicated region
      $region33: #{cnn_cifar10_forward.5} parent=31 // pred_check
        %p2440 = pneg %p100
      $region34: #{cnn_cifar10_forward.5} parent=31 // pred_check_branch
        %2442 = sbr.rel (%p2440) target = $region36
      $region35: #{cnn_cifar10_forward.5} parent=31 // pred_region
        _
      $region36: #{cnn_cifar10_forward.5} parent=31 // pred_fallthru
        _
    $region32: #{cnn_cifar10_forward.5} parent=5 // pred_fallthru
      _
    %p2443 = scmp.le.s32.totalorder 2, %s9
    // Predicated region
    $region37: #{cnn_cifar10_forward.5} parent=5 // pred_check
      %p2444 = pneg %p2443
    $region38: #{cnn_cifar10_forward.5} parent=5 // pred_check_branch
      %2446 = sbr.rel (%p2444) target = $region40
    $region39: #{cnn_cifar10_forward.5} parent=5 // pred_region
      %s2447 = ssub.s32 %s9, 2
      // Predicated region
      $region41: #{cnn_cifar10_forward.5} parent=39 // pred_check
        %p2448 = pneg %p106
      $region42: #{cnn_cifar10_forward.5} parent=39 // pred_check_branch
        %2450 = sbr.rel (%p2448) target = $region44
      $region43: #{cnn_cifar10_forward.5} parent=39 // pred_region
        %p2451 = scmp.lt.s32.totalorder %s15, 1
        %s2452 = scalar_select %p2451, %s15, 1
        %s2453 = smul.addr %s2452, 8
        %s2454 = smul.addr %s2453, 8
        %s2455 = scalar_lea.vmem %s3, %s2454
      $region44: #{cnn_cifar10_forward.5} parent=39 // pred_fallthru
        _
    $region40: #{cnn_cifar10_forward.5} parent=5 // pred_fallthru
      _
  $region6: #{cnn_cifar10_forward.5} parent=0 // loop_footer
    %s13 = sadd.s32 1, %s9
  $region7: #{cnn_cifar10_forward.5} parent=0 // loop_footer_branch
    %8 = sbr.rel target = $region3
  $region8: #{cnn_cifar10_forward.5} parent=0 // loop_exit
    _

// kernel: cnn_cifar10_forward.6
$region0: #{cnn_cifar10_forward.6}
  #allocation0 [shape = 'u32[]', space=smem, size = 0x4, offset = 0x4, fixed_abs, tag = 'smem constant byte address 0x4 - core index']
  #allocation1 [shape = 'u32[144,128]{1,0:T(1,128)}', space=vmem, size = 0x12000, scoped, tag = 'internal scratch']
  %s0 = inlined_call_operand.vmem [shape: bf16[2,64,800], index: 0, kind: input, shape index: {}]
  %s1 = inlined_call_operand.vmem [shape: bf16[1,800,64], index: 1, kind: input, shape index: {}]
  %s2 = inlined_call_operand.vmem [shape: f32[1,64], index: 2, kind: input, shape index: {}]
  %s3 = inlined_call_operand.vmem [shape: f32[2,16,64], index: 3, kind: output, shape index: {}]
  %s4 = sld [smem:[#allocation0]]
  $region45: #{cnn_cifar10_forward.6} parent=0
    _
  %s6 = ssub.s32 1, %s4
  %s7 = scalar_select 0, %s6, %s4
  loop: start=0, step=1, limit=4
  $region2: #{cnn_cifar10_forward.6} parent=0 // loop_pre_header
    _
  $region3: #{cnn_cifar10_forward.6} parent=0 // loop_header
    %s9 = sphi 0, %s13
    %p10 = scmp.ge.s32.totalorder %s9, 4
    %s19 = sphi 0, %s21
    %s22 = sphi 0, %s19
    %s23 = sphi 0, %s22
    %s39 = sphi 0, %s23
    %s43 = sphi 0, %s43
    %s45 = sphi 0, %s43
    %s46 = sphi 0, %s45
    %s60 = sphi 0, %s46
    %s64 = sphi 0, %s64
    %s66 = sphi 0, %s64
    %s67 = sphi 0, %s66
    %s81 = sphi 0, %s67
    %s87 = sphi 0, %s89
    %s90 = sphi 0, %s87
    %s91 = sphi 0, %s90
    %s107 = sphi 0, %s91
  $region4: #{cnn_cifar10_forward.6} parent=0 // loop_header_branch
    %12 = sbr.rel (%p10) target = $region8
  $region5: #{cnn_cifar10_forward.6} parent=0 // loop_body
    %s14 = ssub.s32 %s9, 1
    %s15 = ssub.s32 %s9, 2
    %s16 = sadd.s32 %s9, 1
    %s17 = ssub.s32 %s9, %s16
    %p18 = scmp.eq.s32.totalorder %s17, 0
    %s20 = sadd.s32 %s19, 1
    %s21 = scalar_select %p18, %s19, %s20
    %p24 = pneg %p18
    %p25 = scmp.eq.s32.totalorder %s9, 1
    %p26 = por %p24, %p25
    %p27 = scmp.ne.s32.totalorder %s19, %s22
    %p28 = scmp.eq.s32.totalorder %s9, 0
    %p29 = por %p27, %p28
    %p30 = scmp.ne.s32.totalorder %s19, %s22
    %p31 = scmp.eq.s32.totalorder %s14, 1
    %p32 = por %p30, %p31
    %p33 = scmp.ne.s32.totalorder %s22, %s23
    %p34 = scmp.eq.s32.totalorder %s14, 0
    %p35 = por %p33, %p34
    %p36 = scmp.ne.s32.totalorder %s22, %s23
    %p37 = scmp.eq.s32.totalorder %s15, 1
    %p38 = por %p36, %p37
    %p40 = scmp.ne.s32.totalorder %s23, %s39
    %p41 = scmp.eq.s32.totalorder %s15, 0
    %p42 = por %p40, %p41
    %s44 = sadd.s32 %s43, 1
    %p47 = scmp.eq.s32.totalorder %s9, 1
    %p48 = scmp.ne.s32.totalorder %s43, %s45
    %p49 = scmp.eq.s32.totalorder %s9, 0
    %p50 = por %p48, %p49
    %p51 = scmp.ne.s32.totalorder %s43, %s45
    %p52 = scmp.eq.s32.totalorder %s14, 1
    %p53 = por %p51, %p52
    %p54 = scmp.ne.s32.totalorder %s45, %s46
    %p55 = scmp.eq.s32.totalorder %s14, 0
    %p56 = por %p54, %p55
    %p57 = scmp.ne.s32.totalorder %s45, %s46
    %p58 = scmp.eq.s32.totalorder %s15, 1
    %p59 = por %p57, %p58
    %p61 = scmp.ne.s32.totalorder %s46, %s60
    %p62 = scmp.eq.s32.totalorder %s15, 0
    %p63 = por %p61, %p62
    %s65 = sadd.s32 %s64, 1
    %p68 = scmp.eq.s32.totalorder %s9, 1
    %p69 = scmp.ne.s32.totalorder %s64, %s66
    %p70 = scmp.eq.s32.totalorder %s9, 0
    %p71 = por %p69, %p70
    %p72 = scmp.ne.s32.totalorder %s64, %s66
    %p73 = scmp.eq.s32.totalorder %s14, 1
    %p74 = por %p72, %p73
    %p75 = scmp.ne.s32.totalorder %s66, %s67
    %p76 = scmp.eq.s32.totalorder %s14, 0
    %p77 = por %p75, %p76
    %p78 = scmp.ne.s32.totalorder %s66, %s67
    %p79 = scmp.eq.s32.totalorder %s15, 1
    %p80 = por %p78, %p79
    %p82 = scmp.ne.s32.totalorder %s67, %s81
    %p83 = scmp.eq.s32.totalorder %s15, 0
    %p84 = por %p82, %p83
    %s85 = ssub.s32 %s9, %s16
    %p86 = scmp.eq.s32.totalorder %s85, 0
    %s88 = sadd.s32 %s87, 1
    %s89 = scalar_select %p86, %s87, %s88
    %p92 = pneg %p86
    %p93 = scmp.eq.s32.totalorder %s9, 1
    %p94 = por %p92, %p93
    %p95 = scmp.ne.s32.totalorder %s87, %s90
    %p96 = scmp.eq.s32.totalorder %s9, 0
    %p97 = por %p95, %p96
    %p98 = scmp.ne.s32.totalorder %s87, %s90
    %p99 = scmp.eq.s32.totalorder %s14, 1
    %p100 = por %p98, %p99
    %p101 = scmp.ne.s32.totalorder %s90, %s91
    %p102 = scmp.eq.s32.totalorder %s14, 0
    %p103 = por %p101, %p102
    %p104 = scmp.ne.s32.totalorder %s90, %s91
    %p105 = scmp.eq.s32.totalorder %s15, 1
    %p106 = por %p104, %p105
    %p108 = scmp.ne.s32.totalorder %s91, %s107
    %p109 = scmp.eq.s32.totalorder %s15, 0
    %p110 = por %p108, %p109
    %p111 = scmp.le.s32.totalorder 1, %s9
    %p112 = scmp.lt.s32.totalorder %s9, 3
    %p113 = pnand %p111, %p112
    %p114 = pneg %p113
    // Predicated region
    $region9: #{cnn_cifar10_forward.6} parent=5 // pred_check
      _
    $region10: #{cnn_cifar10_forward.6} parent=5 // pred_check_branch
      %116 = sbr.rel (%p113) target = $region12
    $region11: #{cnn_cifar10_forward.6} parent=5 // pred_region
      %s117 = ssub.s32 %s9, 1
      // Predicated region
      $region13: #{cnn_cifar10_forward.6} parent=11 // pred_check
        %p118 = pneg %p56
      $region14: #{cnn_cifar10_forward.6} parent=11 // pred_check_branch
        %120 = sbr.rel (%p118) target = $region16
      $region15: #{cnn_cifar10_forward.6} parent=11 // pred_region
        _
      $region16: #{cnn_cifar10_forward.6} parent=11 // pred_fallthru
        _
      // Predicated region
      $region17: #{cnn_cifar10_forward.6} parent=11 // pred_check
        %p121 = pneg %p77
      $region18: #{cnn_cifar10_forward.6} parent=11 // pred_check_branch
        %123 = sbr.rel (%p121) target = $region20
      $region19: #{cnn_cifar10_forward.6} parent=11 // pred_region
        _
      $region20: #{cnn_cifar10_forward.6} parent=11 // pred_fallthru
        _
    $region12: #{cnn_cifar10_forward.6} parent=5 // pred_fallthru
      _
    %p124 = scmp.lt.s32.totalorder %s9, 2
    // Predicated region
    $region21: #{cnn_cifar10_forward.6} parent=5 // pred_check
      %p125 = pneg %p124
    $region22: #{cnn_cifar10_forward.6} parent=5 // pred_check_branch
      %127 = sbr.rel (%p125) target = $region24
    $region23: #{cnn_cifar10_forward.6} parent=5 // pred_region
      // Predicated region
      $region25: #{cnn_cifar10_forward.6} parent=23 // pred_check
        %p128 = pneg %p29
      $region26: #{cnn_cifar10_forward.6} parent=23 // pred_check_branch
        %130 = sbr.rel (%p128) target = $region28
      $region27: #{cnn_cifar10_forward.6} parent=23 // pred_region
        %p131 = scmp.lt.s32.totalorder %s9, 1
        %s132 = scalar_select %p131, %s9, 1
        %s133 = smul.addr %s132, 56
        %s134 = smul.addr %s133, 4
        %s135 = scalar_lea.vmem %s0, %s134
      $region28: #{cnn_cifar10_forward.6} parent=23 // pred_fallthru
        _
    $region24: #{cnn_cifar10_forward.6} parent=5 // pred_fallthru
      _
    %p136 = scmp.le.s32.totalorder 1, %s9
    %p137 = scmp.lt.s32.totalorder %s9, 3
    %p138 = pnand %p136, %p137
    %p139 = pneg %p138
    // Predicated region
    $region29: #{cnn_cifar10_forward.6} parent=5 // pred_check
      _
    $region30: #{cnn_cifar10_forward.6} parent=5 // pred_check_branch
      %141 = sbr.rel (%p138) target = $region32
    $region31: #{cnn_cifar10_forward.6} parent=5 // pred_region
      %s142 = ssub.s32 %s9, 1
      %p143 = scmp.lt.s32.totalorder %s14, 1
      %s144 = scalar_select %p143, %s14, 1
      %s145 = smul.addr %s144, 56
      %s146 = smul.addr %s145, 4
      %s147 = scalar_lea.vmem %s0, %s146
      %p148 = pneg %p35
      %p149 = pneg %p32
      %p150 = pneg %p56
      %p151 = pneg %p53
      %p152 = pneg %p77
      %p153 = pneg %p74
      %p154 = pneg %p103
      %p155 = pneg %p100
      %p156 = scmp.lt.s32.totalorder %s14, 1
      %s157 = scalar_select %p156, %s14, 1
      %s158 = smul.addr %s157, 2
      %s159 = smul.addr %s158, 8
      %s160 = scalar_lea.vmem %s3, %s159
      %p161 = scmp.lt.s32.totalorder %s14, 1
      %s162 = scalar_select %p161, %s14, 1
      %s163 = smul.addr %s162, 56
      %s164 = smul.addr %s163, 4
      %s165 = scalar_lea.vmem %s0, %s164
      %p166 = scmp.lt.s32.totalorder %s14, 1
      %s167 = scalar_select %p166, %s14, 1
      %s168 = smul.addr %s167, 2
      %s169 = smul.addr %s168, 8
      %s170 = scalar_lea.vmem %s3, %s169
      %v172 = vld [vmem:[%s2] sm:$0x1]
      %v173 = vld [vmem:[%s165] sm:$0xff]
      %v174 = vld [vmem:[%s165 + $0x8] sm:$0xff]
      %v175 = vld [vmem:[%s165 + $0x10] sm:$0xff]
      %v176 = vld [vmem:[%s165 + $0x18] sm:$0xf]
      %v177 = vld [vmem:[%s165 + $0x1c] sm:$0xff]
      %v178 = vld [vmem:[%s165 + $0x24] sm:$0xff]
      %v179 = vld [vmem:[%s165 + $0x2c] sm:$0xff]
      %v180 = vld [vmem:[%s165 + $0x34] sm:$0xf]
      %v181 = vld [vmem:[%s165 + $0x38] sm:$0xff]
      %v182 = vld [vmem:[%s165 + $0x40] sm:$0xff]
      %v183 = vld [vmem:[%s165 + $0x48] sm:$0xff]
      %v184 = vld [vmem:[%s165 + $0x50] sm:$0xf]
      %v185 = vld [vmem:[%s165 + $0x54] sm:$0xff]
      %v186 = vld [vmem:[%s165 + $0x5c] sm:$0xff]
      %v187 = vld [vmem:[%s165 + $0x64] sm:$0xff]
      %v188 = vld [vmem:[%s165 + $0x6c] sm:$0xf]
      %v189 = vld [vmem:[%s165 + $0x70] sm:$0xff]
      %v190 = vld [vmem:[%s165 + $0x78] sm:$0xff]
      %v191 = vld [vmem:[%s165 + $0x80] sm:$0xff]
      %v192 = vld [vmem:[%s165 + $0x88] sm:$0xf]
      %v193 = vld [vmem:[%s165 + $0x8c] sm:$0xff]
      %v194 = vld [vmem:[%s165 + $0x94] sm:$0xff]
      %v195 = vld [vmem:[%s165 + $0x9c] sm:$0xff]
      %v196 = vld [vmem:[%s165 + $0xa4] sm:$0xf]
      %v197 = vld [vmem:[%s165 + $0xa8] sm:$0xff]
      %v198 = vld [vmem:[%s165 + $0xb0] sm:$0xff]
      %v199 = vld [vmem:[%s165 + $0xb8] sm:$0xff]
      %v200 = vld [vmem:[%s165 + $0xc0] sm:$0xf]
      %v201 = vld [vmem:[%s165 + $0xc4] sm:$0xff]
      %v202 = vld [vmem:[%s165 + $0xcc] sm:$0xff]
      %v203 = vld [vmem:[%s165 + $0xd4] sm:$0xff]
      %v204 = vld [vmem:[%s165 + $0xdc] sm:$0xf]
      %v205 = vld [vmem:[%s1] sm:$0xf]
      %v206 = vld [vmem:[%s1 + $0x4] sm:$0xf]
      %v207 = vld [vmem:[%s1 + $0x8] sm:$0xf]
      %v208 = vld [vmem:[%s1 + $0xc] sm:$0xf]
      %v209 = vld [vmem:[%s1 + $0x10] sm:$0xf]
      %v210 = vld [vmem:[%s1 + $0x14] sm:$0xf]
      %v211 = vld [vmem:[%s1 + $0x18] sm:$0xf]
      %v212 = vld [vmem:[%s1 + $0x1c] sm:$0xf]
      %v213 = vld [vmem:[%s1 + $0x20] sm:$0xf]
      %v214 = vld [vmem:[%s1 + $0x24] sm:$0xf]
      %v215 = vld [vmem:[%s1 + $0x28] sm:$0xf]
      %v216 = vld [vmem:[%s1 + $0x2c] sm:$0xf]
      %v217 = vld [vmem:[%s1 + $0x30] sm:$0xf]
      %v218 = vld [vmem:[%s1 + $0x34] sm:$0xf]
      %v219 = vld [vmem:[%s1 + $0x38] sm:$0xf]
      %v220 = vld [vmem:[%s1 + $0x3c] sm:$0xf]
      %v221 = vld [vmem:[%s1 + $0x40] sm:$0xf]
      %v222 = vld [vmem:[%s1 + $0x44] sm:$0xf]
      %v223 = vld [vmem:[%s1 + $0x48] sm:$0xf]
      %v224 = vld [vmem:[%s1 + $0x4c] sm:$0xf]
      %v225 = vld [vmem:[%s1 + $0x50] sm:$0xf]
      %v226 = vld [vmem:[%s1 + $0x54] sm:$0xf]
      %v227 = vld [vmem:[%s1 + $0x58] sm:$0xf]
      %v228 = vld [vmem:[%s1 + $0x5c] sm:$0xf]
      %v229 = vld [vmem:[%s1 + $0x60] sm:$0xf]
      %v230 = vld [vmem:[%s1 + $0x64] sm:$0xf]
      %v231 = vld [vmem:[%s1 + $0x68] sm:$0xf]
      %v232 = vld [vmem:[%s1 + $0x6c] sm:$0xf]
      %v233 = vld [vmem:[%s1 + $0x70] sm:$0xf]
      %v234 = vld [vmem:[%s1 + $0x74] sm:$0xf]
      %v235 = vld [vmem:[%s1 + $0x78] sm:$0xf]
      %v236 = vld [vmem:[%s1 + $0x7c] sm:$0xf]
      %v237 = vld [vmem:[%s1 + $0x80] sm:$0xf]
      %v238 = vld [vmem:[%s1 + $0x84] sm:$0xf]
      %v239 = vld [vmem:[%s1 + $0x88] sm:$0xf]
      %v240 = vld [vmem:[%s1 + $0x8c] sm:$0xf]
      %v241 = vld [vmem:[%s1 + $0x90] sm:$0xf]
      %v242 = vld [vmem:[%s1 + $0x94] sm:$0xf]
      %v243 = vld [vmem:[%s1 + $0x98] sm:$0xf]
      %v244 = vld [vmem:[%s1 + $0x9c] sm:$0xf]
      %v245 = vld [vmem:[%s1 + $0xa0] sm:$0xf]
      %v246 = vld [vmem:[%s1 + $0xa4] sm:$0xf]
      %v247 = vld [vmem:[%s1 + $0xa8] sm:$0xf]
      %v248 = vld [vmem:[%s1 + $0xac] sm:$0xf]
      %v249 = vld [vmem:[%s1 + $0xb0] sm:$0xf]
      %v250 = vld [vmem:[%s1 + $0xb4] sm:$0xf]
      %v251 = vld [vmem:[%s1 + $0xb8] sm:$0xf]
      %v252 = vld [vmem:[%s1 + $0xbc] sm:$0xf]
      %v253 = vld [vmem:[%s1 + $0xc0] sm:$0xf]
      %v254 = vld [vmem:[%s1 + $0xc4] sm:$0xf]
      %v255 = vld [vmem:[%s1 + $0xc8] sm:$0xf]
      %v256 = vld [vmem:[%s1 + $0xcc] sm:$0xf]
      %v257 = vld [vmem:[%s1 + $0xd0] sm:$0xf]
      %v258 = vld [vmem:[%s1 + $0xd4] sm:$0xf]
      %v259 = vld [vmem:[%s1 + $0xd8] sm:$0xf]
      %v260 = vld [vmem:[%s1 + $0xdc] sm:$0xf]
      %v261 = vld [vmem:[%s1 + $0xe0] sm:$0xf]
      %v262 = vld [vmem:[%s1 + $0xe4] sm:$0xf]
      %v263 = vld [vmem:[%s1 + $0xe8] sm:$0xf]
      %v264 = vld [vmem:[%s1 + $0xec] sm:$0xf]
      %v265 = vld [vmem:[%s1 + $0xf0] sm:$0xf]
      %v266 = vld [vmem:[%s1 + $0xf4] sm:$0xf]
      %v267 = vld [vmem:[%s1 + $0xf8] sm:$0xf]
      %v268 = vld [vmem:[%s1 + $0xfc] sm:$0xf]
      %v269 = vld [vmem:[%s1 + $0x100] sm:$0xf]
      %v270 = vld [vmem:[%s1 + $0x104] sm:$0xf]
      %v271 = vld [vmem:[%s1 + $0x108] sm:$0xf]
      %v272 = vld [vmem:[%s1 + $0x10c] sm:$0xf]
      %v273 = vld [vmem:[%s1 + $0x110] sm:$0xf]
      %v274 = vld [vmem:[%s1 + $0x114] sm:$0xf]
      %v275 = vld [vmem:[%s1 + $0x118] sm:$0xf]
      %v276 = vld [vmem:[%s1 + $0x11c] sm:$0xf]
      %v277 = vld [vmem:[%s1 + $0x120] sm:$0xf]
      %v278 = vld [vmem:[%s1 + $0x124] sm:$0xf]
      %v279 = vld [vmem:[%s1 + $0x128] sm:$0xf]
      %v280 = vld [vmem:[%s1 + $0x12c] sm:$0xf]
      %v281 = vld [vmem:[%s1 + $0x130] sm:$0xf]
      %v282 = vld [vmem:[%s1 + $0x134] sm:$0xf]
      %v283 = vld [vmem:[%s1 + $0x138] sm:$0xf]
      %v284 = vld [vmem:[%s1 + $0x13c] sm:$0xf]
      %v285 = vld [vmem:[%s1 + $0x140] sm:$0xf]
      %v286 = vld [vmem:[%s1 + $0x144] sm:$0xf]
      %v287 = vld [vmem:[%s1 + $0x148] sm:$0xf]
      %v288 = vld [vmem:[%s1 + $0x14c] sm:$0xf]
      %v289 = vld [vmem:[%s1 + $0x150] sm:$0xf]
      %v290 = vld [vmem:[%s1 + $0x154] sm:$0xf]
      %v291 = vld [vmem:[%s1 + $0x158] sm:$0xf]
      %v292 = vld [vmem:[%s1 + $0x15c] sm:$0xf]
      %v293 = vld [vmem:[%s1 + $0x160] sm:$0xf]
      %v294 = vld [vmem:[%s1 + $0x164] sm:$0xf]
      %v295 = vld [vmem:[%s1 + $0x168] sm:$0xf]
      %v296 = vld [vmem:[%s1 + $0x16c] sm:$0xf]
      %v297 = vld [vmem:[%s1 + $0x170] sm:$0xf]
      %v298 = vld [vmem:[%s1 + $0x174] sm:$0xf]
      %v299 = vld [vmem:[%s1 + $0x178] sm:$0xf]
      %v300 = vld [vmem:[%s1 + $0x17c] sm:$0xf]
      %v301 = vld [vmem:[%s1 + $0x180] sm:$0xf]
      %v302 = vld [vmem:[%s1 + $0x184] sm:$0xf]
      %v303 = vld [vmem:[%s1 + $0x188] sm:$0xf]
      %v304 = vld [vmem:[%s1 + $0x18c] sm:$0xf]
      %v337 = vunpack.c.l.b16 %v173
      %v338 = vunpack.c.h.b16 %v173
      %v339 = vunpack.c.l.b16 %v174
      %v340 = vunpack.c.h.b16 %v174
      %v341 = vunpack.c.l.b16 %v175
      %v342 = vunpack.c.h.b16 %v175
      %v343 = vunpack.c.l.b16 %v176
      %v344 = vunpack.c.l.b16 %v177
      %v345 = vunpack.c.h.b16 %v177
      %v346 = vunpack.c.l.b16 %v178
      %v347 = vunpack.c.h.b16 %v178
      %v348 = vunpack.c.l.b16 %v179
      %v349 = vunpack.c.h.b16 %v179
      %v350 = vunpack.c.l.b16 %v180
      %v351 = vunpack.c.l.b16 %v181
      %v352 = vunpack.c.h.b16 %v181
      %v353 = vunpack.c.l.b16 %v182
      %v354 = vunpack.c.h.b16 %v182
      %v355 = vunpack.c.l.b16 %v183
      %v356 = vunpack.c.h.b16 %v183
      %v357 = vunpack.c.l.b16 %v184
      %v358 = vunpack.c.l.b16 %v185
      %v359 = vunpack.c.h.b16 %v185
      %v360 = vunpack.c.l.b16 %v186
      %v361 = vunpack.c.h.b16 %v186
      %v362 = vunpack.c.l.b16 %v187
      %v363 = vunpack.c.h.b16 %v187
      %v364 = vunpack.c.l.b16 %v188
      %v365 = vunpack.c.l.b16 %v189
      %v366 = vunpack.c.h.b16 %v189
      %v367 = vunpack.c.l.b16 %v190
      %v368 = vunpack.c.h.b16 %v190
      %v369 = vunpack.c.l.b16 %v191
      %v370 = vunpack.c.h.b16 %v191
      %v371 = vunpack.c.l.b16 %v192
      %v372 = vunpack.c.l.b16 %v193
      %v373 = vunpack.c.h.b16 %v193
      %v374 = vunpack.c.l.b16 %v194
      %v375 = vunpack.c.h.b16 %v194
      %v376 = vunpack.c.l.b16 %v195
      %v377 = vunpack.c.h.b16 %v195
      %v378 = vunpack.c.l.b16 %v196
      %v379 = vunpack.c.l.b16 %v197
      %v380 = vunpack.c.h.b16 %v197
      %v381 = vunpack.c.l.b16 %v198
      %v382 = vunpack.c.h.b16 %v198
      %v383 = vunpack.c.l.b16 %v199
      %v384 = vunpack.c.h.b16 %v199
      %v385 = vunpack.c.l.b16 %v200
      %v386 = vunpack.c.l.b16 %v201
      %v387 = vunpack.c.h.b16 %v201
      %v388 = vunpack.c.l.b16 %v202
      %v389 = vunpack.c.h.b16 %v202
      %v390 = vunpack.c.l.b16 %v203
      %v391 = vunpack.c.h.b16 %v203
      %v392 = vunpack.c.l.b16 %v204
      %v393 = vpack.c.b16 %v344, %v337
      %v394 = vpack.c.b16 %v345, %v338
      %v395 = vpack.c.b16 %v346, %v339
      %v396 = vpack.c.b16 %v347, %v340
      %v397 = vpack.c.b16 %v348, %v341
      %v398 = vpack.c.b16 %v349, %v342
      %v399 = vpack.c.b16 %v350, %v343
      %v400 = vpack.c.b16 %v358, %v351
      %v401 = vpack.c.b16 %v359, %v352
      %v402 = vpack.c.b16 %v360, %v353
      %v403 = vpack.c.b16 %v361, %v354
      %v404 = vpack.c.b16 %v362, %v355
      %v405 = vpack.c.b16 %v363, %v356
      %v406 = vpack.c.b16 %v364, %v357
      %v407 = vpack.c.b16 %v372, %v365
      %v408 = vpack.c.b16 %v373, %v366
      %v409 = vpack.c.b16 %v374, %v367
      %v410 = vpack.c.b16 %v375, %v368
      %v411 = vpack.c.b16 %v376, %v369
      %v412 = vpack.c.b16 %v377, %v370
      %v413 = vpack.c.b16 %v378, %v371
      %v414 = vpack.c.b16 %v386, %v379
      %v415 = vpack.c.b16 %v387, %v380
      %v416 = vpack.c.b16 %v388, %v381
      %v417 = vpack.c.b16 %v389, %v382
      %v418 = vpack.c.b16 %v390, %v383
      %v419 = vpack.c.b16 %v391, %v384
      %v420 = vpack.c.b16 %v392, %v385
      %v545 = vunpack.c.l.b16 %v205
      %v546 = vunpack.c.l.b16 %v206
      %v547 = vunpack.c.l.b16 %v207
      %v548 = vunpack.c.l.b16 %v208
      %v549 = vunpack.c.l.b16 %v209
      %v550 = vunpack.c.l.b16 %v210
      %v551 = vunpack.c.l.b16 %v211
      %v552 = vunpack.c.l.b16 %v212
      %v553 = vunpack.c.l.b16 %v213
      %v554 = vunpack.c.l.b16 %v214
      %v555 = vunpack.c.l.b16 %v215
      %v556 = vunpack.c.l.b16 %v216
      %v557 = vunpack.c.l.b16 %v217
      %v558 = vunpack.c.l.b16 %v218
      %v559 = vunpack.c.l.b16 %v219
      %v560 = vunpack.c.l.b16 %v220
      %v561 = vunpack.c.l.b16 %v221
      %v562 = vunpack.c.l.b16 %v222
      %v563 = vunpack.c.l.b16 %v223
      %v564 = vunpack.c.l.b16 %v224
      %v565 = vunpack.c.l.b16 %v225
      %v566 = vunpack.c.l.b16 %v226
      %v567 = vunpack.c.l.b16 %v227
      %v568 = vunpack.c.l.b16 %v228
      %v569 = vunpack.c.l.b16 %v229
      %v570 = vunpack.c.l.b16 %v230
      %v571 = vunpack.c.l.b16 %v231
      %v572 = vunpack.c.l.b16 %v232
      %v573 = vunpack.c.l.b16 %v233
      %v574 = vunpack.c.l.b16 %v234
      %v575 = vunpack.c.l.b16 %v235
      %v576 = vunpack.c.l.b16 %v236
      %v577 = vunpack.c.l.b16 %v237
      %v578 = vunpack.c.l.b16 %v238
      %v579 = vunpack.c.l.b16 %v239
      %v580 = vunpack.c.l.b16 %v240
      %v581 = vunpack.c.l.b16 %v241
      %v582 = vunpack.c.l.b16 %v242
      %v583 = vunpack.c.l.b16 %v243
      %v584 = vunpack.c.l.b16 %v244
      %v585 = vunpack.c.l.b16 %v245
      %v586 = vunpack.c.l.b16 %v246
      %v587 = vunpack.c.l.b16 %v247
      %v588 = vunpack.c.l.b16 %v248
      %v589 = vunpack.c.l.b16 %v249
      %v590 = vunpack.c.l.b16 %v250
      %v591 = vunpack.c.l.b16 %v251
      %v592 = vunpack.c.l.b16 %v252
      %v593 = vunpack.c.l.b16 %v253
      %v594 = vunpack.c.l.b16 %v254
      %v595 = vunpack.c.l.b16 %v255
      %v596 = vunpack.c.l.b16 %v256
      %v597 = vunpack.c.l.b16 %v257
      %v598 = vunpack.c.l.b16 %v258
      %v599 = vunpack.c.l.b16 %v259
      %v600 = vunpack.c.l.b16 %v260
      %v601 = vunpack.c.l.b16 %v261
      %v602 = vunpack.c.l.b16 %v262
      %v603 = vunpack.c.l.b16 %v263
      %v604 = vunpack.c.l.b16 %v264
      %v605 = vunpack.c.l.b16 %v265
      %v606 = vunpack.c.l.b16 %v266
      %v607 = vunpack.c.l.b16 %v267
      %v608 = vunpack.c.l.b16 %v268
      %v609 = vunpack.c.l.b16 %v269
      %v610 = vunpack.c.l.b16 %v270
      %v611 = vunpack.c.l.b16 %v271
      %v612 = vunpack.c.l.b16 %v272
      %v613 = vunpack.c.l.b16 %v273
      %v614 = vunpack.c.l.b16 %v274
      %v615 = vunpack.c.l.b16 %v275
      %v616 = vunpack.c.l.b16 %v276
      %v617 = vunpack.c.l.b16 %v277
      %v618 = vunpack.c.l.b16 %v278
      %v619 = vunpack.c.l.b16 %v279
      %v620 = vunpack.c.l.b16 %v280
      %v621 = vunpack.c.l.b16 %v281
      %v622 = vunpack.c.l.b16 %v282
      %v623 = vunpack.c.l.b16 %v283
      %v624 = vunpack.c.l.b16 %v284
      %v625 = vunpack.c.l.b16 %v285
      %v626 = vunpack.c.l.b16 %v286
      %v627 = vunpack.c.l.b16 %v287
      %v628 = vunpack.c.l.b16 %v288
      %v629 = vunpack.c.l.b16 %v289
      %v630 = vunpack.c.l.b16 %v290
      %v631 = vunpack.c.l.b16 %v291
      %v632 = vunpack.c.l.b16 %v292
      %v633 = vunpack.c.l.b16 %v293
      %v634 = vunpack.c.l.b16 %v294
      %v635 = vunpack.c.l.b16 %v295
      %v636 = vunpack.c.l.b16 %v296
      %v637 = vunpack.c.l.b16 %v297
      %v638 = vunpack.c.l.b16 %v298
      %v639 = vunpack.c.l.b16 %v299
      %v640 = vunpack.c.l.b16 %v300
      %v641 = vunpack.c.l.b16 %v301
      %v642 = vunpack.c.l.b16 %v302
      %v643 = vunpack.c.l.b16 %v303
      %v644 = vunpack.c.l.b16 %v304
      %v645 = vpack.c.b16 %v546, %v545
      %v646 = vpack.c.b16 %v548, %v547
      %v647 = vpack.c.b16 %v550, %v549
      %v648 = vpack.c.b16 %v552, %v551
      %v649 = vpack.c.b16 %v554, %v553
      %v650 = vpack.c.b16 %v556, %v555
      %v651 = vpack.c.b16 %v558, %v557
      %v652 = vpack.c.b16 %v560, %v559
      %v653 = vpack.c.b16 %v562, %v561
      %v654 = vpack.c.b16 %v564, %v563
      %v655 = vpack.c.b16 %v566, %v565
      %v656 = vpack.c.b16 %v568, %v567
      %v657 = vpack.c.b16 %v570, %v569
      %v658 = vpack.c.b16 %v572, %v571
      %v659 = vpack.c.b16 %v574, %v573
      %v660 = vpack.c.b16 %v576, %v575
      %v661 = vpack.c.b16 %v578, %v577
      %v662 = vpack.c.b16 %v580, %v579
      %v663 = vpack.c.b16 %v582, %v581
      %v664 = vpack.c.b16 %v584, %v583
      %v665 = vpack.c.b16 %v586, %v585
      %v666 = vpack.c.b16 %v588, %v587
      %v667 = vpack.c.b16 %v590, %v589
      %v668 = vpack.c.b16 %v592, %v591
      %v669 = vpack.c.b16 %v594, %v593
      %v670 = vpack.c.b16 %v596, %v595
      %v671 = vpack.c.b16 %v598, %v597
      %v672 = vpack.c.b16 %v600, %v599
      %v673 = vpack.c.b16 %v602, %v601
      %v674 = vpack.c.b16 %v604, %v603
      %v675 = vpack.c.b16 %v606, %v605
      %v676 = vpack.c.b16 %v608, %v607
      %v677 = vpack.c.b16 %v610, %v609
      %v678 = vpack.c.b16 %v612, %v611
      %v679 = vpack.c.b16 %v614, %v613
      %v680 = vpack.c.b16 %v616, %v615
      %v681 = vpack.c.b16 %v618, %v617
      %v682 = vpack.c.b16 %v620, %v619
      %v683 = vpack.c.b16 %v622, %v621
      %v684 = vpack.c.b16 %v624, %v623
      %v685 = vpack.c.b16 %v626, %v625
      %v686 = vpack.c.b16 %v628, %v627
      %v687 = vpack.c.b16 %v630, %v629
      %v688 = vpack.c.b16 %v632, %v631
      %v689 = vpack.c.b16 %v634, %v633
      %v690 = vpack.c.b16 %v636, %v635
      %v691 = vpack.c.b16 %v638, %v637
      %v692 = vpack.c.b16 %v640, %v639
      %v693 = vpack.c.b16 %v642, %v641
      %v694 = vpack.c.b16 %v644, %v643
      %vm745 = vcmask 261120
      %v747 = vsel %vm745, %v399, 0
      %v750 = vsel %vm745, %v406, 0
      %v753 = vsel %vm745, %v413, 0
      %v756 = vsel %vm745, %v420, 0
      %758 = vmatprep.subr.bf16.mxu0 0
      %759 = vmatpush1.bf16.msra.mxu0 %v645
      %760 = vmatprep.subr.bf16.mxu0 0
      %761 = vmatpush1.bf16.msra.mxu0 %v646
      %762 = vmatprep.subr.bf16.mxu0 0
      %763 = vmatpush1.bf16.msra.mxu0 %v647
      %764 = vmatprep.subr.bf16.mxu0 0
      %765 = vmatpush1.bf16.msra.mxu0 %v648
      %766 = vmatprep.subr.bf16.mxu0 0
      %767 = vmatpush1.bf16.msra.mxu0 %v649
      %768 = vmatprep.subr.bf16.mxu0 0
      %769 = vmatpush1.bf16.msra.mxu0 %v650
      %770 = vmatprep.subr.bf16.mxu0 0
      %771 = vmatpush1.bf16.msra.mxu0 %v651
      %772 = vmatprep.subr.bf16.mxu0 0
      %773 = vmatpush1.bf16.msra.mxu0 %v652
      %774 = vmatprep.subr.bf16.mxu0 0
      %775 = vmatpush1.bf16.msra.mxu0 %v653
      %776 = vmatprep.subr.bf16.mxu0 0
      %777 = vmatpush1.bf16.msra.mxu0 %v654
      %778 = vmatprep.subr.bf16.mxu0 0
      %779 = vmatpush1.bf16.msra.mxu0 %v655
      %780 = vmatprep.subr.bf16.mxu0 0
      %781 = vmatpush1.bf16.msra.mxu0 %v656
      %782 = vmatprep.subr.bf16.mxu0 0
      %783 = vmatpush1.bf16.msra.mxu0 %v657
      %784 = vmatprep.subr.bf16.mxu0 0
      %785 = vmatpush1.bf16.msra.mxu0 %v658
      %786 = vmatprep.subr.bf16.mxu0 0
      %787 = vmatpush1.bf16.msra.mxu0 %v659
      %788 = vmatprep.subr.bf16.mxu0 0
      %789 = vmatpush1.bf16.msra.mxu0 %v660
      %790 = vmatprep.mubr.bf16.mxu0 %v394
      %791 = vmatmul.mubr.bf16.gmra.mrb[0].mxu0 %v393
      %v792 = vpop.f32.mrb[0].mxu0
      %v793 = vadd.f32 0.0, %v792
      %v794 = vpop.f32.mrb[0].mxu0
      %v795 = vpop.f32.mrb[0].mxu0
      %v796 = vadd.f32 0.0, %v795
      %v797 = vpop.f32.mrb[0].mxu0
      %798 = vmatprep.mubr.bf16.mxu0 %v401
      %799 = vmatmul.mubr.bf16.gmra.mrb[0].mxu0 %v400
      %v800 = vpop.f32.mrb[0].mxu0
      %v801 = vadd.f32 0.0, %v800
      %v802 = vpop.f32.mrb[0].mxu0
      %v803 = vpop.f32.mrb[0].mxu0
      %v804 = vadd.f32 0.0, %v803
      %v805 = vpop.f32.mrb[0].mxu0
      %806 = vmatprep.mubr.bf16.mxu0 %v408
      %807 = vmatmul.mubr.bf16.gmra.mrb[0].mxu0 %v407
      %v808 = vpop.f32.mrb[0].mxu0
      %v809 = vadd.f32 0.0, %v808
      %v810 = vpop.f32.mrb[0].mxu0
      %v811 = vpop.f32.mrb[0].mxu0
      %v812 = vadd.f32 0.0, %v811
      %v813 = vpop.f32.mrb[0].mxu0
      %814 = vmatprep.mubr.bf16.mxu0 %v415
      %815 = vmatmul.mubr.bf16.gmra.mrb[0].mxu0 %v414
      %v816 = vpop.f32.mrb[0].mxu0
      %v817 = vadd.f32 0.0, %v816
      %v818 = vpop.f32.mrb[0].mxu0
      %v819 = vpop.f32.mrb[0].mxu0
      %v820 = vadd.f32 0.0, %v819
      %v821 = vpop.f32.mrb[0].mxu0
      %822 = vdwg.mxu0
      %823 = vmatprep.subr.bf16.mxu0 0
      %824 = vmatpush1.bf16.msra.mxu0 %v661
      %825 = vmatprep.subr.bf16.mxu0 0
      %826 = vmatpush1.bf16.msra.mxu0 %v662
      %827 = vmatprep.subr.bf16.mxu0 0
      %828 = vmatpush1.bf16.msra.mxu0 %v663
      %829 = vmatprep.subr.bf16.mxu0 0
      %830 = vmatpush1.bf16.msra.mxu0 %v664
      %831 = vmatprep.subr.bf16.mxu0 0
      %832 = vmatpush1.bf16.msra.mxu0 %v665
      %833 = vmatprep.subr.bf16.mxu0 0
      %834 = vmatpush1.bf16.msra.mxu0 %v666
      %835 = vmatprep.subr.bf16.mxu0 0
      %836 = vmatpush1.bf16.msra.mxu0 %v667
      %837 = vmatprep.subr.bf16.mxu0 0
      %838 = vmatpush1.bf16.msra.mxu0 %v668
      %839 = vmatprep.subr.bf16.mxu0 0
      %840 = vmatpush1.bf16.msra.mxu0 %v669
      %841 = vmatprep.subr.bf16.mxu0 0
      %842 = vmatpush1.bf16.msra.mxu0 %v670
      %843 = vmatprep.subr.bf16.mxu0 0
      %844 = vmatpush1.bf16.msra.mxu0 %v671
      %845 = vmatprep.subr.bf16.mxu0 0
      %846 = vmatpush1.bf16.msra.mxu0 %v672
      %847 = vmatprep.subr.bf16.mxu0 0
      %848 = vmatpush1.bf16.msra.mxu0 %v673
      %849 = vmatprep.subr.bf16.mxu0 0
      %850 = vmatpush1.bf16.msra.mxu0 %v674
      %851 = vmatprep.subr.bf16.mxu0 0
      %852 = vmatpush1.bf16.msra.mxu0 %v675
      %853 = vmatprep.subr.bf16.mxu0 0
      %854 = vmatpush1.bf16.msra.mxu0 %v676
      %855 = vmatprep.mubr.bf16.mxu0 %v396
      %856 = vmatmul.mubr.bf16.gmra.mrb[0].mxu0 %v395
      %v857 = vpop.f32.mrb[0].mxu0
      %v858 = vadd.f32 %v793, %v857
      %v859 = vpop.f32.mrb[0].mxu0
      %v860 = vpop.f32.mrb[0].mxu0
      %v861 = vadd.f32 %v796, %v860
      %v862 = vpop.f32.mrb[0].mxu0
      %863 = vmatprep.mubr.bf16.mxu0 %v403
      %864 = vmatmul.mubr.bf16.gmra.mrb[0].mxu0 %v402
      %v865 = vpop.f32.mrb[0].mxu0
      %v866 = vadd.f32 %v801, %v865
      %v867 = vpop.f32.mrb[0].mxu0
      %v868 = vpop.f32.mrb[0].mxu0
      %v869 = vadd.f32 %v804, %v868
      %v870 = vpop.f32.mrb[0].mxu0
      %871 = vmatprep.mubr.bf16.mxu0 %v410
      %872 = vmatmul.mubr.bf16.gmra.mrb[0].mxu0 %v409
      %v873 = vpop.f32.mrb[0].mxu0
      %v874 = vadd.f32 %v809, %v873
      %v875 = vpop.f32.mrb[0].mxu0
      %v876 = vpop.f32.mrb[0].mxu0
      %v877 = vadd.f32 %v812, %v876
      %v878 = vpop.f32.mrb[0].mxu0
      %879 = vmatprep.mubr.bf16.mxu0 %v417
      %880 = vmatmul.mubr.bf16.gmra.mrb[0].mxu0 %v416
      %v881 = vpop.f32.mrb[0].mxu0
      %v882 = vadd.f32 %v817, %v881
      %v883 = vpop.f32.mrb[0].mxu0
      %v884 = vpop.f32.mrb[0].mxu0
      %v885 = vadd.f32 %v820, %v884
      %v886 = vpop.f32.mrb[0].mxu0
      %887 = vdwg.mxu0
      %888 = vmatprep.subr.bf16.mxu0 0
      %889 = vmatpush1.bf16.msra.mxu0 %v677
      %890 = vmatprep.subr.bf16.mxu0 0
      %891 = vmatpush1.bf16.msra.mxu0 %v678
      %892 = vmatprep.subr.bf16.mxu0 0
      %893 = vmatpush1.bf16.msra.mxu0 %v679
      %894 = vmatprep.subr.bf16.mxu0 0
      %895 = vmatpush1.bf16.msra.mxu0 %v680
      %896 = vmatprep.subr.bf16.mxu0 0
      %897 = vmatpush1.bf16.msra.mxu0 %v681
      %898 = vmatprep.subr.bf16.mxu0 0
      %899 = vmatpush1.bf16.msra.mxu0 %v682
      %900 = vmatprep.subr.bf16.mxu0 0
      %901 = vmatpush1.bf16.msra.mxu0 %v683
      %902 = vmatprep.subr.bf16.mxu0 0
      %903 = vmatpush1.bf16.msra.mxu0 %v684
      %904 = vmatprep.subr.bf16.mxu0 0
      %905 = vmatpush1.bf16.msra.mxu0 %v685
      %906 = vmatprep.subr.bf16.mxu0 0
      %907 = vmatpush1.bf16.msra.mxu0 %v686
      %908 = vmatprep.subr.bf16.mxu0 0
      %909 = vmatpush1.bf16.msra.mxu0 %v687
      %910 = vmatprep.subr.bf16.mxu0 0
      %911 = vmatpush1.bf16.msra.mxu0 %v688
      %912 = vmatprep.subr.bf16.mxu0 0
      %913 = vmatpush1.bf16.msra.mxu0 %v689
      %914 = vmatprep.subr.bf16.mxu0 0
      %915 = vmatpush1.bf16.msra.mxu0 %v690
      %916 = vmatprep.subr.bf16.mxu0 0
      %917 = vmatpush1.bf16.msra.mxu0 %v691
      %918 = vmatprep.subr.bf16.mxu0 0
      %919 = vmatpush1.bf16.msra.mxu0 %v692
      %920 = vmatprep.mubr.bf16.mxu0 %v398
      %921 = vmatmul.mubr.bf16.gmra.mrb[0].mxu0 %v397
      %v922 = vpop.f32.mrb[0].mxu0
      %v923 = vadd.f32 %v858, %v922
      %v924 = vpop.f32.mrb[0].mxu0
      %v925 = vpop.f32.mrb[0].mxu0
      %v926 = vadd.f32 %v861, %v925
      %v927 = vpop.f32.mrb[0].mxu0
      %928 = vmatprep.mubr.bf16.mxu0 %v405
      %929 = vmatmul.mubr.bf16.gmra.mrb[0].mxu0 %v404
      %v930 = vpop.f32.mrb[0].mxu0
      %v931 = vadd.f32 %v866, %v930
      %v932 = vpop.f32.mrb[0].mxu0
      %v933 = vpop.f32.mrb[0].mxu0
      %v934 = vadd.f32 %v869, %v933
      %v935 = vpop.f32.mrb[0].mxu0
      %936 = vmatprep.mubr.bf16.mxu0 %v412
      %937 = vmatmul.mubr.bf16.gmra.mrb[0].mxu0 %v411
      %v938 = vpop.f32.mrb[0].mxu0
      %v939 = vadd.f32 %v874, %v938
      %v940 = vpop.f32.mrb[0].mxu0
      %v941 = vpop.f32.mrb[0].mxu0
      %v942 = vadd.f32 %v877, %v941
      %v943 = vpop.f32.mrb[0].mxu0
      %944 = vmatprep.mubr.bf16.mxu0 %v419
      %945 = vmatmul.mubr.bf16.gmra.mrb[0].mxu0 %v418
      %v946 = vpop.f32.mrb[0].mxu0
      %v947 = vadd.f32 %v882, %v946
      %v948 = vpop.f32.mrb[0].mxu0
      %v949 = vpop.f32.mrb[0].mxu0
      %v950 = vadd.f32 %v885, %v949
      %v951 = vpop.f32.mrb[0].mxu0
      %952 = vdwg.mxu0
      %953 = vmatprep.subr.bf16.mxu0 0
      %954 = vmatpush1.bf16.msra.mxu0 %v693
      %955 = vmatprep.subr.bf16.mxu0 0
      %956 = vmatpush1.bf16.msra.mxu0 %v694
      %957 = vmatprep.subr.bf16.mxu0 0
      %958 = vmatpush1.bf16.msra.mxu0 0
      %959 = vmatprep.subr.bf16.mxu0 0
      %960 = vmatpush1.bf16.msra.mxu0 0
      %961 = vmatprep.subr.bf16.mxu0 0
      %962 = vmatpush1.bf16.msra.mxu0 0
      %963 = vmatprep.subr.bf16.mxu0 0
      %964 = vmatpush1.bf16.msra.mxu0 0
      %965 = vmatprep.subr.bf16.mxu0 0
      %966 = vmatpush1.bf16.msra.mxu0 0
      %967 = vmatprep.subr.bf16.mxu0 0
      %968 = vmatpush1.bf16.msra.mxu0 0
      %969 = vmatprep.subr.bf16.mxu0 0
      %970 = vmatpush1.bf16.msra.mxu0 0
      %971 = vmatprep.subr.bf16.mxu0 0
      %972 = vmatpush1.bf16.msra.mxu0 0
      %973 = vmatprep.subr.bf16.mxu0 0
      %974 = vmatpush1.bf16.msra.mxu0 0
      %975 = vmatprep.subr.bf16.mxu0 0
      %976 = vmatpush1.bf16.msra.mxu0 0
      %977 = vmatprep.subr.bf16.mxu0 0
      %978 = vmatpush1.bf16.msra.mxu0 0
      %979 = vmatprep.subr.bf16.mxu0 0
      %980 = vmatpush1.bf16.msra.mxu0 0
      %981 = vmatprep.subr.bf16.mxu0 0
      %982 = vmatpush1.bf16.msra.mxu0 0
      %983 = vmatprep.subr.bf16.mxu0 0
      %984 = vmatpush1.bf16.msra.mxu0 0
      %985 = vmatprep.mubr.bf16.mxu0 0
      %986 = vmatmul.mubr.bf16.gmra.mrb[0].mxu0 %v747
      %v987 = vpop.f32.mrb[0].mxu0
      %v988 = vadd.f32 %v923, %v987
      %v989 = vpop.f32.mrb[0].mxu0
      %v990 = vpop.f32.mrb[0].mxu0
      %v991 = vadd.f32 %v926, %v990
      %v992 = vpop.f32.mrb[0].mxu0
      %993 = vmatprep.mubr.bf16.mxu0 0
      %994 = vmatmul.mubr.bf16.gmra.mrb[0].mxu0 %v750
      %v995 = vpop.f32.mrb[0].mxu0
      %v996 = vadd.f32 %v931, %v995
      %v997 = vpop.f32.mrb[0].mxu0
      %v998 = vpop.f32.mrb[0].mxu0
      %v999 = vadd.f32 %v934, %v998
      %v1000 = vpop.f32.mrb[0].mxu0
      %1001 = vmatprep.mubr.bf16.mxu0 0
      %1002 = vmatmul.mubr.bf16.gmra.mrb[0].mxu0 %v753
      %v1003 = vpop.f32.mrb[0].mxu0
      %v1004 = vadd.f32 %v939, %v1003
      %v1005 = vpop.f32.mrb[0].mxu0
      %v1006 = vpop.f32.mrb[0].mxu0
      %v1007 = vadd.f32 %v942, %v1006
      %v1008 = vpop.f32.mrb[0].mxu0
      %1009 = vmatprep.mubr.bf16.mxu0 0
      %1010 = vmatmul.mubr.bf16.gmra.mrb[0].mxu0 %v756
      %v1011 = vpop.f32.mrb[0].mxu0
      %v1012 = vadd.f32 %v947, %v1011
      %v1013 = vpop.f32.mrb[0].mxu0
      %v1014 = vpop.f32.mrb[0].mxu0
      %v1015 = vadd.f32 %v950, %v1014
      %v1016 = vpop.f32.mrb[0].mxu0
      %1017 = vdwg.mxu0
      %v1018 = vmax.f32 %v988, %v996
      %v1019 = vmax.f32 %v991, %v999
      %v1020 = vmax.f32 %v1004, %v1012
      %v1021 = vmax.f32 %v1007, %v1015
      %v1022 = vmax.f32 %v1018, %v1020
      %v1023 = vmax.f32 %v1019, %v1021
      %v1025 = vlaneseq
      %v1026 = vshrl.u32 %v1025, 7
      %v1027 = vsub.s32 0, %v1026
      %v1028 = vrot.slane %v172, %v1027
      %v1030 = vadd.f32 %v1022, %v1028
      %v1031 = vadd.f32 %v1023, %v1028
      %vm1032 = vcmask 523264
      %1033 = vst.msk [vmem:[%s170] sm:$0xff] %vm1032, %v1030
      %1034 = vst.msk [vmem:[%s170 + $0x8] sm:$0xff] %vm1032, %v1031
      %p1035 = scmp.lt.s32.totalorder %s14, 1
      %s1036 = scalar_select %p1035, %s14, 1
      %s1037 = smul.addr %s1036, 2
      %s1038 = smul.addr %s1037, 8
      %s1039 = scalar_lea.vmem %s3, %s1038
      // Predicated region
      $region33: #{cnn_cifar10_forward.6} parent=31 // pred_check
        %p1040 = pneg %p100
      $region34: #{cnn_cifar10_forward.6} parent=31 // pred_check_branch
        %1042 = sbr.rel (%p1040) target = $region36
      $region35: #{cnn_cifar10_forward.6} parent=31 // pred_region
        _
      $region36: #{cnn_cifar10_forward.6} parent=31 // pred_fallthru
        _
    $region32: #{cnn_cifar10_forward.6} parent=5 // pred_fallthru
      _
    %p1043 = scmp.le.s32.totalorder 2, %s9
    // Predicated region
    $region37: #{cnn_cifar10_forward.6} parent=5 // pred_check
      %p1044 = pneg %p1043
    $region38: #{cnn_cifar10_forward.6} parent=5 // pred_check_branch
      %1046 = sbr.rel (%p1044) target = $region40
    $region39: #{cnn_cifar10_forward.6} parent=5 // pred_region
      %s1047 = ssub.s32 %s9, 2
      // Predicated region
      $region41: #{cnn_cifar10_forward.6} parent=39 // pred_check
        %p1048 = pneg %p106
      $region42: #{cnn_cifar10_forward.6} parent=39 // pred_check_branch
        %1050 = sbr.rel (%p1048) target = $region44
      $region43: #{cnn_cifar10_forward.6} parent=39 // pred_region
        %p1051 = scmp.lt.s32.totalorder %s15, 1
        %s1052 = scalar_select %p1051, %s15, 1
        %s1053 = smul.addr %s1052, 2
        %s1054 = smul.addr %s1053, 8
        %s1055 = scalar_lea.vmem %s3, %s1054
      $region44: #{cnn_cifar10_forward.6} parent=39 // pred_fallthru
        _
    $region40: #{cnn_cifar10_forward.6} parent=5 // pred_fallthru
      _
  $region6: #{cnn_cifar10_forward.6} parent=0 // loop_footer
    %s13 = sadd.s32 1, %s9
  $region7: #{cnn_cifar10_forward.6} parent=0 // loop_footer_branch
    %8 = sbr.rel target = $region3
  $region8: #{cnn_cifar10_forward.6} parent=0 // loop_exit
    _

// kernel: cnn_cifar10_forward.7
$region0: #{cnn_cifar10_forward.7}
  #allocation0 [shape = 'u32[]', space=smem, size = 0x4, offset = 0x4, fixed_abs, tag = 'smem constant byte address 0x4 - core index']
  #allocation1 [shape = 'u32[144,128]{1,0:T(1,128)}', space=vmem, size = 0x12000, scoped, tag = 'internal scratch']
  %s0 = inlined_call_operand.vmem [shape: bf16[2,1024], index: 0, kind: input, shape index: {}]
  %s1 = inlined_call_operand.vmem [shape: bf16[1024,64], index: 1, kind: input, shape index: {}]
  %s2 = inlined_call_operand.vmem [shape: f32[1,64], index: 2, kind: input, shape index: {}]
  %s3 = inlined_call_operand.vmem [shape: f32[64,10], index: 3, kind: input, shape index: {}]
  %s4 = inlined_call_operand.vmem [shape: f32[1,10], index: 4, kind: input, shape index: {}]
  %s5 = inlined_call_operand.hbm [shape: f32[2,10], index: 5, kind: output, shape index: {}]
  %s6 = sld [smem:[#allocation0]]
  $region30: #{cnn_cifar10_forward.7} parent=0
    _
  %s8 = ssub.s32 1, %s6
  %s9 = scalar_select 0, %s8, %s6
  $region1: #{cnn_cifar10_forward.7} parent=0
    #allocation2 [shape = 'u8[1024]{0}', space=vmem, size = 0x400, scoped, tag = 'output window, operand 0, single buffered']
    #allocation3 [shape = 's32[1]{0}', space=sflag, size = 0x4, scoped, tag = 'scoped memory for cnn_cifar10_forward.7']
    %10 = vsyncpa [#allocation3], 0
    // Predicated region
    $region2: #{cnn_cifar10_forward.7} parent=1 // pred_check
      _
    $region3: #{cnn_cifar10_forward.7} parent=1 // pred_check_branch
      %12 = sbr.rel (0) target = $region5
    $region4: #{cnn_cifar10_forward.7} parent=1 // pred_region
      _
    $region5: #{cnn_cifar10_forward.7} parent=1 // pred_fallthru
      _
    // Predicated region
    $region6: #{cnn_cifar10_forward.7} parent=1 // pred_check
      _
    $region7: #{cnn_cifar10_forward.7} parent=1 // pred_check_branch
      %14 = sbr.rel (0) target = $region9
    $region8: #{cnn_cifar10_forward.7} parent=1 // pred_region
      _
    $region9: #{cnn_cifar10_forward.7} parent=1 // pred_fallthru
      _
    // Predicated region
    $region10: #{cnn_cifar10_forward.7} parent=1 // pred_check
      _
    $region11: #{cnn_cifar10_forward.7} parent=1 // pred_check_branch
      %16 = sbr.rel (0) target = $region13
    $region12: #{cnn_cifar10_forward.7} parent=1 // pred_region
      _
    $region13: #{cnn_cifar10_forward.7} parent=1 // pred_fallthru
      _
    // Predicated region
    $region14: #{cnn_cifar10_forward.7} parent=1 // pred_check
      _
    $region15: #{cnn_cifar10_forward.7} parent=1 // pred_check_branch
      %18 = sbr.rel (0) target = $region17
    $region16: #{cnn_cifar10_forward.7} parent=1 // pred_region
      _
    $region17: #{cnn_cifar10_forward.7} parent=1 // pred_fallthru
      _
    // Predicated region
    $region18: #{cnn_cifar10_forward.7} parent=1 // pred_check
      _
    $region19: #{cnn_cifar10_forward.7} parent=1 // pred_check_branch
      %20 = sbr.rel (0) target = $region21
    $region20: #{cnn_cifar10_forward.7} parent=1 // pred_region
      _
    $region21: #{cnn_cifar10_forward.7} parent=1 // pred_fallthru
      _
    %v22 = vld [vmem:[%s0] sm:$0xff]
    %v23 = vld [vmem:[%s1] sm:$0xf]
    %v24 = vld [vmem:[%s1 + $0x4] sm:$0xf]
    %v25 = vld [vmem:[%s1 + $0x8] sm:$0xf]
    %v26 = vld [vmem:[%s1 + $0xc] sm:$0xf]
    %v27 = vld [vmem:[%s1 + $0x10] sm:$0xf]
    %v28 = vld [vmem:[%s1 + $0x14] sm:$0xf]
    %v29 = vld [vmem:[%s1 + $0x18] sm:$0xf]
    %v30 = vld [vmem:[%s1 + $0x1c] sm:$0xf]
    %v31 = vld [vmem:[%s1 + $0x20] sm:$0xf]
    %v32 = vld [vmem:[%s1 + $0x24] sm:$0xf]
    %v33 = vld [vmem:[%s1 + $0x28] sm:$0xf]
    %v34 = vld [vmem:[%s1 + $0x2c] sm:$0xf]
    %v35 = vld [vmem:[%s1 + $0x30] sm:$0xf]
    %v36 = vld [vmem:[%s1 + $0x34] sm:$0xf]
    %v37 = vld [vmem:[%s1 + $0x38] sm:$0xf]
    %v38 = vld [vmem:[%s1 + $0x3c] sm:$0xf]
    %v39 = vld [vmem:[%s1 + $0x40] sm:$0xf]
    %v40 = vld [vmem:[%s1 + $0x44] sm:$0xf]
    %v41 = vld [vmem:[%s1 + $0x48] sm:$0xf]
    %v42 = vld [vmem:[%s1 + $0x4c] sm:$0xf]
    %v43 = vld [vmem:[%s1 + $0x50] sm:$0xf]
    %v44 = vld [vmem:[%s1 + $0x54] sm:$0xf]
    %v45 = vld [vmem:[%s1 + $0x58] sm:$0xf]
    %v46 = vld [vmem:[%s1 + $0x5c] sm:$0xf]
    %v47 = vld [vmem:[%s1 + $0x60] sm:$0xf]
    %v48 = vld [vmem:[%s1 + $0x64] sm:$0xf]
    %v49 = vld [vmem:[%s1 + $0x68] sm:$0xf]
    %v50 = vld [vmem:[%s1 + $0x6c] sm:$0xf]
    %v51 = vld [vmem:[%s1 + $0x70] sm:$0xf]
    %v52 = vld [vmem:[%s1 + $0x74] sm:$0xf]
    %v53 = vld [vmem:[%s1 + $0x78] sm:$0xf]
    %v54 = vld [vmem:[%s1 + $0x7c] sm:$0xf]
    %v55 = vld [vmem:[%s1 + $0x80] sm:$0xf]
    %v56 = vld [vmem:[%s1 + $0x84] sm:$0xf]
    %v57 = vld [vmem:[%s1 + $0x88] sm:$0xf]
    %v58 = vld [vmem:[%s1 + $0x8c] sm:$0xf]
    %v59 = vld [vmem:[%s1 + $0x90] sm:$0xf]
    %v60 = vld [vmem:[%s1 + $0x94] sm:$0xf]
    %v61 = vld [vmem:[%s1 + $0x98] sm:$0xf]
    %v62 = vld [vmem:[%s1 + $0x9c] sm:$0xf]
    %v63 = vld [vmem:[%s1 + $0xa0] sm:$0xf]
    %v64 = vld [vmem:[%s1 + $0xa4] sm:$0xf]
    %v65 = vld [vmem:[%s1 + $0xa8] sm:$0xf]
    %v66 = vld [vmem:[%s1 + $0xac] sm:$0xf]
    %v67 = vld [vmem:[%s1 + $0xb0] sm:$0xf]
    %v68 = vld [vmem:[%s1 + $0xb4] sm:$0xf]
    %v69 = vld [vmem:[%s1 + $0xb8] sm:$0xf]
    %v70 = vld [vmem:[%s1 + $0xbc] sm:$0xf]
    %v71 = vld [vmem:[%s1 + $0xc0] sm:$0xf]
    %v72 = vld [vmem:[%s1 + $0xc4] sm:$0xf]
    %v73 = vld [vmem:[%s1 + $0xc8] sm:$0xf]
    %v74 = vld [vmem:[%s1 + $0xcc] sm:$0xf]
    %v75 = vld [vmem:[%s1 + $0xd0] sm:$0xf]
    %v76 = vld [vmem:[%s1 + $0xd4] sm:$0xf]
    %v77 = vld [vmem:[%s1 + $0xd8] sm:$0xf]
    %v78 = vld [vmem:[%s1 + $0xdc] sm:$0xf]
    %v79 = vld [vmem:[%s1 + $0xe0] sm:$0xf]
    %v80 = vld [vmem:[%s1 + $0xe4] sm:$0xf]
    %v81 = vld [vmem:[%s1 + $0xe8] sm:$0xf]
    %v82 = vld [vmem:[%s1 + $0xec] sm:$0xf]
    %v83 = vld [vmem:[%s1 + $0xf0] sm:$0xf]
    %v84 = vld [vmem:[%s1 + $0xf4] sm:$0xf]
    %v85 = vld [vmem:[%s1 + $0xf8] sm:$0xf]
    %v86 = vld [vmem:[%s1 + $0xfc] sm:$0xf]
    %v87 = vld [vmem:[%s1 + $0x100] sm:$0xf]
    %v88 = vld [vmem:[%s1 + $0x104] sm:$0xf]
    %v89 = vld [vmem:[%s1 + $0x108] sm:$0xf]
    %v90 = vld [vmem:[%s1 + $0x10c] sm:$0xf]
    %v91 = vld [vmem:[%s1 + $0x110] sm:$0xf]
    %v92 = vld [vmem:[%s1 + $0x114] sm:$0xf]
    %v93 = vld [vmem:[%s1 + $0x118] sm:$0xf]
    %v94 = vld [vmem:[%s1 + $0x11c] sm:$0xf]
    %v95 = vld [vmem:[%s1 + $0x120] sm:$0xf]
    %v96 = vld [vmem:[%s1 + $0x124] sm:$0xf]
    %v97 = vld [vmem:[%s1 + $0x128] sm:$0xf]
    %v98 = vld [vmem:[%s1 + $0x12c] sm:$0xf]
    %v99 = vld [vmem:[%s1 + $0x130] sm:$0xf]
    %v100 = vld [vmem:[%s1 + $0x134] sm:$0xf]
    %v101 = vld [vmem:[%s1 + $0x138] sm:$0xf]
    %v102 = vld [vmem:[%s1 + $0x13c] sm:$0xf]
    %v103 = vld [vmem:[%s1 + $0x140] sm:$0xf]
    %v104 = vld [vmem:[%s1 + $0x144] sm:$0xf]
    %v105 = vld [vmem:[%s1 + $0x148] sm:$0xf]
    %v106 = vld [vmem:[%s1 + $0x14c] sm:$0xf]
    %v107 = vld [vmem:[%s1 + $0x150] sm:$0xf]
    %v108 = vld [vmem:[%s1 + $0x154] sm:$0xf]
    %v109 = vld [vmem:[%s1 + $0x158] sm:$0xf]
    %v110 = vld [vmem:[%s1 + $0x15c] sm:$0xf]
    %v111 = vld [vmem:[%s1 + $0x160] sm:$0xf]
    %v112 = vld [vmem:[%s1 + $0x164] sm:$0xf]
    %v113 = vld [vmem:[%s1 + $0x168] sm:$0xf]
    %v114 = vld [vmem:[%s1 + $0x16c] sm:$0xf]
    %v115 = vld [vmem:[%s1 + $0x170] sm:$0xf]
    %v116 = vld [vmem:[%s1 + $0x174] sm:$0xf]
    %v117 = vld [vmem:[%s1 + $0x178] sm:$0xf]
    %v118 = vld [vmem:[%s1 + $0x17c] sm:$0xf]
    %v119 = vld [vmem:[%s1 + $0x180] sm:$0xf]
    %v120 = vld [vmem:[%s1 + $0x184] sm:$0xf]
    %v121 = vld [vmem:[%s1 + $0x188] sm:$0xf]
    %v122 = vld [vmem:[%s1 + $0x18c] sm:$0xf]
    %v123 = vld [vmem:[%s1 + $0x190] sm:$0xf]
    %v124 = vld [vmem:[%s1 + $0x194] sm:$0xf]
    %v125 = vld [vmem:[%s1 + $0x198] sm:$0xf]
    %v126 = vld [vmem:[%s1 + $0x19c] sm:$0xf]
    %v127 = vld [vmem:[%s1 + $0x1a0] sm:$0xf]
    %v128 = vld [vmem:[%s1 + $0x1a4] sm:$0xf]
    %v129 = vld [vmem:[%s1 + $0x1a8] sm:$0xf]
    %v130 = vld [vmem:[%s1 + $0x1ac] sm:$0xf]
    %v131 = vld [vmem:[%s1 + $0x1b0] sm:$0xf]
    %v132 = vld [vmem:[%s1 + $0x1b4] sm:$0xf]
    %v133 = vld [vmem:[%s1 + $0x1b8] sm:$0xf]
    %v134 = vld [vmem:[%s1 + $0x1bc] sm:$0xf]
    %v135 = vld [vmem:[%s1 + $0x1c0] sm:$0xf]
    %v136 = vld [vmem:[%s1 + $0x1c4] sm:$0xf]
    %v137 = vld [vmem:[%s1 + $0x1c8] sm:$0xf]
    %v138 = vld [vmem:[%s1 + $0x1cc] sm:$0xf]
    %v139 = vld [vmem:[%s1 + $0x1d0] sm:$0xf]
    %v140 = vld [vmem:[%s1 + $0x1d4] sm:$0xf]
    %v141 = vld [vmem:[%s1 + $0x1d8] sm:$0xf]
    %v142 = vld [vmem:[%s1 + $0x1dc] sm:$0xf]
    %v143 = vld [vmem:[%s1 + $0x1e0] sm:$0xf]
    %v144 = vld [vmem:[%s1 + $0x1e4] sm:$0xf]
    %v145 = vld [vmem:[%s1 + $0x1e8] sm:$0xf]
    %v146 = vld [vmem:[%s1 + $0x1ec] sm:$0xf]
    %v147 = vld [vmem:[%s1 + $0x1f0] sm:$0xf]
    %v148 = vld [vmem:[%s1 + $0x1f4] sm:$0xf]
    %v149 = vld [vmem:[%s1 + $0x1f8] sm:$0xf]
    %v150 = vld [vmem:[%s1 + $0x1fc] sm:$0xf]
    %v151 = vld [vmem:[%s2] sm:$0x1]
    %v153 = vlaneseq
    %v154 = vshrl.u32 %v153, 7
    %v155 = vsub.s32 0, %v154
    %v156 = vrot.slane %v151, %v155
    %v159 = vcombine.high %v22, %v22
    %v161 = vunpack.c.l.s4 1966171168
    %v162 = vunpack.c.0.s8 %v161
    %v163 = vlaneseq
    %v164 = vshrl.u32 %v163, 7
    %v165 = vsub.s32 %v162, %v164
    %v166 = vrot.slane %v22, %v165
    %v168 = vunpack.c.l.s4 1966171168
    %v169 = vunpack.c.0.s8 %v168
    %v170 = vlaneseq
    %v171 = vshrl.u32 %v170, 7
    %v172 = vsub.s32 %v169, %v171
    %v173 = vrot.slane %v159, %v172
    %v174 = vcombine.high %v166, %v166
    %v175 = vcombine.high %v173, %v173
    %v177 = vunpack.c.l.s4 1966171168
    %v178 = vunpack.c.0.s8 %v177
    %v179 = vlaneseq
    %v180 = vshrl.u32 %v179, 7
    %v181 = vsub.s32 %v178, %v180
    %v182 = vrot.slane %v166, %v181
    %v184 = vunpack.c.l.s4 1966171168
    %v185 = vunpack.c.0.s8 %v184
    %v186 = vlaneseq
    %v187 = vshrl.u32 %v186, 7
    %v188 = vsub.s32 %v185, %v187
    %v189 = vrot.slane %v173, %v188
    %v191 = vunpack.c.l.s4 1966171168
    %v192 = vunpack.c.0.s8 %v191
    %v193 = vlaneseq
    %v194 = vshrl.u32 %v193, 7
    %v195 = vsub.s32 %v192, %v194
    %v196 = vrot.slane %v174, %v195
    %v198 = vunpack.c.l.s4 1966171168
    %v199 = vunpack.c.0.s8 %v198
    %v200 = vlaneseq
    %v201 = vshrl.u32 %v200, 7
    %v202 = vsub.s32 %v199, %v201
    %v203 = vrot.slane %v175, %v202
    %v204 = vcombine.high %v182, %v182
    %v205 = vcombine.high %v189, %v189
    %v206 = vcombine.high %v196, %v196
    %v207 = vcombine.high %v203, %v203
    %v344 = vunpack.c.l.b16 %v23
    %v345 = vunpack.c.l.b16 %v24
    %v346 = vunpack.c.l.b16 %v25
    %v347 = vunpack.c.l.b16 %v26
    %v348 = vunpack.c.l.b16 %v27
    %v349 = vunpack.c.l.b16 %v28
    %v350 = vunpack.c.l.b16 %v29
    %v351 = vunpack.c.l.b16 %v30
    %v352 = vunpack.c.l.b16 %v31
    %v353 = vunpack.c.l.b16 %v32
    %v354 = vunpack.c.l.b16 %v33
    %v355 = vunpack.c.l.b16 %v34
    %v356 = vunpack.c.l.b16 %v35
    %v357 = vunpack.c.l.b16 %v36
    %v358 = vunpack.c.l.b16 %v37
    %v359 = vunpack.c.l.b16 %v38
    %v360 = vunpack.c.l.b16 %v39
    %v361 = vunpack.c.l.b16 %v40
    %v362 = vunpack.c.l.b16 %v41
    %v363 = vunpack.c.l.b16 %v42
    %v364 = vunpack.c.l.b16 %v43
    %v365 = vunpack.c.l.b16 %v44
    %v366 = vunpack.c.l.b16 %v45
    %v367 = vunpack.c.l.b16 %v46
    %v368 = vunpack.c.l.b16 %v47
    %v369 = vunpack.c.l.b16 %v48
    %v370 = vunpack.c.l.b16 %v49
    %v371 = vunpack.c.l.b16 %v50
    %v372 = vunpack.c.l.b16 %v51
    %v373 = vunpack.c.l.b16 %v52
    %v374 = vunpack.c.l.b16 %v53
    %v375 = vunpack.c.l.b16 %v54
    %v376 = vunpack.c.l.b16 %v55
    %v377 = vunpack.c.l.b16 %v56
    %v378 = vunpack.c.l.b16 %v57
    %v379 = vunpack.c.l.b16 %v58
    %v380 = vunpack.c.l.b16 %v59
    %v381 = vunpack.c.l.b16 %v60
    %v382 = vunpack.c.l.b16 %v61
    %v383 = vunpack.c.l.b16 %v62
    %v384 = vunpack.c.l.b16 %v63
    %v385 = vunpack.c.l.b16 %v64
    %v386 = vunpack.c.l.b16 %v65
    %v387 = vunpack.c.l.b16 %v66
    %v388 = vunpack.c.l.b16 %v67
    %v389 = vunpack.c.l.b16 %v68
    %v390 = vunpack.c.l.b16 %v69
    %v391 = vunpack.c.l.b16 %v70
    %v392 = vunpack.c.l.b16 %v71
    %v393 = vunpack.c.l.b16 %v72
    %v394 = vunpack.c.l.b16 %v73
    %v395 = vunpack.c.l.b16 %v74
    %v396 = vunpack.c.l.b16 %v75
    %v397 = vunpack.c.l.b16 %v76
    %v398 = vunpack.c.l.b16 %v77
    %v399 = vunpack.c.l.b16 %v78
    %v400 = vunpack.c.l.b16 %v79
    %v401 = vunpack.c.l.b16 %v80
    %v402 = vunpack.c.l.b16 %v81
    %v403 = vunpack.c.l.b16 %v82
    %v404 = vunpack.c.l.b16 %v83
    %v405 = vunpack.c.l.b16 %v84
    %v406 = vunpack.c.l.b16 %v85
    %v407 = vunpack.c.l.b16 %v86
    %v408 = vunpack.c.l.b16 %v87
    %v409 = vunpack.c.l.b16 %v88
    %v410 = vunpack.c.l.b16 %v89
    %v411 = vunpack.c.l.b16 %v90
    %v412 = vunpack.c.l.b16 %v91
    %v413 = vunpack.c.l.b16 %v92
    %v414 = vunpack.c.l.b16 %v93
    %v415 = vunpack.c.l.b16 %v94
    %v416 = vunpack.c.l.b16 %v95
    %v417 = vunpack.c.l.b16 %v96
    %v418 = vunpack.c.l.b16 %v97
    %v419 = vunpack.c.l.b16 %v98
    %v420 = vunpack.c.l.b16 %v99
    %v421 = vunpack.c.l.b16 %v100
    %v422 = vunpack.c.l.b16 %v101
    %v423 = vunpack.c.l.b16 %v102
    %v424 = vunpack.c.l.b16 %v103
    %v425 = vunpack.c.l.b16 %v104
    %v426 = vunpack.c.l.b16 %v105
    %v427 = vunpack.c.l.b16 %v106
    %v428 = vunpack.c.l.b16 %v107
    %v429 = vunpack.c.l.b16 %v108
    %v430 = vunpack.c.l.b16 %v109
    %v431 = vunpack.c.l.b16 %v110
    %v432 = vunpack.c.l.b16 %v111
    %v433 = vunpack.c.l.b16 %v112
    %v434 = vunpack.c.l.b16 %v113
    %v435 = vunpack.c.l.b16 %v114
    %v436 = vunpack.c.l.b16 %v115
    %v437 = vunpack.c.l.b16 %v116
    %v438 = vunpack.c.l.b16 %v117
    %v439 = vunpack.c.l.b16 %v118
    %v440 = vunpack.c.l.b16 %v119
    %v441 = vunpack.c.l.b16 %v120
    %v442 = vunpack.c.l.b16 %v121
    %v443 = vunpack.c.l.b16 %v122
    %v444 = vunpack.c.l.b16 %v123
    %v445 = vunpack.c.l.b16 %v124
    %v446 = vunpack.c.l.b16 %v125
    %v447 = vunpack.c.l.b16 %v126
    %v448 = vunpack.c.l.b16 %v127
    %v449 = vunpack.c.l.b16 %v128
    %v450 = vunpack.c.l.b16 %v129
    %v451 = vunpack.c.l.b16 %v130
    %v452 = vunpack.c.l.b16 %v131
    %v453 = vunpack.c.l.b16 %v132
    %v454 = vunpack.c.l.b16 %v133
    %v455 = vunpack.c.l.b16 %v134
    %v456 = vunpack.c.l.b16 %v135
    %v457 = vunpack.c.l.b16 %v136
    %v458 = vunpack.c.l.b16 %v137
    %v459 = vunpack.c.l.b16 %v138
    %v460 = vunpack.c.l.b16 %v139
    %v461 = vunpack.c.l.b16 %v140
    %v462 = vunpack.c.l.b16 %v141
    %v463 = vunpack.c.l.b16 %v142
    %v464 = vunpack.c.l.b16 %v143
    %v465 = vunpack.c.l.b16 %v144
    %v466 = vunpack.c.l.b16 %v145
    %v467 = vunpack.c.l.b16 %v146
    %v468 = vunpack.c.l.b16 %v147
    %v469 = vunpack.c.l.b16 %v148
    %v470 = vunpack.c.l.b16 %v149
    %v471 = vunpack.c.l.b16 %v150
    %v472 = vpack.c.b16 %v345, %v344
    %v473 = vpack.c.b16 %v347, %v346
    %v474 = vpack.c.b16 %v349, %v348
    %v475 = vpack.c.b16 %v351, %v350
    %v476 = vpack.c.b16 %v353, %v352
    %v477 = vpack.c.b16 %v355, %v354
    %v478 = vpack.c.b16 %v357, %v356
    %v479 = vpack.c.b16 %v359, %v358
    %v480 = vpack.c.b16 %v361, %v360
    %v481 = vpack.c.b16 %v363, %v362
    %v482 = vpack.c.b16 %v365, %v364
    %v483 = vpack.c.b16 %v367, %v366
    %v484 = vpack.c.b16 %v369, %v368
    %v485 = vpack.c.b16 %v371, %v370
    %v486 = vpack.c.b16 %v373, %v372
    %v487 = vpack.c.b16 %v375, %v374
    %v488 = vpack.c.b16 %v377, %v376
    %v489 = vpack.c.b16 %v379, %v378
    %v490 = vpack.c.b16 %v381, %v380
    %v491 = vpack.c.b16 %v383, %v382
    %v492 = vpack.c.b16 %v385, %v384
    %v493 = vpack.c.b16 %v387, %v386
    %v494 = vpack.c.b16 %v389, %v388
    %v495 = vpack.c.b16 %v391, %v390
    %v496 = vpack.c.b16 %v393, %v392
    %v497 = vpack.c.b16 %v395, %v394
    %v498 = vpack.c.b16 %v397, %v396
    %v499 = vpack.c.b16 %v399, %v398
    %v500 = vpack.c.b16 %v401, %v400
    %v501 = vpack.c.b16 %v403, %v402
    %v502 = vpack.c.b16 %v405, %v404
    %v503 = vpack.c.b16 %v407, %v406
    %v504 = vpack.c.b16 %v409, %v408
    %v505 = vpack.c.b16 %v411, %v410
    %v506 = vpack.c.b16 %v413, %v412
    %v507 = vpack.c.b16 %v415, %v414
    %v508 = vpack.c.b16 %v417, %v416
    %v509 = vpack.c.b16 %v419, %v418
    %v510 = vpack.c.b16 %v421, %v420
    %v511 = vpack.c.b16 %v423, %v422
    %v512 = vpack.c.b16 %v425, %v424
    %v513 = vpack.c.b16 %v427, %v426
    %v514 = vpack.c.b16 %v429, %v428
    %v515 = vpack.c.b16 %v431, %v430
    %v516 = vpack.c.b16 %v433, %v432
    %v517 = vpack.c.b16 %v435, %v434
    %v518 = vpack.c.b16 %v437, %v436
    %v519 = vpack.c.b16 %v439, %v438
    %v520 = vpack.c.b16 %v441, %v440
    %v521 = vpack.c.b16 %v443, %v442
    %v522 = vpack.c.b16 %v445, %v444
    %v523 = vpack.c.b16 %v447, %v446
    %v524 = vpack.c.b16 %v449, %v448
    %v525 = vpack.c.b16 %v451, %v450
    %v526 = vpack.c.b16 %v453, %v452
    %v527 = vpack.c.b16 %v455, %v454
    %v528 = vpack.c.b16 %v457, %v456
    %v529 = vpack.c.b16 %v459, %v458
    %v530 = vpack.c.b16 %v461, %v460
    %v531 = vpack.c.b16 %v463, %v462
    %v532 = vpack.c.b16 %v465, %v464
    %v533 = vpack.c.b16 %v467, %v466
    %v534 = vpack.c.b16 %v469, %v468
    %v535 = vpack.c.b16 %v471, %v470
    %600 = vmatprep.subr.bf16.mxu0 0
    %601 = vmatpush1.bf16.msra.mxu0 %v472
    %602 = vmatprep.subr.bf16.mxu0 0
    %603 = vmatpush1.bf16.msra.mxu0 %v473
    %604 = vmatprep.subr.bf16.mxu0 0
    %605 = vmatpush1.bf16.msra.mxu0 %v474
    %606 = vmatprep.subr.bf16.mxu0 0
    %607 = vmatpush1.bf16.msra.mxu0 %v475
    %608 = vmatprep.subr.bf16.mxu0 0
    %609 = vmatpush1.bf16.msra.mxu0 %v476
    %610 = vmatprep.subr.bf16.mxu0 0
    %611 = vmatpush1.bf16.msra.mxu0 %v477
    %612 = vmatprep.subr.bf16.mxu0 0
    %613 = vmatpush1.bf16.msra.mxu0 %v478
    %614 = vmatprep.subr.bf16.mxu0 0
    %615 = vmatpush1.bf16.msra.mxu0 %v479
    %616 = vmatprep.subr.bf16.mxu0 0
    %617 = vmatpush1.bf16.msra.mxu0 %v480
    %618 = vmatprep.subr.bf16.mxu0 0
    %619 = vmatpush1.bf16.msra.mxu0 %v481
    %620 = vmatprep.subr.bf16.mxu0 0
    %621 = vmatpush1.bf16.msra.mxu0 %v482
    %622 = vmatprep.subr.bf16.mxu0 0
    %623 = vmatpush1.bf16.msra.mxu0 %v483
    %624 = vmatprep.subr.bf16.mxu0 0
    %625 = vmatpush1.bf16.msra.mxu0 %v484
    %626 = vmatprep.subr.bf16.mxu0 0
    %627 = vmatpush1.bf16.msra.mxu0 %v485
    %628 = vmatprep.subr.bf16.mxu0 0
    %629 = vmatpush1.bf16.msra.mxu0 %v486
    %630 = vmatprep.subr.bf16.mxu0 0
    %631 = vmatpush1.bf16.msra.mxu0 %v487
    %632 = vmatprep.mubr.bf16.mxu0 %v196
    %633 = vmatmul.mubr.bf16.gmra.mrb[0].mxu0 %v182
    %v634 = vpop.f32.mrb[0].mxu0
    %v635 = vadd.f32 %v156, %v634
    %v636 = vpop.f32.mrb[0].mxu0
    %v637 = vpop.f32.mrb[0].mxu0
    %v638 = vpop.f32.mrb[0].mxu0
    %639 = vdwg.mxu0
    %640 = vmatprep.subr.bf16.mxu0 0
    %641 = vmatpush1.bf16.msra.mxu0 %v488
    %642 = vmatprep.subr.bf16.mxu0 0
    %643 = vmatpush1.bf16.msra.mxu0 %v489
    %644 = vmatprep.subr.bf16.mxu0 0
    %645 = vmatpush1.bf16.msra.mxu0 %v490
    %646 = vmatprep.subr.bf16.mxu0 0
    %647 = vmatpush1.bf16.msra.mxu0 %v491
    %648 = vmatprep.subr.bf16.mxu0 0
    %649 = vmatpush1.bf16.msra.mxu0 %v492
    %650 = vmatprep.subr.bf16.mxu0 0
    %651 = vmatpush1.bf16.msra.mxu0 %v493
    %652 = vmatprep.subr.bf16.mxu0 0
    %653 = vmatpush1.bf16.msra.mxu0 %v494
    %654 = vmatprep.subr.bf16.mxu0 0
    %655 = vmatpush1.bf16.msra.mxu0 %v495
    %656 = vmatprep.subr.bf16.mxu0 0
    %657 = vmatpush1.bf16.msra.mxu0 %v496
    %658 = vmatprep.subr.bf16.mxu0 0
    %659 = vmatpush1.bf16.msra.mxu0 %v497
    %660 = vmatprep.subr.bf16.mxu0 0
    %661 = vmatpush1.bf16.msra.mxu0 %v498
    %662 = vmatprep.subr.bf16.mxu0 0
    %663 = vmatpush1.bf16.msra.mxu0 %v499
    %664 = vmatprep.subr.bf16.mxu0 0
    %665 = vmatpush1.bf16.msra.mxu0 %v500
    %666 = vmatprep.subr.bf16.mxu0 0
    %667 = vmatpush1.bf16.msra.mxu0 %v501
    %668 = vmatprep.subr.bf16.mxu0 0
    %669 = vmatpush1.bf16.msra.mxu0 %v502
    %670 = vmatprep.subr.bf16.mxu0 0
    %671 = vmatpush1.bf16.msra.mxu0 %v503
    %672 = vmatprep.mubr.bf16.mxu0 %v206
    %673 = vmatmul.mubr.bf16.gmra.mrb[0].mxu0 %v204
    %v674 = vpop.f32.mrb[0].mxu0
    %v675 = vadd.f32 %v635, %v674
    %v676 = vpop.f32.mrb[0].mxu0
    %v677 = vpop.f32.mrb[0].mxu0
    %v678 = vpop.f32.mrb[0].mxu0
    %679 = vdwg.mxu0
    %680 = vmatprep.subr.bf16.mxu0 0
    %681 = vmatpush1.bf16.msra.mxu0 %v504
    %682 = vmatprep.subr.bf16.mxu0 0
    %683 = vmatpush1.bf16.msra.mxu0 %v505
    %684 = vmatprep.subr.bf16.mxu0 0
    %685 = vmatpush1.bf16.msra.mxu0 %v506
    %686 = vmatprep.subr.bf16.mxu0 0
    %687 = vmatpush1.bf16.msra.mxu0 %v507
    %688 = vmatprep.subr.bf16.mxu0 0
    %689 = vmatpush1.bf16.msra.mxu0 %v508
    %690 = vmatprep.subr.bf16.mxu0 0
    %691 = vmatpush1.bf16.msra.mxu0 %v509
    %692 = vmatprep.subr.bf16.mxu0 0
    %693 = vmatpush1.bf16.msra.mxu0 %v510
    %694 = vmatprep.subr.bf16.mxu0 0
    %695 = vmatpush1.bf16.msra.mxu0 %v511
    %696 = vmatprep.subr.bf16.mxu0 0
    %697 = vmatpush1.bf16.msra.mxu0 %v512
    %698 = vmatprep.subr.bf16.mxu0 0
    %699 = vmatpush1.bf16.msra.mxu0 %v513
    %700 = vmatprep.subr.bf16.mxu0 0
    %701 = vmatpush1.bf16.msra.mxu0 %v514
    %702 = vmatprep.subr.bf16.mxu0 0
    %703 = vmatpush1.bf16.msra.mxu0 %v515
    %704 = vmatprep.subr.bf16.mxu0 0
    %705 = vmatpush1.bf16.msra.mxu0 %v516
    %706 = vmatprep.subr.bf16.mxu0 0
    %707 = vmatpush1.bf16.msra.mxu0 %v517
    %708 = vmatprep.subr.bf16.mxu0 0
    %709 = vmatpush1.bf16.msra.mxu0 %v518
    %710 = vmatprep.subr.bf16.mxu0 0
    %711 = vmatpush1.bf16.msra.mxu0 %v519
    %712 = vmatprep.mubr.bf16.mxu0 %v203
    %713 = vmatmul.mubr.bf16.gmra.mrb[0].mxu0 %v189
    %v714 = vpop.f32.mrb[0].mxu0
    %v715 = vadd.f32 %v675, %v714
    %v716 = vpop.f32.mrb[0].mxu0
    %v717 = vpop.f32.mrb[0].mxu0
    %v718 = vpop.f32.mrb[0].mxu0
    %719 = vdwg.mxu0
    %720 = vmatprep.subr.bf16.mxu0 0
    %721 = vmatpush1.bf16.msra.mxu0 %v520
    %722 = vmatprep.subr.bf16.mxu0 0
    %723 = vmatpush1.bf16.msra.mxu0 %v521
    %724 = vmatprep.subr.bf16.mxu0 0
    %725 = vmatpush1.bf16.msra.mxu0 %v522
    %726 = vmatprep.subr.bf16.mxu0 0
    %727 = vmatpush1.bf16.msra.mxu0 %v523
    %728 = vmatprep.subr.bf16.mxu0 0
    %729 = vmatpush1.bf16.msra.mxu0 %v524
    %730 = vmatprep.subr.bf16.mxu0 0
    %731 = vmatpush1.bf16.msra.mxu0 %v525
    %732 = vmatprep.subr.bf16.mxu0 0
    %733 = vmatpush1.bf16.msra.mxu0 %v526
    %734 = vmatprep.subr.bf16.mxu0 0
    %735 = vmatpush1.bf16.msra.mxu0 %v527
    %736 = vmatprep.subr.bf16.mxu0 0
    %737 = vmatpush1.bf16.msra.mxu0 %v528
    %738 = vmatprep.subr.bf16.mxu0 0
    %739 = vmatpush1.bf16.msra.mxu0 %v529
    %740 = vmatprep.subr.bf16.mxu0 0
    %741 = vmatpush1.bf16.msra.mxu0 %v530
    %742 = vmatprep.subr.bf16.mxu0 0
    %743 = vmatpush1.bf16.msra.mxu0 %v531
    %744 = vmatprep.subr.bf16.mxu0 0
    %745 = vmatpush1.bf16.msra.mxu0 %v532
    %746 = vmatprep.subr.bf16.mxu0 0
    %747 = vmatpush1.bf16.msra.mxu0 %v533
    %748 = vmatprep.subr.bf16.mxu0 0
    %749 = vmatpush1.bf16.msra.mxu0 %v534
    %750 = vmatprep.subr.bf16.mxu0 0
    %751 = vmatpush1.bf16.msra.mxu0 %v535
    %752 = vmatprep.mubr.bf16.mxu0 %v207
    %753 = vmatmul.mubr.bf16.gmra.mrb[0].mxu0 %v205
    %v754 = vpop.f32.mrb[0].mxu0
    %v755 = vadd.f32 %v715, %v754
    %v756 = vpop.f32.mrb[0].mxu0
    %v757 = vpop.f32.mrb[0].mxu0
    %v758 = vpop.f32.mrb[0].mxu0
    %759 = vdwg.mxu0
    %v760 = vld [vmem:[%s3] sm:$0xff]
    %v761 = vld [vmem:[%s3 + $0x8] sm:$0xff]
    %v762 = vld [vmem:[%s3 + $0x10] sm:$0xff]
    %v763 = vld [vmem:[%s3 + $0x18] sm:$0xff]
    %v764 = vld [vmem:[%s3 + $0x20] sm:$0xff]
    %v765 = vld [vmem:[%s3 + $0x28] sm:$0xff]
    %v766 = vld [vmem:[%s3 + $0x30] sm:$0xff]
    %v767 = vld [vmem:[%s3 + $0x38] sm:$0xff]
    %v768 = vld [vmem:[%s4] sm:$0x1]
    %v770 = vlaneseq
    %v771 = vshrl.u32 %v770, 7
    %v772 = vsub.s32 0, %v771
    %v773 = vrot.slane %v768, %v772
    %vm775 = vcmask 523264
    %v777 = vsel %vm775, %v755, 0
    %779 = vmatprep.subr.mxu0 0.0
    %780 = vmatpush1.msra.mxu0 %v760
    %781 = vmatprep.subr.mxu0 0.0
    %782 = vmatpush1.msra.mxu0 %v761
    %783 = vmatprep.subr.mxu0 0.0
    %784 = vmatpush1.msra.mxu0 %v762
    %785 = vmatprep.subr.mxu0 0.0
    %786 = vmatpush1.msra.mxu0 %v763
    %787 = vmatprep.subr.mxu0 0.0
    %788 = vmatpush1.msra.mxu0 %v764
    %789 = vmatprep.subr.mxu0 0.0
    %790 = vmatpush1.msra.mxu0 %v765
    %791 = vmatprep.subr.mxu0 0.0
    %792 = vmatpush1.msra.mxu0 %v766
    %793 = vmatprep.subr.mxu0 0.0
    %794 = vmatpush1.msra.mxu0 %v767
    %795 = vmatprep.subr.mxu0 0.0
    %796 = vmatpush1.msra.mxu0 0.0
    %797 = vmatprep.subr.mxu0 0.0
    %798 = vmatpush1.msra.mxu0 0.0
    %799 = vmatprep.subr.mxu0 0.0
    %800 = vmatpush1.msra.mxu0 0.0
    %801 = vmatprep.subr.mxu0 0.0
    %802 = vmatpush1.msra.mxu0 0.0
    %803 = vmatprep.subr.mxu0 0.0
    %804 = vmatpush1.msra.mxu0 0.0
    %805 = vmatprep.subr.mxu0 0.0
    %806 = vmatpush1.msra.mxu0 0.0
    %807 = vmatprep.subr.mxu0 0.0
    %808 = vmatpush1.msra.mxu0 0.0
    %809 = vmatprep.subr.mxu0 0.0
    %810 = vmatpush1.msra.mxu0 0.0
    %811 = vmatprep.subr.mxu0 0.0
    %812 = vmatpush1.msra.mxu0 0.0
    %813 = vmatprep.subr.mxu0 0.0
    %814 = vmatpush1.msra.mxu0 0.0
    %815 = vmatprep.subr.mxu0 0.0
    %816 = vmatpush1.msra.mxu0 0.0
    %817 = vmatprep.subr.mxu0 0.0
    %818 = vmatpush1.msra.mxu0 0.0
    %819 = vmatprep.subr.mxu0 0.0
    %820 = vmatpush1.msra.mxu0 0.0
    %821 = vmatprep.subr.mxu0 0.0
    %822 = vmatpush1.msra.mxu0 0.0
    %823 = vmatprep.subr.mxu0 0.0
    %824 = vmatpush1.msra.mxu0 0.0
    %825 = vmatprep.subr.mxu0 0.0
    %826 = vmatpush1.msra.mxu0 0.0
    %827 = vmatprep.subr.mxu0 0.0
    %828 = vmatpush1.msra.mxu0 0.0
    %829 = vmatprep.subr.mxu0 0.0
    %830 = vmatpush1.msra.mxu0 0.0
    %831 = vmatprep.subr.mxu0 0.0
    %832 = vmatpush1.msra.mxu0 0.0
    %833 = vmatprep.subr.mxu0 0.0
    %834 = vmatpush1.msra.mxu0 0.0
    %835 = vmatprep.subr.mxu0 0.0
    %836 = vmatpush1.msra.mxu0 0.0
    %837 = vmatprep.subr.mxu0 0.0
    %838 = vmatpush1.msra.mxu0 0.0
    %839 = vmatprep.subr.mxu0 0.0
    %840 = vmatpush1.msra.mxu0 0.0
    %841 = vmatprep.subr.mxu0 0.0
    %842 = vmatpush1.msra.mxu0 0.0
    %843 = vmatprep.mubr.f32.mxu0 0.0
    %844 = vmatmul.mubr.f32.gmra.mrb[0].mxu0 %v777
    %v845 = vpop.f32.mrb[0].mxu0
    %v846 = vadd.f32 %v773, %v845
    %v847 = vpop.f32.mrb[0].mxu0
    %848 = vdwg.mxu0
    %v849 = vmax.f32 %v846, 0.0
    %vm850 = vcmask 74752
    %851 = vst.msk [vmem:[#allocation2] sm:$0x3] %vm850, %v849
    // Predicated region
    $region22: #{cnn_cifar10_forward.7} parent=1 // pred_check
      _
    $region23: #{cnn_cifar10_forward.7} parent=1 // pred_check_branch
      %853 = sbr.rel (0) target = $region25
    $region24: #{cnn_cifar10_forward.7} parent=1 // pred_region
      %s855 = ssub.s32 32, 32
      %856 = vsyncadd [#allocation3], %s855
      %s858 = sshll.u32 [#allocation2], 4
      %s859 = int_to_ptr.vmem [resolvable:$true] %s858
      %861 = dma.vmem_to_hbm [thread:$0]  %s859, 32, %s5, [#allocation3]
    $region25: #{cnn_cifar10_forward.7} parent=1 // pred_fallthru
      _
    // Predicated region
    $region26: #{cnn_cifar10_forward.7} parent=1 // pred_check
      _
    $region27: #{cnn_cifar10_forward.7} parent=1 // pred_check_branch
      %863 = sbr.rel (0) target = $region29
    $region28: #{cnn_cifar10_forward.7} parent=1 // pred_region
      %864 = dma.done [#allocation3], 32
    $region29: #{cnn_cifar10_forward.7} parent=1 // pred_fallthru
      _
    %865 = vsyncpa [#allocation3], 1

</llo_original>
